<compile_context>
chip_gen: v7x
topology: tpu7x:2x2x1
jax: 0.10.0
libtpu: 0.0.40
codegen_flags: <defaults>
</compile_context>

<pallas_src>
import numpy as np
import jax
import jax.numpy as jnp
from jax.experimental import pallas as pl
from jax.experimental.pallas import tpu as pltpu


# ---------------------------------------------------------------------------
# Fused kernel: conv1 + ReLU + conv2 + ReLU + flatten + Linear + ReLU + Linear
# ---------------------------------------------------------------------------
def _cnn_fused_kernel(x_ref, a1_ref, b1_ref, a2_ref, b2_ref,
                      w3_ref, b3_ref, w4_ref, b4_ref,
                      o_ref, xpad_ref, h1pad_ref):
    B = x_ref.shape[0]
    H = x_ref.shape[1]            # 16 (spatial height == width)
    n_ho = w3_ref.shape[0]        # 8 conv2 output rows

    # Zero the H-padding rows of both activation scratch buffers once.
    xpad_ref[...] = jnp.zeros_like(xpad_ref)
    h1pad_ref[...] = jnp.zeros_like(h1pad_ref)

    for b in range(B):            # tiny static batch -> fully unrolled
        # -------- conv1 (4 -> 8, k=3, s=1, p=1) + ReLU --------------------
        # rows: (16, 64), lane = w*4 + cin ; H-pad lives in the scratch.
        xpad_ref[b, 1:H + 1, :] = x_ref[b]
        acc1 = jnp.zeros((H, 128), jnp.float32)
        for kh in range(3):
            acc1 = acc1 + jnp.dot(xpad_ref[b, kh:kh + H, :], a1_ref[kh],
                                  preferred_element_type=jnp.float32)
        h1 = jnp.maximum(acc1 + b1_ref[...], 0.0)        # (16,128) lane = w*8 + c

        # -------- conv2 (8 -> 16, k=3, s=2, p=1) + ReLU --------------------
        # Computed at stride 1 over H (virtual rows v = 0..15); only even
        # rows v = 2*ho are real outputs and only those are consumed below.
        # Stride-2 over W is already folded into A2's lane structure.
        h1pad_ref[b, 1:H + 1, :] = h1
        acc2 = jnp.zeros((H, 128), jnp.float32)
        for kh in range(3):
            acc2 = acc2 + jnp.dot(h1pad_ref[b, kh:kh + H, :], a2_ref[kh],
                                  preferred_element_type=jnp.float32)
        h2 = jnp.maximum(acc2 + b2_ref[...], 0.0)        # (16,128) lane = wo*16 + c

        # -------- flatten (NCHW view order folded into W3R) + Linear+ReLU --
        acc3 = jnp.zeros((1, w3_ref.shape[2]), jnp.float32)
        for ho in range(n_ho):
            acc3 = acc3 + jnp.dot(h2[2 * ho:2 * ho + 1, :], w3_ref[ho],
                                  preferred_element_type=jnp.float32)
        h3 = jnp.maximum(acc3 + b3_ref[...], 0.0)        # (1, 32)

        # -------- Linear(32 -> 10) -----------------------------------------
        out_b = jnp.dot(h3, w4_ref[...],
                        preferred_element_type=jnp.float32) + b4_ref[...]
        o_ref[b:b + 1, :] = out_b.astype(o_ref.dtype)


# ---------------------------------------------------------------------------
# Parameter init (PyTorch-native shapes) and one-time packing for the kernel
# ---------------------------------------------------------------------------
def init_params(key):
    ks = jax.random.split(key, 8)

    def uniform(k, shape, fan_in):
        bound = 1.0 / float(np.sqrt(fan_in))
        return jax.random.uniform(k, shape, jnp.float32, -bound, bound)

    return {
        "w1": uniform(ks[0], (8, 4, 3, 3), 4 * 9),      # Conv2d(4, 8, 3, p=1)
        "b1": uniform(ks[1], (8,), 4 * 9),
        "w2": uniform(ks[2], (16, 8, 3, 3), 8 * 9),     # Conv2d(8, 16, 3, s=2, p=1)
        "b2": uniform(ks[3], (16,), 8 * 9),
        "w3": uniform(ks[4], (32, 1024), 1024),         # Linear(1024, 32), torch (out,in)
        "b3": uniform(ks[5], (32,), 1024),
        "w4": uniform(ks[6], (10, 32), 32),             # Linear(32, 10)
        "b4": uniform(ks[7], (10,), 32),
    }


def pack_params(params):
    """Fold conv taps / W-padding / W-stride and the NCHW flatten order into
    lane-dense structured weight matrices.  Runs once, on the host."""
    w1 = np.asarray(params["w1"], np.float32)   # (8, 4, 3, 3)
    w2 = np.asarray(params["w2"], np.float32)   # (16, 8, 3, 3)
    w3 = np.asarray(params["w3"], np.float32)   # (32, 1024)
    w4 = np.asarray(params["w4"], np.float32)   # (10, 32)

    # conv1: input row lane = win*4 + cin (64 lanes) -> output lane = wout*8 + cout.
    A1 = np.zeros((3, 16 * 4, 16 * 8), np.float32)
    for kh in range(3):
        for kw in range(3):
            tap = w1[:, :, kh, kw].T                       # (cin=4, cout=8)
            for wo in range(16):
                wi = wo + kw - 1                           # stride 1, pad 1
                if 0 <= wi < 16:
                    A1[kh, wi * 4:(wi + 1) * 4, wo * 8:(wo + 1) * 8] = tap

    # conv2: input row lane = win*8 + c1 (128 lanes) -> output lane = wo*16 + c2;
    # the stride-2 column subsampling is folded in here.
    A2 = np.zeros((3, 16 * 8, 8 * 16), np.float32)
    for kh in range(3):
        for kw in range(3):
            tap = w2[:, :, kh, kw].T                       # (c1=8, c2=16)
            for wo in range(8):
                wi = 2 * wo + kw - 1                       # stride 2, pad 1
                if 0 <= wi < 16:
                    A2[kh, wi * 8:(wi + 1) * 8, wo * 16:(wo + 1) * 16] = tap

    # Linear(1024, 32): PyTorch flattens conv2 output (N,16,8,8) NCHW as
    # f = c2*64 + ho*8 + wo; the kernel sees row ho with lane = wo*16 + c2.
    w3r = w3.reshape(32, 16, 8, 8)                         # (j, c2, ho, wo)
    W3R = np.ascontiguousarray(
        np.transpose(w3r, (2, 3, 1, 0)).reshape(8, 8 * 16, 32))

    return {
        "A1": jnp.asarray(A1),
        "b1": jnp.asarray(np.tile(np.asarray(params["b1"], np.float32), 16)[None, :]),
        "A2": jnp.asarray(A2),
        "b2": jnp.asarray(np.tile(np.asarray(params["b2"], np.float32), 8)[None, :]),
        "W3R": jnp.asarray(W3R),
        "b3": jnp.asarray(np.asarray(params["b3"], np.float32)[None, :]),
        "W4T": jnp.asarray(np.ascontiguousarray(w4.T)),
        "b4": jnp.asarray(np.asarray(params["b4"], np.float32)[None, :]),
    }


# ---------------------------------------------------------------------------
# Forward pass (classification path of Cnn.forward) — one pallas_call
# ---------------------------------------------------------------------------
@jax.jit
def cnn_forward(packed, x):
    B, C, H, W = x.shape
    # Boundary layout prep only (4 KiB): NCHW -> rows with lane = w*C + c.
    x_rows = jnp.transpose(x, (0, 2, 3, 1)).reshape(B, H, W * C)

    vmem = pl.BlockSpec(memory_space=pltpu.MemorySpace.VMEM)
    out = pl.pallas_call(
        _cnn_fused_kernel,
        out_shape=jax.ShapeDtypeStruct((B, 10), jnp.float32),
        in_specs=[vmem] * 9,
        out_specs=vmem,
        scratch_shapes=[
            pltpu.VMEM((B, H + 2, W * C), jnp.float32),    # H-padded conv1 input
            pltpu.VMEM((B, H + 2, 128), jnp.float32),      # H-padded conv1 output
        ],
    )(x_rows, packed["A1"], packed["b1"], packed["A2"], packed["b2"],
      packed["W3R"], packed["b3"], packed["W4T"], packed["b4"])
    # .squeeze() as in the PyTorch module (no-op for batch=2, classes=10)
    return jnp.squeeze(out)


# ---------------------------------------------------------------------------
# Plain-JAX reference (torch semantics) used only as a structural self-check
# ---------------------------------------------------------------------------
def reference_forward(params, x):
    hi = jax.lax.Precision.HIGHEST
    y = jax.lax.conv_general_dilated(
        x, params["w1"], (1, 1), ((1, 1), (1, 1)),
        dimension_numbers=("NCHW", "OIHW", "NCHW"), precision=hi)
    y = jax.nn.relu(y + params["b1"][None, :, None, None])
    y = jax.lax.conv_general_dilated(
        y, params["w2"], (2, 2), ((1, 1), (1, 1)),
        dimension_numbers=("NCHW", "OIHW", "NCHW"), precision=hi)
    y = jax.nn.relu(y + params["b2"][None, :, None, None])
    y = y.reshape(y.shape[0], -1)
    y = jax.nn.relu(jnp.dot(y, params["w3"].T, precision=hi) + params["b3"])
    y = jnp.dot(y, params["w4"].T, precision=hi) + params["b4"]
    return jnp.squeeze(y)


if __name__ == "__main__":
    key = jax.random.PRNGKey(0)
    k_param, k_x = jax.random.split(key)
    params = init_params(k_param)
    packed = pack_params(params)
    x = jax.random.normal(k_x, (2, 4, 16, 16), dtype=jnp.float32)  # NCHW

    out = cnn_forward(packed, x)
    jax.block_until_ready(out)
    assert out.shape == (2, 10), out.shape

    # Loose tolerance: only guards against structural / permutation errors
    # (which would be O(0.1)); allows for MXU vs. XLA accumulation differences.
    ref = reference_forward(params, x)
    np.testing.assert_allclose(np.asarray(out), np.asarray(ref),
                               rtol=5e-2, atol=5e-3)

    print("KERNEL_OK")
</pallas_src>

<mosaic_0001>
module attributes {stable_mosaic.version = 11 : i64} {
  func.func @_cnn_fused_kernel(%arg0: memref<2x16x64xf32, #tpu.memory_space<vmem>>, %arg1: memref<3x64x128xf32, #tpu.memory_space<vmem>>, %arg2: memref<1x128xf32, #tpu.memory_space<vmem>>, %arg3: memref<3x128x128xf32, #tpu.memory_space<vmem>>, %arg4: memref<1x128xf32, #tpu.memory_space<vmem>>, %arg5: memref<8x128x32xf32, #tpu.memory_space<vmem>>, %arg6: memref<1x32xf32, #tpu.memory_space<vmem>>, %arg7: memref<32x10xf32, #tpu.memory_space<vmem>>, %arg8: memref<1x10xf32, #tpu.memory_space<vmem>>, %arg9: memref<2x10xf32, #tpu.memory_space<vmem>>, %arg10: memref<2x18x64xf32, #tpu.memory_space<vmem>>, %arg11: memref<2x18x128xf32, #tpu.memory_space<vmem>>) attributes {dimension_semantics = [], scalar_prefetch = 0 : i64, scratch_operands = 2 : i64, tpu.core_type = #tpu.core_type<tc>} {
    %cst = arith.constant 0.000000e+00 : f32
    %0 = vector.broadcast %cst : f32 to vector<2x18x64xf32>
    %c0 = arith.constant 0 : index
    %c0_0 = arith.constant 0 : index
    %c0_1 = arith.constant 0 : index
    %1 = vector.load %arg10[%c0, %c0_0, %c0_1] : memref<2x18x64xf32, #tpu.memory_space<vmem>>, vector<2x18x64xf32>
    tpu.vector_store %arg10[%c0, %c0_0, %c0_1], %0 {strides = array<i32>} : memref<2x18x64xf32, #tpu.memory_space<vmem>>, vector<2x18x64xf32>,
    %cst_2 = arith.constant 0.000000e+00 : f32
    %2 = vector.broadcast %cst_2 : f32 to vector<2x18x128xf32>
    %c0_3 = arith.constant 0 : index
    %c0_4 = arith.constant 0 : index
    %c0_5 = arith.constant 0 : index
    %3 = vector.load %arg11[%c0_3, %c0_4, %c0_5] : memref<2x18x128xf32, #tpu.memory_space<vmem>>, vector<2x18x128xf32>
    tpu.vector_store %arg11[%c0_3, %c0_4, %c0_5], %2 {strides = array<i32>} : memref<2x18x128xf32, #tpu.memory_space<vmem>>, vector<2x18x128xf32>,
    %c0_6 = arith.constant 0 : index
    %c0_7 = arith.constant 0 : index
    %c0_8 = arith.constant 0 : index
    %4 = vector.load %arg0[%c0_6, %c0_7, %c0_8] : memref<2x16x64xf32, #tpu.memory_space<vmem>>, vector<1x16x64xf32>
    %5 = vector.shape_cast %4 : vector<1x16x64xf32> to vector<16x64xf32>
    %c0_9 = arith.constant 0 : index
    %c1 = arith.constant 1 : index
    %c0_10 = arith.constant 0 : index
    %6 = vector.load %arg10[%c0_9, %c1, %c0_10] : memref<2x18x64xf32, #tpu.memory_space<vmem>>, vector<1x16x64xf32>
    %7 = vector.shape_cast %6 : vector<1x16x64xf32> to vector<16x64xf32>
    %8 = vector.shape_cast %5 : vector<16x64xf32> to vector<1x16x64xf32>
    tpu.vector_store %arg10[%c0_9, %c1, %c0_10], %8 {strides = array<i32>} : memref<2x18x64xf32, #tpu.memory_space<vmem>>, vector<1x16x64xf32>,
    %cst_11 = arith.constant 0.000000e+00 : f32
    %9 = vector.broadcast %cst_11 : f32 to vector<16x128xf32>
    %c0_12 = arith.constant 0 : index
    %c0_13 = arith.constant 0 : index
    %c0_14 = arith.constant 0 : index
    %10 = vector.load %arg10[%c0_12, %c0_13, %c0_14] : memref<2x18x64xf32, #tpu.memory_space<vmem>>, vector<1x16x64xf32>
    %11 = vector.shape_cast %10 : vector<1x16x64xf32> to vector<16x64xf32>
    %c0_15 = arith.constant 0 : index
    %c0_16 = arith.constant 0 : index
    %c0_17 = arith.constant 0 : index
    %12 = vector.load %arg1[%c0_15, %c0_16, %c0_17] : memref<3x64x128xf32, #tpu.memory_space<vmem>>, vector<1x64x128xf32>
    %13 = vector.shape_cast %12 : vector<1x64x128xf32> to vector<64x128xf32>
    %cst_18 = arith.constant dense<0.000000e+00> : vector<16x128xf32>
    %14 = tpu.matmul %11, %13, %cst_18 {dimension_numbers = #tpu.dot_dimension_numbers<[1], [0], [0], [1], [0, 0, 1, 1], [], []>} : vector<16x64xf32>, vector<64x128xf32>, vector<16x128xf32> -> vector<16x128xf32>
    %15 = arith.addf %9, %14 : vector<16x128xf32>
    %c0_19 = arith.constant 0 : index
    %c1_20 = arith.constant 1 : index
    %c0_21 = arith.constant 0 : index
    %16 = vector.load %arg10[%c0_19, %c1_20, %c0_21] : memref<2x18x64xf32, #tpu.memory_space<vmem>>, vector<1x16x64xf32>
    %17 = vector.shape_cast %16 : vector<1x16x64xf32> to vector<16x64xf32>
    %c1_22 = arith.constant 1 : index
    %c0_23 = arith.constant 0 : index
    %c0_24 = arith.constant 0 : index
    %18 = vector.load %arg1[%c1_22, %c0_23, %c0_24] : memref<3x64x128xf32, #tpu.memory_space<vmem>>, vector<1x64x128xf32>
    %19 = vector.shape_cast %18 : vector<1x64x128xf32> to vector<64x128xf32>
    %cst_25 = arith.constant dense<0.000000e+00> : vector<16x128xf32>
    %20 = tpu.matmul %17, %19, %cst_25 {dimension_numbers = #tpu.dot_dimension_numbers<[1], [0], [0], [1], [0, 0, 1, 1], [], []>} : vector<16x64xf32>, vector<64x128xf32>, vector<16x128xf32> -> vector<16x128xf32>
    %21 = arith.addf %15, %20 : vector<16x128xf32>
    %c0_26 = arith.constant 0 : index
    %c2 = arith.constant 2 : index
    %c0_27 = arith.constant 0 : index
    %22 = vector.load %arg10[%c0_26, %c2, %c0_27] : memref<2x18x64xf32, #tpu.memory_space<vmem>>, vector<1x16x64xf32>
    %23 = vector.shape_cast %22 : vector<1x16x64xf32> to vector<16x64xf32>
    %c2_28 = arith.constant 2 : index
    %c0_29 = arith.constant 0 : index
    %c0_30 = arith.constant 0 : index
    %24 = vector.load %arg1[%c2_28, %c0_29, %c0_30] : memref<3x64x128xf32, #tpu.memory_space<vmem>>, vector<1x64x128xf32>
    %25 = vector.shape_cast %24 : vector<1x64x128xf32> to vector<64x128xf32>
    %cst_31 = arith.constant dense<0.000000e+00> : vector<16x128xf32>
    %26 = tpu.matmul %23, %25, %cst_31 {dimension_numbers = #tpu.dot_dimension_numbers<[1], [0], [0], [1], [0, 0, 1, 1], [], []>} : vector<16x64xf32>, vector<64x128xf32>, vector<16x128xf32> -> vector<16x128xf32>
    %27 = arith.addf %21, %26 : vector<16x128xf32>
    %c0_32 = arith.constant 0 : index
    %c0_33 = arith.constant 0 : index
    %28 = vector.load %arg2[%c0_32, %c0_33] : memref<1x128xf32, #tpu.memory_space<vmem>>, vector<1x128xf32>
    %29 = vector.broadcast %28 : vector<1x128xf32> to vector<16x128xf32>
    %30 = arith.addf %27, %29 : vector<16x128xf32>
    %cst_34 = arith.constant 0.000000e+00 : f32
    %31 = vector.broadcast %cst_34 : f32 to vector<16x128xf32>
    %32 = arith.maximumf %30, %31 : vector<16x128xf32>
    %c0_35 = arith.constant 0 : index
    %c1_36 = arith.constant 1 : index
    %c0_37 = arith.constant 0 : index
    %33 = vector.load %arg11[%c0_35, %c1_36, %c0_37] : memref<2x18x128xf32, #tpu.memory_space<vmem>>, vector<1x16x128xf32>
    %34 = vector.shape_cast %33 : vector<1x16x128xf32> to vector<16x128xf32>
    %35 = vector.shape_cast %32 : vector<16x128xf32> to vector<1x16x128xf32>
    tpu.vector_store %arg11[%c0_35, %c1_36, %c0_37], %35 {strides = array<i32>} : memref<2x18x128xf32, #tpu.memory_space<vmem>>, vector<1x16x128xf32>,
    %cst_38 = arith.constant 0.000000e+00 : f32
    %36 = vector.broadcast %cst_38 : f32 to vector<16x128xf32>
    %c0_39 = arith.constant 0 : index
    %c0_40 = arith.constant 0 : index
    %c0_41 = arith.constant 0 : index
    %37 = vector.load %arg11[%c0_39, %c0_40, %c0_41] : memref<2x18x128xf32, #tpu.memory_space<vmem>>, vector<1x16x128xf32>
    %38 = vector.shape_cast %37 : vector<1x16x128xf32> to vector<16x128xf32>
    %c0_42 = arith.constant 0 : index
    %c0_43 = arith.constant 0 : index
    %c0_44 = arith.constant 0 : index
    %39 = vector.load %arg3[%c0_42, %c0_43, %c0_44] : memref<3x128x128xf32, #tpu.memory_space<vmem>>, vector<1x128x128xf32>
    %40 = vector.shape_cast %39 : vector<1x128x128xf32> to vector<128x128xf32>
    %cst_45 = arith.constant dense<0.000000e+00> : vector<16x128xf32>
    %41 = tpu.matmul %38, %40, %cst_45 {dimension_numbers = #tpu.dot_dimension_numbers<[1], [0], [0], [1], [0, 0, 1, 1], [], []>} : vector<16x128xf32>, vector<128x128xf32>, vector<16x128xf32> -> vector<16x128xf32>
    %42 = arith.addf %36, %41 : vector<16x128xf32>
    %c0_46 = arith.constant 0 : index
    %c1_47 = arith.constant 1 : index
    %c0_48 = arith.constant 0 : index
    %43 = vector.load %arg11[%c0_46, %c1_47, %c0_48] : memref<2x18x128xf32, #tpu.memory_space<vmem>>, vector<1x16x128xf32>
    %44 = vector.shape_cast %43 : vector<1x16x128xf32> to vector<16x128xf32>
    %c1_49 = arith.constant 1 : index
    %c0_50 = arith.constant 0 : index
    %c0_51 = arith.constant 0 : index
    %45 = vector.load %arg3[%c1_49, %c0_50, %c0_51] : memref<3x128x128xf32, #tpu.memory_space<vmem>>, vector<1x128x128xf32>
    %46 = vector.shape_cast %45 : vector<1x128x128xf32> to vector<128x128xf32>
    %cst_52 = arith.constant dense<0.000000e+00> : vector<16x128xf32>
    %47 = tpu.matmul %44, %46, %cst_52 {dimension_numbers = #tpu.dot_dimension_numbers<[1], [0], [0], [1], [0, 0, 1, 1], [], []>} : vector<16x128xf32>, vector<128x128xf32>, vector<16x128xf32> -> vector<16x128xf32>
    %48 = arith.addf %42, %47 : vector<16x128xf32>
    %c0_53 = arith.constant 0 : index
    %c2_54 = arith.constant 2 : index
    %c0_55 = arith.constant 0 : index
    %49 = vector.load %arg11[%c0_53, %c2_54, %c0_55] : memref<2x18x128xf32, #tpu.memory_space<vmem>>, vector<1x16x128xf32>
    %50 = vector.shape_cast %49 : vector<1x16x128xf32> to vector<16x128xf32>
    %c2_56 = arith.constant 2 : index
    %c0_57 = arith.constant 0 : index
    %c0_58 = arith.constant 0 : index
    %51 = vector.load %arg3[%c2_56, %c0_57, %c0_58] : memref<3x128x128xf32, #tpu.memory_space<vmem>>, vector<1x128x128xf32>
    %52 = vector.shape_cast %51 : vector<1x128x128xf32> to vector<128x128xf32>
    %cst_59 = arith.constant dense<0.000000e+00> : vector<16x128xf32>
    %53 = tpu.matmul %50, %52, %cst_59 {dimension_numbers = #tpu.dot_dimension_numbers<[1], [0], [0], [1], [0, 0, 1, 1], [], []>} : vector<16x128xf32>, vector<128x128xf32>, vector<16x128xf32> -> vector<16x128xf32>
    %54 = arith.addf %48, %53 : vector<16x128xf32>
    %c0_60 = arith.constant 0 : index
    %c0_61 = arith.constant 0 : index
    %55 = vector.load %arg4[%c0_60, %c0_61] : memref<1x128xf32, #tpu.memory_space<vmem>>, vector<1x128xf32>
    %56 = vector.broadcast %55 : vector<1x128xf32> to vector<16x128xf32>
    %57 = arith.addf %54, %56 : vector<16x128xf32>
    %cst_62 = arith.constant 0.000000e+00 : f32
    %58 = vector.broadcast %cst_62 : f32 to vector<16x128xf32>
    %59 = arith.maximumf %57, %58 : vector<16x128xf32>
    %cst_63 = arith.constant 0.000000e+00 : f32
    %60 = vector.broadcast %cst_63 : f32 to vector<1x32xf32>
    %61 = vector.extract_strided_slice %59 {offsets = [0, 0], sizes = [1, 128], strides = [1, 1]} : vector<16x128xf32> to vector<1x128xf32>
    %c0_64 = arith.constant 0 : index
    %c0_65 = arith.constant 0 : index
    %c0_66 = arith.constant 0 : index
    %62 = vector.load %arg5[%c0_64, %c0_65, %c0_66] : memref<8x128x32xf32, #tpu.memory_space<vmem>>, vector<1x128x32xf32>
    %63 = vector.shape_cast %62 : vector<1x128x32xf32> to vector<128x32xf32>
    %cst_67 = arith.constant dense<0.000000e+00> : vector<1x32xf32>
    %64 = tpu.matmul %61, %63, %cst_67 {dimension_numbers = #tpu.dot_dimension_numbers<[1], [0], [0], [1], [0, 0, 1, 1], [], []>} : vector<1x128xf32>, vector<128x32xf32>, vector<1x32xf32> -> vector<1x32xf32>
    %65 = arith.addf %60, %64 : vector<1x32xf32>
    %66 = vector.extract_strided_slice %59 {offsets = [2, 0], sizes = [1, 128], strides = [1, 1]} : vector<16x128xf32> to vector<1x128xf32>
    %c1_68 = arith.constant 1 : index
    %c0_69 = arith.constant 0 : index
    %c0_70 = arith.constant 0 : index
    %67 = vector.load %arg5[%c1_68, %c0_69, %c0_70] : memref<8x128x32xf32, #tpu.memory_space<vmem>>, vector<1x128x32xf32>
    %68 = vector.shape_cast %67 : vector<1x128x32xf32> to vector<128x32xf32>
    %cst_71 = arith.constant dense<0.000000e+00> : vector<1x32xf32>
    %69 = tpu.matmul %66, %68, %cst_71 {dimension_numbers = #tpu.dot_dimension_numbers<[1], [0], [0], [1], [0, 0, 1, 1], [], []>} : vector<1x128xf32>, vector<128x32xf32>, vector<1x32xf32> -> vector<1x32xf32>
    %70 = arith.addf %65, %69 : vector<1x32xf32>
    %71 = vector.extract_strided_slice %59 {offsets = [4, 0], sizes = [1, 128], strides = [1, 1]} : vector<16x128xf32> to vector<1x128xf32>
    %c2_72 = arith.constant 2 : index
    %c0_73 = arith.constant 0 : index
    %c0_74 = arith.constant 0 : index
    %72 = vector.load %arg5[%c2_72, %c0_73, %c0_74] : memref<8x128x32xf32, #tpu.memory_space<vmem>>, vector<1x128x32xf32>
    %73 = vector.shape_cast %72 : vector<1x128x32xf32> to vector<128x32xf32>
    %cst_75 = arith.constant dense<0.000000e+00> : vector<1x32xf32>
    %74 = tpu.matmul %71, %73, %cst_75 {dimension_numbers = #tpu.dot_dimension_numbers<[1], [0], [0], [1], [0, 0, 1, 1], [], []>} : vector<1x128xf32>, vector<128x32xf32>, vector<1x32xf32> -> vector<1x32xf32>
    %75 = arith.addf %70, %74 : vector<1x32xf32>
    %76 = vector.extract_strided_slice %59 {offsets = [6, 0], sizes = [1, 128], strides = [1, 1]} : vector<16x128xf32> to vector<1x128xf32>
    %c3 = arith.constant 3 : index
    %c0_76 = arith.constant 0 : index
    %c0_77 = arith.constant 0 : index
    %77 = vector.load %arg5[%c3, %c0_76, %c0_77] : memref<8x128x32xf32, #tpu.memory_space<vmem>>, vector<1x128x32xf32>
    %78 = vector.shape_cast %77 : vector<1x128x32xf32> to vector<128x32xf32>
    %cst_78 = arith.constant dense<0.000000e+00> : vector<1x32xf32>
    %79 = tpu.matmul %76, %78, %cst_78 {dimension_numbers = #tpu.dot_dimension_numbers<[1], [0], [0], [1], [0, 0, 1, 1], [], []>} : vector<1x128xf32>, vector<128x32xf32>, vector<1x32xf32> -> vector<1x32xf32>
    %80 = arith.addf %75, %79 : vector<1x32xf32>
    %81 = vector.extract_strided_slice %59 {offsets = [8, 0], sizes = [1, 128], strides = [1, 1]} : vector<16x128xf32> to vector<1x128xf32>
    %c4 = arith.constant 4 : index
    %c0_79 = arith.constant 0 : index
    %c0_80 = arith.constant 0 : index
    %82 = vector.load %arg5[%c4, %c0_79, %c0_80] : memref<8x128x32xf32, #tpu.memory_space<vmem>>, vector<1x128x32xf32>
    %83 = vector.shape_cast %82 : vector<1x128x32xf32> to vector<128x32xf32>
    %cst_81 = arith.constant dense<0.000000e+00> : vector<1x32xf32>
    %84 = tpu.matmul %81, %83, %cst_81 {dimension_numbers = #tpu.dot_dimension_numbers<[1], [0], [0], [1], [0, 0, 1, 1], [], []>} : vector<1x128xf32>, vector<128x32xf32>, vector<1x32xf32> -> vector<1x32xf32>
    %85 = arith.addf %80, %84 : vector<1x32xf32>
    %86 = vector.extract_strided_slice %59 {offsets = [10, 0], sizes = [1, 128], strides = [1, 1]} : vector<16x128xf32> to vector<1x128xf32>
    %c5 = arith.constant 5 : index
    %c0_82 = arith.constant 0 : index
    %c0_83 = arith.constant 0 : index
    %87 = vector.load %arg5[%c5, %c0_82, %c0_83] : memref<8x128x32xf32, #tpu.memory_space<vmem>>, vector<1x128x32xf32>
    %88 = vector.shape_cast %87 : vector<1x128x32xf32> to vector<128x32xf32>
    %cst_84 = arith.constant dense<0.000000e+00> : vector<1x32xf32>
    %89 = tpu.matmul %86, %88, %cst_84 {dimension_numbers = #tpu.dot_dimension_numbers<[1], [0], [0], [1], [0, 0, 1, 1], [], []>} : vector<1x128xf32>, vector<128x32xf32>, vector<1x32xf32> -> vector<1x32xf32>
    %90 = arith.addf %85, %89 : vector<1x32xf32>
    %91 = vector.extract_strided_slice %59 {offsets = [12, 0], sizes = [1, 128], strides = [1, 1]} : vector<16x128xf32> to vector<1x128xf32>
    %c6 = arith.constant 6 : index
    %c0_85 = arith.constant 0 : index
    %c0_86 = arith.constant 0 : index
    %92 = vector.load %arg5[%c6, %c0_85, %c0_86] : memref<8x128x32xf32, #tpu.memory_space<vmem>>, vector<1x128x32xf32>
    %93 = vector.shape_cast %92 : vector<1x128x32xf32> to vector<128x32xf32>
    %cst_87 = arith.constant dense<0.000000e+00> : vector<1x32xf32>
    %94 = tpu.matmul %91, %93, %cst_87 {dimension_numbers = #tpu.dot_dimension_numbers<[1], [0], [0], [1], [0, 0, 1, 1], [], []>} : vector<1x128xf32>, vector<128x32xf32>, vector<1x32xf32> -> vector<1x32xf32>
    %95 = arith.addf %90, %94 : vector<1x32xf32>
    %96 = vector.extract_strided_slice %59 {offsets = [14, 0], sizes = [1, 128], strides = [1, 1]} : vector<16x128xf32> to vector<1x128xf32>
    %c7 = arith.constant 7 : index
    %c0_88 = arith.constant 0 : index
    %c0_89 = arith.constant 0 : index
    %97 = vector.load %arg5[%c7, %c0_88, %c0_89] : memref<8x128x32xf32, #tpu.memory_space<vmem>>, vector<1x128x32xf32>
    %98 = vector.shape_cast %97 : vector<1x128x32xf32> to vector<128x32xf32>
    %cst_90 = arith.constant dense<0.000000e+00> : vector<1x32xf32>
    %99 = tpu.matmul %96, %98, %cst_90 {dimension_numbers = #tpu.dot_dimension_numbers<[1], [0], [0], [1], [0, 0, 1, 1], [], []>} : vector<1x128xf32>, vector<128x32xf32>, vector<1x32xf32> -> vector<1x32xf32>
    %100 = arith.addf %95, %99 : vector<1x32xf32>
    %c0_91 = arith.constant 0 : index
    %c0_92 = arith.constant 0 : index
    %101 = vector.load %arg6[%c0_91, %c0_92] : memref<1x32xf32, #tpu.memory_space<vmem>>, vector<1x32xf32>
    %102 = arith.addf %100, %101 : vector<1x32xf32>
    %cst_93 = arith.constant 0.000000e+00 : f32
    %103 = vector.broadcast %cst_93 : f32 to vector<1x32xf32>
    %104 = arith.maximumf %102, %103 : vector<1x32xf32>
    %c0_94 = arith.constant 0 : index
    %c0_95 = arith.constant 0 : index
    %105 = vector.load %arg7[%c0_94, %c0_95] : memref<32x10xf32, #tpu.memory_space<vmem>>, vector<32x10xf32>
    %cst_96 = arith.constant dense<0.000000e+00> : vector<1x10xf32>
    %106 = tpu.matmul %104, %105, %cst_96 {dimension_numbers = #tpu.dot_dimension_numbers<[1], [0], [0], [1], [0, 0, 1, 1], [], []>} : vector<1x32xf32>, vector<32x10xf32>, vector<1x10xf32> -> vector<1x10xf32>
    %c0_97 = arith.constant 0 : index
    %c0_98 = arith.constant 0 : index
    %107 = vector.load %arg8[%c0_97, %c0_98] : memref<1x10xf32, #tpu.memory_space<vmem>>, vector<1x10xf32>
    %108 = arith.addf %106, %107 : vector<1x10xf32>
    %c0_99 = arith.constant 0 : index
    %c0_100 = arith.constant 0 : index
    %109 = vector.load %arg9[%c0_99, %c0_100] : memref<2x10xf32, #tpu.memory_space<vmem>>, vector<1x10xf32>
    tpu.vector_store %arg9[%c0_99, %c0_100], %108 {strides = array<i32>} : memref<2x10xf32, #tpu.memory_space<vmem>>, vector<1x10xf32>,
    %c1_101 = arith.constant 1 : index
    %c0_102 = arith.constant 0 : index
    %c0_103 = arith.constant 0 : index
    %110 = vector.load %arg0[%c1_101, %c0_102, %c0_103] : memref<2x16x64xf32, #tpu.memory_space<vmem>>, vector<1x16x64xf32>
    %111 = vector.shape_cast %110 : vector<1x16x64xf32> to vector<16x64xf32>
    %c1_104 = arith.constant 1 : index
    %c1_105 = arith.constant 1 : index
    %c0_106 = arith.constant 0 : index
    %112 = vector.load %arg10[%c1_104, %c1_105, %c0_106] : memref<2x18x64xf32, #tpu.memory_space<vmem>>, vector<1x16x64xf32>
    %113 = vector.shape_cast %112 : vector<1x16x64xf32> to vector<16x64xf32>
    %114 = vector.shape_cast %111 : vector<16x64xf32> to vector<1x16x64xf32>
    tpu.vector_store %arg10[%c1_104, %c1_105, %c0_106], %114 {strides = array<i32>} : memref<2x18x64xf32, #tpu.memory_space<vmem>>, vector<1x16x64xf32>,
    %cst_107 = arith.constant 0.000000e+00 : f32
    %115 = vector.broadcast %cst_107 : f32 to vector<16x128xf32>
    %c1_108 = arith.constant 1 : index
    %c0_109 = arith.constant 0 : index
    %c0_110 = arith.constant 0 : index
    %116 = vector.load %arg10[%c1_108, %c0_109, %c0_110] : memref<2x18x64xf32, #tpu.memory_space<vmem>>, vector<1x16x64xf32>
    %117 = vector.shape_cast %116 : vector<1x16x64xf32> to vector<16x64xf32>
    %c0_111 = arith.constant 0 : index
    %c0_112 = arith.constant 0 : index
    %c0_113 = arith.constant 0 : index
    %118 = vector.load %arg1[%c0_111, %c0_112, %c0_113] : memref<3x64x128xf32, #tpu.memory_space<vmem>>, vector<1x64x128xf32>
    %119 = vector.shape_cast %118 : vector<1x64x128xf32> to vector<64x128xf32>
    %cst_114 = arith.constant dense<0.000000e+00> : vector<16x128xf32>
    %120 = tpu.matmul %117, %119, %cst_114 {dimension_numbers = #tpu.dot_dimension_numbers<[1], [0], [0], [1], [0, 0, 1, 1], [], []>} : vector<16x64xf32>, vector<64x128xf32>, vector<16x128xf32> -> vector<16x128xf32>
    %121 = arith.addf %115, %120 : vector<16x128xf32>
    %c1_115 = arith.constant 1 : index
    %c1_116 = arith.constant 1 : index
    %c0_117 = arith.constant 0 : index
    %122 = vector.load %arg10[%c1_115, %c1_116, %c0_117] : memref<2x18x64xf32, #tpu.memory_space<vmem>>, vector<1x16x64xf32>
    %123 = vector.shape_cast %122 : vector<1x16x64xf32> to vector<16x64xf32>
    %c1_118 = arith.constant 1 : index
    %c0_119 = arith.constant 0 : index
    %c0_120 = arith.constant 0 : index
    %124 = vector.load %arg1[%c1_118, %c0_119, %c0_120] : memref<3x64x128xf32, #tpu.memory_space<vmem>>, vector<1x64x128xf32>
    %125 = vector.shape_cast %124 : vector<1x64x128xf32> to vector<64x128xf32>
    %cst_121 = arith.constant dense<0.000000e+00> : vector<16x128xf32>
    %126 = tpu.matmul %123, %125, %cst_121 {dimension_numbers = #tpu.dot_dimension_numbers<[1], [0], [0], [1], [0, 0, 1, 1], [], []>} : vector<16x64xf32>, vector<64x128xf32>, vector<16x128xf32> -> vector<16x128xf32>
    %127 = arith.addf %121, %126 : vector<16x128xf32>
    %c1_122 = arith.constant 1 : index
    %c2_123 = arith.constant 2 : index
    %c0_124 = arith.constant 0 : index
    %128 = vector.load %arg10[%c1_122, %c2_123, %c0_124] : memref<2x18x64xf32, #tpu.memory_space<vmem>>, vector<1x16x64xf32>
    %129 = vector.shape_cast %128 : vector<1x16x64xf32> to vector<16x64xf32>
    %c2_125 = arith.constant 2 : index
    %c0_126 = arith.constant 0 : index
    %c0_127 = arith.constant 0 : index
    %130 = vector.load %arg1[%c2_125, %c0_126, %c0_127] : memref<3x64x128xf32, #tpu.memory_space<vmem>>, vector<1x64x128xf32>
    %131 = vector.shape_cast %130 : vector<1x64x128xf32> to vector<64x128xf32>
    %cst_128 = arith.constant dense<0.000000e+00> : vector<16x128xf32>
    %132 = tpu.matmul %129, %131, %cst_128 {dimension_numbers = #tpu.dot_dimension_numbers<[1], [0], [0], [1], [0, 0, 1, 1], [], []>} : vector<16x64xf32>, vector<64x128xf32>, vector<16x128xf32> -> vector<16x128xf32>
    %133 = arith.addf %127, %132 : vector<16x128xf32>
    %c0_129 = arith.constant 0 : index
    %c0_130 = arith.constant 0 : index
    %134 = vector.load %arg2[%c0_129, %c0_130] : memref<1x128xf32, #tpu.memory_space<vmem>>, vector<1x128xf32>
    %135 = vector.broadcast %134 : vector<1x128xf32> to vector<16x128xf32>
    %136 = arith.addf %133, %135 : vector<16x128xf32>
    %cst_131 = arith.constant 0.000000e+00 : f32
    %137 = vector.broadcast %cst_131 : f32 to vector<16x128xf32>
    %138 = arith.maximumf %136, %137 : vector<16x128xf32>
    %c1_132 = arith.constant 1 : index
    %c1_133 = arith.constant 1 : index
    %c0_134 = arith.constant 0 : index
    %139 = vector.load %arg11[%c1_132, %c1_133, %c0_134] : memref<2x18x128xf32, #tpu.memory_space<vmem>>, vector<1x16x128xf32>
    %140 = vector.shape_cast %139 : vector<1x16x128xf32> to vector<16x128xf32>
    %141 = vector.shape_cast %138 : vector<16x128xf32> to vector<1x16x128xf32>
    tpu.vector_store %arg11[%c1_132, %c1_133, %c0_134], %141 {strides = array<i32>} : memref<2x18x128xf32, #tpu.memory_space<vmem>>, vector<1x16x128xf32>,
    %cst_135 = arith.constant 0.000000e+00 : f32
    %142 = vector.broadcast %cst_135 : f32 to vector<16x128xf32>
    %c1_136 = arith.constant 1 : index
    %c0_137 = arith.constant 0 : index
    %c0_138 = arith.constant 0 : index
    %143 = vector.load %arg11[%c1_136, %c0_137, %c0_138] : memref<2x18x128xf32, #tpu.memory_space<vmem>>, vector<1x16x128xf32>
    %144 = vector.shape_cast %143 : vector<1x16x128xf32> to vector<16x128xf32>
    %c0_139 = arith.constant 0 : index
    %c0_140 = arith.constant 0 : index
    %c0_141 = arith.constant 0 : index
    %145 = vector.load %arg3[%c0_139, %c0_140, %c0_141] : memref<3x128x128xf32, #tpu.memory_space<vmem>>, vector<1x128x128xf32>
    %146 = vector.shape_cast %145 : vector<1x128x128xf32> to vector<128x128xf32>
    %cst_142 = arith.constant dense<0.000000e+00> : vector<16x128xf32>
    %147 = tpu.matmul %144, %146, %cst_142 {dimension_numbers = #tpu.dot_dimension_numbers<[1], [0], [0], [1], [0, 0, 1, 1], [], []>} : vector<16x128xf32>, vector<128x128xf32>, vector<16x128xf32> -> vector<16x128xf32>
    %148 = arith.addf %142, %147 : vector<16x128xf32>
    %c1_143 = arith.constant 1 : index
    %c1_144 = arith.constant 1 : index
    %c0_145 = arith.constant 0 : index
    %149 = vector.load %arg11[%c1_143, %c1_144, %c0_145] : memref<2x18x128xf32, #tpu.memory_space<vmem>>, vector<1x16x128xf32>
    %150 = vector.shape_cast %149 : vector<1x16x128xf32> to vector<16x128xf32>
    %c1_146 = arith.constant 1 : index
    %c0_147 = arith.constant 0 : index
    %c0_148 = arith.constant 0 : index
    %151 = vector.load %arg3[%c1_146, %c0_147, %c0_148] : memref<3x128x128xf32, #tpu.memory_space<vmem>>, vector<1x128x128xf32>
    %152 = vector.shape_cast %151 : vector<1x128x128xf32> to vector<128x128xf32>
    %cst_149 = arith.constant dense<0.000000e+00> : vector<16x128xf32>
    %153 = tpu.matmul %150, %152, %cst_149 {dimension_numbers = #tpu.dot_dimension_numbers<[1], [0], [0], [1], [0, 0, 1, 1], [], []>} : vector<16x128xf32>, vector<128x128xf32>, vector<16x128xf32> -> vector<16x128xf32>
    %154 = arith.addf %148, %153 : vector<16x128xf32>
    %c1_150 = arith.constant 1 : index
    %c2_151 = arith.constant 2 : index
    %c0_152 = arith.constant 0 : index
    %155 = vector.load %arg11[%c1_150, %c2_151, %c0_152] : memref<2x18x128xf32, #tpu.memory_space<vmem>>, vector<1x16x128xf32>
    %156 = vector.shape_cast %155 : vector<1x16x128xf32> to vector<16x128xf32>
    %c2_153 = arith.constant 2 : index
    %c0_154 = arith.constant 0 : index
    %c0_155 = arith.constant 0 : index
    %157 = vector.load %arg3[%c2_153, %c0_154, %c0_155] : memref<3x128x128xf32, #tpu.memory_space<vmem>>, vector<1x128x128xf32>
    %158 = vector.shape_cast %157 : vector<1x128x128xf32> to vector<128x128xf32>
    %cst_156 = arith.constant dense<0.000000e+00> : vector<16x128xf32>
    %159 = tpu.matmul %156, %158, %cst_156 {dimension_numbers = #tpu.dot_dimension_numbers<[1], [0], [0], [1], [0, 0, 1, 1], [], []>} : vector<16x128xf32>, vector<128x128xf32>, vector<16x128xf32> -> vector<16x128xf32>
    %160 = arith.addf %154, %159 : vector<16x128xf32>
    %c0_157 = arith.constant 0 : index
    %c0_158 = arith.constant 0 : index
    %161 = vector.load %arg4[%c0_157, %c0_158] : memref<1x128xf32, #tpu.memory_space<vmem>>, vector<1x128xf32>
    %162 = vector.broadcast %161 : vector<1x128xf32> to vector<16x128xf32>
    %163 = arith.addf %160, %162 : vector<16x128xf32>
    %cst_159 = arith.constant 0.000000e+00 : f32
    %164 = vector.broadcast %cst_159 : f32 to vector<16x128xf32>
    %165 = arith.maximumf %163, %164 : vector<16x128xf32>
    %cst_160 = arith.constant 0.000000e+00 : f32
    %166 = vector.broadcast %cst_160 : f32 to vector<1x32xf32>
    %167 = vector.extract_strided_slice %165 {offsets = [0, 0], sizes = [1, 128], strides = [1, 1]} : vector<16x128xf32> to vector<1x128xf32>
    %c0_161 = arith.constant 0 : index
    %c0_162 = arith.constant 0 : index
    %c0_163 = arith.constant 0 : index
    %168 = vector.load %arg5[%c0_161, %c0_162, %c0_163] : memref<8x128x32xf32, #tpu.memory_space<vmem>>, vector<1x128x32xf32>
    %169 = vector.shape_cast %168 : vector<1x128x32xf32> to vector<128x32xf32>
    %cst_164 = arith.constant dense<0.000000e+00> : vector<1x32xf32>
    %170 = tpu.matmul %167, %169, %cst_164 {dimension_numbers = #tpu.dot_dimension_numbers<[1], [0], [0], [1], [0, 0, 1, 1], [], []>} : vector<1x128xf32>, vector<128x32xf32>, vector<1x32xf32> -> vector<1x32xf32>
    %171 = arith.addf %166, %170 : vector<1x32xf32>
    %172 = vector.extract_strided_slice %165 {offsets = [2, 0], sizes = [1, 128], strides = [1, 1]} : vector<16x128xf32> to vector<1x128xf32>
    %c1_165 = arith.constant 1 : index
    %c0_166 = arith.constant 0 : index
    %c0_167 = arith.constant 0 : index
    %173 = vector.load %arg5[%c1_165, %c0_166, %c0_167] : memref<8x128x32xf32, #tpu.memory_space<vmem>>, vector<1x128x32xf32>
    %174 = vector.shape_cast %173 : vector<1x128x32xf32> to vector<128x32xf32>
    %cst_168 = arith.constant dense<0.000000e+00> : vector<1x32xf32>
    %175 = tpu.matmul %172, %174, %cst_168 {dimension_numbers = #tpu.dot_dimension_numbers<[1], [0], [0], [1], [0, 0, 1, 1], [], []>} : vector<1x128xf32>, vector<128x32xf32>, vector<1x32xf32> -> vector<1x32xf32>
    %176 = arith.addf %171, %175 : vector<1x32xf32>
    %177 = vector.extract_strided_slice %165 {offsets = [4, 0], sizes = [1, 128], strides = [1, 1]} : vector<16x128xf32> to vector<1x128xf32>
    %c2_169 = arith.constant 2 : index
    %c0_170 = arith.constant 0 : index
    %c0_171 = arith.constant 0 : index
    %178 = vector.load %arg5[%c2_169, %c0_170, %c0_171] : memref<8x128x32xf32, #tpu.memory_space<vmem>>, vector<1x128x32xf32>
    %179 = vector.shape_cast %178 : vector<1x128x32xf32> to vector<128x32xf32>
    %cst_172 = arith.constant dense<0.000000e+00> : vector<1x32xf32>
    %180 = tpu.matmul %177, %179, %cst_172 {dimension_numbers = #tpu.dot_dimension_numbers<[1], [0], [0], [1], [0, 0, 1, 1], [], []>} : vector<1x128xf32>, vector<128x32xf32>, vector<1x32xf32> -> vector<1x32xf32>
    %181 = arith.addf %176, %180 : vector<1x32xf32>
    %182 = vector.extract_strided_slice %165 {offsets = [6, 0], sizes = [1, 128], strides = [1, 1]} : vector<16x128xf32> to vector<1x128xf32>
    %c3_173 = arith.constant 3 : index
    %c0_174 = arith.constant 0 : index
    %c0_175 = arith.constant 0 : index
    %183 = vector.load %arg5[%c3_173, %c0_174, %c0_175] : memref<8x128x32xf32, #tpu.memory_space<vmem>>, vector<1x128x32xf32>
    %184 = vector.shape_cast %183 : vector<1x128x32xf32> to vector<128x32xf32>
    %cst_176 = arith.constant dense<0.000000e+00> : vector<1x32xf32>
    %185 = tpu.matmul %182, %184, %cst_176 {dimension_numbers = #tpu.dot_dimension_numbers<[1], [0], [0], [1], [0, 0, 1, 1], [], []>} : vector<1x128xf32>, vector<128x32xf32>, vector<1x32xf32> -> vector<1x32xf32>
    %186 = arith.addf %181, %185 : vector<1x32xf32>
    %187 = vector.extract_strided_slice %165 {offsets = [8, 0], sizes = [1, 128], strides = [1, 1]} : vector<16x128xf32> to vector<1x128xf32>
    %c4_177 = arith.constant 4 : index
    %c0_178 = arith.constant 0 : index
    %c0_179 = arith.constant 0 : index
    %188 = vector.load %arg5[%c4_177, %c0_178, %c0_179] : memref<8x128x32xf32, #tpu.memory_space<vmem>>, vector<1x128x32xf32>
    %189 = vector.shape_cast %188 : vector<1x128x32xf32> to vector<128x32xf32>
    %cst_180 = arith.constant dense<0.000000e+00> : vector<1x32xf32>
    %190 = tpu.matmul %187, %189, %cst_180 {dimension_numbers = #tpu.dot_dimension_numbers<[1], [0], [0], [1], [0, 0, 1, 1], [], []>} : vector<1x128xf32>, vector<128x32xf32>, vector<1x32xf32> -> vector<1x32xf32>
    %191 = arith.addf %186, %190 : vector<1x32xf32>
    %192 = vector.extract_strided_slice %165 {offsets = [10, 0], sizes = [1, 128], strides = [1, 1]} : vector<16x128xf32> to vector<1x128xf32>
    %c5_181 = arith.constant 5 : index
    %c0_182 = arith.constant 0 : index
    %c0_183 = arith.constant 0 : index
    %193 = vector.load %arg5[%c5_181, %c0_182, %c0_183] : memref<8x128x32xf32, #tpu.memory_space<vmem>>, vector<1x128x32xf32>
    %194 = vector.shape_cast %193 : vector<1x128x32xf32> to vector<128x32xf32>
    %cst_184 = arith.constant dense<0.000000e+00> : vector<1x32xf32>
    %195 = tpu.matmul %192, %194, %cst_184 {dimension_numbers = #tpu.dot_dimension_numbers<[1], [0], [0], [1], [0, 0, 1, 1], [], []>} : vector<1x128xf32>, vector<128x32xf32>, vector<1x32xf32> -> vector<1x32xf32>
    %196 = arith.addf %191, %195 : vector<1x32xf32>
    %197 = vector.extract_strided_slice %165 {offsets = [12, 0], sizes = [1, 128], strides = [1, 1]} : vector<16x128xf32> to vector<1x128xf32>
    %c6_185 = arith.constant 6 : index
    %c0_186 = arith.constant 0 : index
    %c0_187 = arith.constant 0 : index
    %198 = vector.load %arg5[%c6_185, %c0_186, %c0_187] : memref<8x128x32xf32, #tpu.memory_space<vmem>>, vector<1x128x32xf32>
    %199 = vector.shape_cast %198 : vector<1x128x32xf32> to vector<128x32xf32>
    %cst_188 = arith.constant dense<0.000000e+00> : vector<1x32xf32>
    %200 = tpu.matmul %197, %199, %cst_188 {dimension_numbers = #tpu.dot_dimension_numbers<[1], [0], [0], [1], [0, 0, 1, 1], [], []>} : vector<1x128xf32>, vector<128x32xf32>, vector<1x32xf32> -> vector<1x32xf32>
    %201 = arith.addf %196, %200 : vector<1x32xf32>
    %202 = vector.extract_strided_slice %165 {offsets = [14, 0], sizes = [1, 128], strides = [1, 1]} : vector<16x128xf32> to vector<1x128xf32>
    %c7_189 = arith.constant 7 : index
    %c0_190 = arith.constant 0 : index
    %c0_191 = arith.constant 0 : index
    %203 = vector.load %arg5[%c7_189, %c0_190, %c0_191] : memref<8x128x32xf32, #tpu.memory_space<vmem>>, vector<1x128x32xf32>
    %204 = vector.shape_cast %203 : vector<1x128x32xf32> to vector<128x32xf32>
    %cst_192 = arith.constant dense<0.000000e+00> : vector<1x32xf32>
    %205 = tpu.matmul %202, %204, %cst_192 {dimension_numbers = #tpu.dot_dimension_numbers<[1], [0], [0], [1], [0, 0, 1, 1], [], []>} : vector<1x128xf32>, vector<128x32xf32>, vector<1x32xf32> -> vector<1x32xf32>
    %206 = arith.addf %201, %205 : vector<1x32xf32>
    %c0_193 = arith.constant 0 : index
    %c0_194 = arith.constant 0 : index
    %207 = vector.load %arg6[%c0_193, %c0_194] : memref<1x32xf32, #tpu.memory_space<vmem>>, vector<1x32xf32>
    %208 = arith.addf %206, %207 : vector<1x32xf32>
    %cst_195 = arith.constant 0.000000e+00 : f32
    %209 = vector.broadcast %cst_195 : f32 to vector<1x32xf32>
    %210 = arith.maximumf %208, %209 : vector<1x32xf32>
    %c0_196 = arith.constant 0 : index
    %c0_197 = arith.constant 0 : index
    %211 = vector.load %arg7[%c0_196, %c0_197] : memref<32x10xf32, #tpu.memory_space<vmem>>, vector<32x10xf32>
    %cst_198 = arith.constant dense<0.000000e+00> : vector<1x10xf32>
    %212 = tpu.matmul %210, %211, %cst_198 {dimension_numbers = #tpu.dot_dimension_numbers<[1], [0], [0], [1], [0, 0, 1, 1], [], []>} : vector<1x32xf32>, vector<32x10xf32>, vector<1x10xf32> -> vector<1x10xf32>
    %c0_199 = arith.constant 0 : index
    %c0_200 = arith.constant 0 : index
    %213 = vector.load %arg8[%c0_199, %c0_200] : memref<1x10xf32, #tpu.memory_space<vmem>>, vector<1x10xf32>
    %214 = arith.addf %212, %213 : vector<1x10xf32>
    %c1_201 = arith.constant 1 : index
    %c0_202 = arith.constant 0 : index
    %215 = vector.load %arg9[%c1_201, %c0_202] : memref<2x10xf32, #tpu.memory_space<vmem>>, vector<1x10xf32>
    tpu.vector_store %arg9[%c1_201, %c0_202], %214 {strides = array<i32>} : memref<2x10xf32, #tpu.memory_space<vmem>>, vector<1x10xf32>,
    return
  }
}

</mosaic_0001>

<llo_original>
// kernel: cnn_forward.1
$region0: #{cnn_forward.1}
  #allocation0 [shape = 'u32[]', space=smem, size = 0x4, offset = 0x4, fixed_abs, tag = 'smem constant byte address 0x4 - core index']
  #allocation1 [shape = 'u32[144,128]{1,0:T(1,128)}', space=vmem, size = 0x12000, scoped, tag = 'internal scratch']
  #allocation2 [shape = 'f32[2,18,64]{2,1,0:T(8,128)}', space=vmem, size = 0x6000, scoped, tag = 'scratch operand']
  #allocation3 [shape = 'f32[2,18,128]{2,1,0:T(8,128)}', space=vmem, size = 0x6000, scoped, tag = 'scratch operand']
  %s0 = inlined_call_operand.vmem [shape: f32[2,16,64], index: 0, kind: input, shape index: {}]
  %s1 = inlined_call_operand.vmem [shape: f32[3,64,128], index: 1, kind: input, shape index: {}]
  %s2 = inlined_call_operand.vmem [shape: f32[1,128], index: 2, kind: input, shape index: {}]
  %s3 = inlined_call_operand.vmem [shape: f32[3,128,128], index: 3, kind: input, shape index: {}]
  %s4 = inlined_call_operand.vmem [shape: f32[1,128], index: 4, kind: input, shape index: {}]
  %s5 = inlined_call_operand.vmem [shape: f32[8,128,32], index: 5, kind: input, shape index: {}]
  %s6 = inlined_call_operand.vmem [shape: f32[1,32], index: 6, kind: input, shape index: {}]
  %s7 = inlined_call_operand.vmem [shape: f32[32,10], index: 7, kind: input, shape index: {}]
  %s8 = inlined_call_operand.vmem [shape: f32[1,10], index: 8, kind: input, shape index: {}]
  %s9 = inlined_call_operand.hbm [shape: f32[2,10], index: 9, kind: output, shape index: {}]
  %s10 = sld [smem:[#allocation0]]
  $region46: #{cnn_forward.1} parent=0
    _
  %s12 = ssub.s32 1, %s10
  %s13 = scalar_select 0, %s12, %s10
  $region1: #{cnn_forward.1} parent=0
    #allocation4 [shape = 'u8[1024]{0}', space=vmem, size = 0x400, scoped, tag = 'output window, operand 0, single buffered']
    #allocation5 [shape = 's32[1]{0}', space=sflag, size = 0x4, scoped, tag = 'scoped memory for cnn_forward.1']
    %14 = vsyncpa [#allocation5], 0
    // Predicated region
    $region2: #{cnn_forward.1} parent=1 // pred_check
      _
    $region3: #{cnn_forward.1} parent=1 // pred_check_branch
      %16 = sbr.rel (0) target = $region5
    $region4: #{cnn_forward.1} parent=1 // pred_region
      _
    $region5: #{cnn_forward.1} parent=1 // pred_fallthru
      _
    // Predicated region
    $region6: #{cnn_forward.1} parent=1 // pred_check
      _
    $region7: #{cnn_forward.1} parent=1 // pred_check_branch
      %18 = sbr.rel (0) target = $region9
    $region8: #{cnn_forward.1} parent=1 // pred_region
      _
    $region9: #{cnn_forward.1} parent=1 // pred_fallthru
      _
    // Predicated region
    $region10: #{cnn_forward.1} parent=1 // pred_check
      _
    $region11: #{cnn_forward.1} parent=1 // pred_check_branch
      %20 = sbr.rel (0) target = $region13
    $region12: #{cnn_forward.1} parent=1 // pred_region
      _
    $region13: #{cnn_forward.1} parent=1 // pred_fallthru
      _
    // Predicated region
    $region14: #{cnn_forward.1} parent=1 // pred_check
      _
    $region15: #{cnn_forward.1} parent=1 // pred_check_branch
      %22 = sbr.rel (0) target = $region17
    $region16: #{cnn_forward.1} parent=1 // pred_region
      _
    $region17: #{cnn_forward.1} parent=1 // pred_fallthru
      _
    // Predicated region
    $region18: #{cnn_forward.1} parent=1 // pred_check
      _
    $region19: #{cnn_forward.1} parent=1 // pred_check_branch
      %24 = sbr.rel (0) target = $region21
    $region20: #{cnn_forward.1} parent=1 // pred_region
      _
    $region21: #{cnn_forward.1} parent=1 // pred_fallthru
      _
    // Predicated region
    $region22: #{cnn_forward.1} parent=1 // pred_check
      _
    $region23: #{cnn_forward.1} parent=1 // pred_check_branch
      %26 = sbr.rel (0) target = $region25
    $region24: #{cnn_forward.1} parent=1 // pred_region
      _
    $region25: #{cnn_forward.1} parent=1 // pred_fallthru
      _
    // Predicated region
    $region26: #{cnn_forward.1} parent=1 // pred_check
      _
    $region27: #{cnn_forward.1} parent=1 // pred_check_branch
      %28 = sbr.rel (0) target = $region29
    $region28: #{cnn_forward.1} parent=1 // pred_region
      _
    $region29: #{cnn_forward.1} parent=1 // pred_fallthru
      _
    // Predicated region
    $region30: #{cnn_forward.1} parent=1 // pred_check
      _
    $region31: #{cnn_forward.1} parent=1 // pred_check_branch
      %30 = sbr.rel (0) target = $region33
    $region32: #{cnn_forward.1} parent=1 // pred_region
      _
    $region33: #{cnn_forward.1} parent=1 // pred_fallthru
      _
    // Predicated region
    $region34: #{cnn_forward.1} parent=1 // pred_check
      _
    $region35: #{cnn_forward.1} parent=1 // pred_check_branch
      %32 = sbr.rel (0) target = $region37
    $region36: #{cnn_forward.1} parent=1 // pred_region
      _
    $region37: #{cnn_forward.1} parent=1 // pred_fallthru
      _
    %vm33 = vcmask 523264
    %34 = vst.msk [vmem:[#allocation2] sm:$0xff] %vm33, 0.0
    %35 = vst.msk [vmem:[#allocation2 + $0x8] sm:$0xff] %vm33, 0.0
    %vm36 = vcmask 517120
    %37 = vst.msk [vmem:[#allocation2 + $0x10] sm:$0x3] %vm36, 0.0
    %38 = vst.msk [vmem:[#allocation2 + $0x18] sm:$0xff] %vm33, 0.0
    %39 = vst.msk [vmem:[#allocation2 + $0x20] sm:$0xff] %vm33, 0.0
    %40 = vst.msk [vmem:[#allocation2 + $0x28] sm:$0x3] %vm36, 0.0
    %41 = vst [vmem:[#allocation3] sm:$0xff] 0.0
    %42 = vst [vmem:[#allocation3 + $0x8] sm:$0xff] 0.0
    %43 = vst [vmem:[#allocation3 + $0x10] sm:$0x3] 0.0
    %44 = vst [vmem:[#allocation3 + $0x18] sm:$0xff] 0.0
    %45 = vst [vmem:[#allocation3 + $0x20] sm:$0xff] 0.0
    %46 = vst [vmem:[#allocation3 + $0x28] sm:$0x3] 0.0
    %v47 = vld [vmem:[%s0] sm:$0xff]
    %v48 = vld [vmem:[%s0 + $0x8] sm:$0xff]
    %49 = vst.msk [vmem:[#allocation2 + $0x1] sm:$0xff] %vm33, %v47
    %50 = vst.msk [vmem:[#allocation2 + $0x9] sm:$0xff] %vm33, %v48
    %v51 = vld [vmem:[#allocation2] sm:$0xff]
    %v52 = vld [vmem:[#allocation2 + $0x8] sm:$0xff]
    %v53 = vld [vmem:[%s1] sm:$0xff]
    %v54 = vld [vmem:[%s1 + $0x8] sm:$0xff]
    %v55 = vld [vmem:[%s1 + $0x10] sm:$0xff]
    %v56 = vld [vmem:[%s1 + $0x18] sm:$0xff]
    %v57 = vld [vmem:[%s1 + $0x20] sm:$0xff]
    %v58 = vld [vmem:[%s1 + $0x28] sm:$0xff]
    %v59 = vld [vmem:[%s1 + $0x30] sm:$0xff]
    %v60 = vld [vmem:[%s1 + $0x38] sm:$0xff]
    %v61 = vld [vmem:[#allocation2 + $0x1] sm:$0xff]
    %v62 = vld [vmem:[#allocation2 + $0x9] sm:$0xff]
    %s63 = scalar_lea.vmem %s1, 64
    %v64 = vld [vmem:[%s63] sm:$0xff]
    %v65 = vld [vmem:[%s63 + $0x8] sm:$0xff]
    %v66 = vld [vmem:[%s63 + $0x10] sm:$0xff]
    %v67 = vld [vmem:[%s63 + $0x18] sm:$0xff]
    %v68 = vld [vmem:[%s63 + $0x20] sm:$0xff]
    %v69 = vld [vmem:[%s63 + $0x28] sm:$0xff]
    %v70 = vld [vmem:[%s63 + $0x30] sm:$0xff]
    %v71 = vld [vmem:[%s63 + $0x38] sm:$0xff]
    %v73 = vsel %vm33, %v61, 0
    %v76 = vsel %vm33, %v62, 0
    %78 = vmatprep.subr.mxu0 0.0
    %79 = vmatpush1.msra.mxu0 %v64
    %80 = vmatprep.subr.mxu0 0.0
    %81 = vmatpush1.msra.mxu0 %v65
    %82 = vmatprep.subr.mxu0 0.0
    %83 = vmatpush1.msra.mxu0 %v66
    %84 = vmatprep.subr.mxu0 0.0
    %85 = vmatpush1.msra.mxu0 %v67
    %86 = vmatprep.subr.mxu0 0.0
    %87 = vmatpush1.msra.mxu0 %v68
    %88 = vmatprep.subr.mxu0 0.0
    %89 = vmatpush1.msra.mxu0 %v69
    %90 = vmatprep.subr.mxu0 0.0
    %91 = vmatpush1.msra.mxu0 %v70
    %92 = vmatprep.subr.mxu0 0.0
    %93 = vmatpush1.msra.mxu0 %v71
    %94 = vmatprep.subr.mxu0 0.0
    %95 = vmatpush1.msra.mxu0 0.0
    %96 = vmatprep.subr.mxu0 0.0
    %97 = vmatpush1.msra.mxu0 0.0
    %98 = vmatprep.subr.mxu0 0.0
    %99 = vmatpush1.msra.mxu0 0.0
    %100 = vmatprep.subr.mxu0 0.0
    %101 = vmatpush1.msra.mxu0 0.0
    %102 = vmatprep.subr.mxu0 0.0
    %103 = vmatpush1.msra.mxu0 0.0
    %104 = vmatprep.subr.mxu0 0.0
    %105 = vmatpush1.msra.mxu0 0.0
    %106 = vmatprep.subr.mxu0 0.0
    %107 = vmatpush1.msra.mxu0 0.0
    %108 = vmatprep.subr.mxu0 0.0
    %109 = vmatpush1.msra.mxu0 0.0
    %110 = vmatprep.subr.mxu0 0.0
    %111 = vmatpush1.msra.mxu0 0.0
    %112 = vmatprep.subr.mxu0 0.0
    %113 = vmatpush1.msra.mxu0 0.0
    %114 = vmatprep.subr.mxu0 0.0
    %115 = vmatpush1.msra.mxu0 0.0
    %116 = vmatprep.subr.mxu0 0.0
    %117 = vmatpush1.msra.mxu0 0.0
    %118 = vmatprep.subr.mxu0 0.0
    %119 = vmatpush1.msra.mxu0 0.0
    %120 = vmatprep.subr.mxu0 0.0
    %121 = vmatpush1.msra.mxu0 0.0
    %122 = vmatprep.subr.mxu0 0.0
    %123 = vmatpush1.msra.mxu0 0.0
    %124 = vmatprep.subr.mxu0 0.0
    %125 = vmatpush1.msra.mxu0 0.0
    %126 = vmatprep.subr.mxu0 0.0
    %127 = vmatpush1.msra.mxu0 0.0
    %128 = vmatprep.subr.mxu0 0.0
    %129 = vmatpush1.msra.mxu0 0.0
    %130 = vmatprep.subr.mxu0 0.0
    %131 = vmatpush1.msra.mxu0 0.0
    %132 = vmatprep.subr.mxu0 0.0
    %133 = vmatpush1.msra.mxu0 0.0
    %134 = vmatprep.subr.mxu0 0.0
    %135 = vmatpush1.msra.mxu0 0.0
    %136 = vmatprep.subr.mxu0 0.0
    %137 = vmatpush1.msra.mxu0 0.0
    %138 = vmatprep.subr.mxu0 0.0
    %139 = vmatpush1.msra.mxu0 0.0
    %140 = vmatprep.subr.mxu0 0.0
    %141 = vmatpush1.msra.mxu0 0.0
    %142 = vmatprep.mubr.f32.mxu0 0.0
    %143 = vmatmul.mubr.f32.gmra.mrb[0].mxu0 %v73
    %v144 = vpop.f32.mrb[0].mxu0
    %v145 = vadd.f32 0.0, %v144
    %v146 = vpop.f32.mrb[0].mxu0
    %147 = vmatprep.mubr.f32.mxu0 0.0
    %148 = vmatmul.mubr.f32.gmra.mrb[0].mxu0 %v76
    %v149 = vpop.f32.mrb[0].mxu0
    %v150 = vadd.f32 0.0, %v149
    %v151 = vpop.f32.mrb[0].mxu0
    %152 = vdwg.mxu0
    %v154 = vsel %vm33, %v51, 0
    %v157 = vsel %vm33, %v52, 0
    %159 = vmatprep.subr.mxu0 0.0
    %160 = vmatpush1.msra.mxu0 %v53
    %161 = vmatprep.subr.mxu0 0.0
    %162 = vmatpush1.msra.mxu0 %v54
    %163 = vmatprep.subr.mxu0 0.0
    %164 = vmatpush1.msra.mxu0 %v55
    %165 = vmatprep.subr.mxu0 0.0
    %166 = vmatpush1.msra.mxu0 %v56
    %167 = vmatprep.subr.mxu0 0.0
    %168 = vmatpush1.msra.mxu0 %v57
    %169 = vmatprep.subr.mxu0 0.0
    %170 = vmatpush1.msra.mxu0 %v58
    %171 = vmatprep.subr.mxu0 0.0
    %172 = vmatpush1.msra.mxu0 %v59
    %173 = vmatprep.subr.mxu0 0.0
    %174 = vmatpush1.msra.mxu0 %v60
    %175 = vmatprep.subr.mxu0 0.0
    %176 = vmatpush1.msra.mxu0 0.0
    %177 = vmatprep.subr.mxu0 0.0
    %178 = vmatpush1.msra.mxu0 0.0
    %179 = vmatprep.subr.mxu0 0.0
    %180 = vmatpush1.msra.mxu0 0.0
    %181 = vmatprep.subr.mxu0 0.0
    %182 = vmatpush1.msra.mxu0 0.0
    %183 = vmatprep.subr.mxu0 0.0
    %184 = vmatpush1.msra.mxu0 0.0
    %185 = vmatprep.subr.mxu0 0.0
    %186 = vmatpush1.msra.mxu0 0.0
    %187 = vmatprep.subr.mxu0 0.0
    %188 = vmatpush1.msra.mxu0 0.0
    %189 = vmatprep.subr.mxu0 0.0
    %190 = vmatpush1.msra.mxu0 0.0
    %191 = vmatprep.subr.mxu0 0.0
    %192 = vmatpush1.msra.mxu0 0.0
    %193 = vmatprep.subr.mxu0 0.0
    %194 = vmatpush1.msra.mxu0 0.0
    %195 = vmatprep.subr.mxu0 0.0
    %196 = vmatpush1.msra.mxu0 0.0
    %197 = vmatprep.subr.mxu0 0.0
    %198 = vmatpush1.msra.mxu0 0.0
    %199 = vmatprep.subr.mxu0 0.0
    %200 = vmatpush1.msra.mxu0 0.0
    %201 = vmatprep.subr.mxu0 0.0
    %202 = vmatpush1.msra.mxu0 0.0
    %203 = vmatprep.subr.mxu0 0.0
    %204 = vmatpush1.msra.mxu0 0.0
    %205 = vmatprep.subr.mxu0 0.0
    %206 = vmatpush1.msra.mxu0 0.0
    %207 = vmatprep.subr.mxu0 0.0
    %208 = vmatpush1.msra.mxu0 0.0
    %209 = vmatprep.subr.mxu0 0.0
    %210 = vmatpush1.msra.mxu0 0.0
    %211 = vmatprep.subr.mxu0 0.0
    %212 = vmatpush1.msra.mxu0 0.0
    %213 = vmatprep.subr.mxu0 0.0
    %214 = vmatpush1.msra.mxu0 0.0
    %215 = vmatprep.subr.mxu0 0.0
    %216 = vmatpush1.msra.mxu0 0.0
    %217 = vmatprep.subr.mxu0 0.0
    %218 = vmatpush1.msra.mxu0 0.0
    %219 = vmatprep.subr.mxu0 0.0
    %220 = vmatpush1.msra.mxu0 0.0
    %221 = vmatprep.subr.mxu0 0.0
    %222 = vmatpush1.msra.mxu0 0.0
    %223 = vmatprep.mubr.f32.mxu0 0.0
    %224 = vmatmul.mubr.f32.gmra.mrb[0].mxu0 %v154
    %v225 = vpop.f32.mrb[0].mxu0
    %v226 = vadd.f32 %v145, %v225
    %v227 = vpop.f32.mrb[0].mxu0
    %228 = vmatprep.mubr.f32.mxu0 0.0
    %229 = vmatmul.mubr.f32.gmra.mrb[0].mxu0 %v157
    %v230 = vpop.f32.mrb[0].mxu0
    %v231 = vadd.f32 %v150, %v230
    %v232 = vpop.f32.mrb[0].mxu0
    %233 = vdwg.mxu0
    %v234 = vld [vmem:[#allocation2 + $0x2] sm:$0xff]
    %v235 = vld [vmem:[#allocation2 + $0xa] sm:$0xff]
    %s236 = scalar_lea.vmem %s1, 128
    %v237 = vld [vmem:[%s236] sm:$0xff]
    %v238 = vld [vmem:[%s236 + $0x8] sm:$0xff]
    %v239 = vld [vmem:[%s236 + $0x10] sm:$0xff]
    %v240 = vld [vmem:[%s236 + $0x18] sm:$0xff]
    %v241 = vld [vmem:[%s236 + $0x20] sm:$0xff]
    %v242 = vld [vmem:[%s236 + $0x28] sm:$0xff]
    %v243 = vld [vmem:[%s236 + $0x30] sm:$0xff]
    %v244 = vld [vmem:[%s236 + $0x38] sm:$0xff]
    %v246 = vsel %vm33, %v234, 0
    %v249 = vsel %vm33, %v235, 0
    %251 = vmatprep.subr.mxu0 0.0
    %252 = vmatpush1.msra.mxu0 %v237
    %253 = vmatprep.subr.mxu0 0.0
    %254 = vmatpush1.msra.mxu0 %v238
    %255 = vmatprep.subr.mxu0 0.0
    %256 = vmatpush1.msra.mxu0 %v239
    %257 = vmatprep.subr.mxu0 0.0
    %258 = vmatpush1.msra.mxu0 %v240
    %259 = vmatprep.subr.mxu0 0.0
    %260 = vmatpush1.msra.mxu0 %v241
    %261 = vmatprep.subr.mxu0 0.0
    %262 = vmatpush1.msra.mxu0 %v242
    %263 = vmatprep.subr.mxu0 0.0
    %264 = vmatpush1.msra.mxu0 %v243
    %265 = vmatprep.subr.mxu0 0.0
    %266 = vmatpush1.msra.mxu0 %v244
    %267 = vmatprep.subr.mxu0 0.0
    %268 = vmatpush1.msra.mxu0 0.0
    %269 = vmatprep.subr.mxu0 0.0
    %270 = vmatpush1.msra.mxu0 0.0
    %271 = vmatprep.subr.mxu0 0.0
    %272 = vmatpush1.msra.mxu0 0.0
    %273 = vmatprep.subr.mxu0 0.0
    %274 = vmatpush1.msra.mxu0 0.0
    %275 = vmatprep.subr.mxu0 0.0
    %276 = vmatpush1.msra.mxu0 0.0
    %277 = vmatprep.subr.mxu0 0.0
    %278 = vmatpush1.msra.mxu0 0.0
    %279 = vmatprep.subr.mxu0 0.0
    %280 = vmatpush1.msra.mxu0 0.0
    %281 = vmatprep.subr.mxu0 0.0
    %282 = vmatpush1.msra.mxu0 0.0
    %283 = vmatprep.subr.mxu0 0.0
    %284 = vmatpush1.msra.mxu0 0.0
    %285 = vmatprep.subr.mxu0 0.0
    %286 = vmatpush1.msra.mxu0 0.0
    %287 = vmatprep.subr.mxu0 0.0
    %288 = vmatpush1.msra.mxu0 0.0
    %289 = vmatprep.subr.mxu0 0.0
    %290 = vmatpush1.msra.mxu0 0.0
    %291 = vmatprep.subr.mxu0 0.0
    %292 = vmatpush1.msra.mxu0 0.0
    %293 = vmatprep.subr.mxu0 0.0
    %294 = vmatpush1.msra.mxu0 0.0
    %295 = vmatprep.subr.mxu0 0.0
    %296 = vmatpush1.msra.mxu0 0.0
    %297 = vmatprep.subr.mxu0 0.0
    %298 = vmatpush1.msra.mxu0 0.0
    %299 = vmatprep.subr.mxu0 0.0
    %300 = vmatpush1.msra.mxu0 0.0
    %301 = vmatprep.subr.mxu0 0.0
    %302 = vmatpush1.msra.mxu0 0.0
    %303 = vmatprep.subr.mxu0 0.0
    %304 = vmatpush1.msra.mxu0 0.0
    %305 = vmatprep.subr.mxu0 0.0
    %306 = vmatpush1.msra.mxu0 0.0
    %307 = vmatprep.subr.mxu0 0.0
    %308 = vmatpush1.msra.mxu0 0.0
    %309 = vmatprep.subr.mxu0 0.0
    %310 = vmatpush1.msra.mxu0 0.0
    %311 = vmatprep.subr.mxu0 0.0
    %312 = vmatpush1.msra.mxu0 0.0
    %313 = vmatprep.subr.mxu0 0.0
    %314 = vmatpush1.msra.mxu0 0.0
    %315 = vmatprep.mubr.f32.mxu0 0.0
    %316 = vmatmul.mubr.f32.gmra.mrb[0].mxu0 %v246
    %v317 = vpop.f32.mrb[0].mxu0
    %v318 = vadd.f32 0.0, %v317
    %v319 = vpop.f32.mrb[0].mxu0
    %320 = vmatprep.mubr.f32.mxu0 0.0
    %321 = vmatmul.mubr.f32.gmra.mrb[0].mxu0 %v249
    %v322 = vpop.f32.mrb[0].mxu0
    %v323 = vadd.f32 0.0, %v322
    %v324 = vpop.f32.mrb[0].mxu0
    %325 = vdwg.mxu0
    %v326 = vadd.f32 %v226, %v318
    %v327 = vadd.f32 %v231, %v323
    %v328 = vld [vmem:[%s2] sm:$0x1]
    %v330 = vlaneseq
    %v331 = vshrl.u32 %v330, 7
    %v332 = vsub.s32 0, %v331
    %v333 = vrot.slane %v328, %v332
    %v335 = vadd.f32 %v326, %v333
    %v336 = vadd.f32 %v327, %v333
    %v337 = vmax.f32 %v335, 0.0
    %v338 = vmax.f32 %v336, 0.0
    %339 = vst [vmem:[#allocation3 + $0x1] sm:$0xff] %v337
    %340 = vst [vmem:[#allocation3 + $0x9] sm:$0xff] %v338
    %v341 = vld [vmem:[#allocation3] sm:$0xff]
    %v342 = vld [vmem:[#allocation3 + $0x8] sm:$0xff]
    %v343 = vld [vmem:[%s3] sm:$0xff]
    %v344 = vld [vmem:[%s3 + $0x8] sm:$0xff]
    %v345 = vld [vmem:[%s3 + $0x10] sm:$0xff]
    %v346 = vld [vmem:[%s3 + $0x18] sm:$0xff]
    %v347 = vld [vmem:[%s3 + $0x20] sm:$0xff]
    %v348 = vld [vmem:[%s3 + $0x28] sm:$0xff]
    %v349 = vld [vmem:[%s3 + $0x30] sm:$0xff]
    %v350 = vld [vmem:[%s3 + $0x38] sm:$0xff]
    %v351 = vld [vmem:[%s3 + $0x40] sm:$0xff]
    %v352 = vld [vmem:[%s3 + $0x48] sm:$0xff]
    %v353 = vld [vmem:[%s3 + $0x50] sm:$0xff]
    %v354 = vld [vmem:[%s3 + $0x58] sm:$0xff]
    %v355 = vld [vmem:[%s3 + $0x60] sm:$0xff]
    %v356 = vld [vmem:[%s3 + $0x68] sm:$0xff]
    %v357 = vld [vmem:[%s3 + $0x70] sm:$0xff]
    %v358 = vld [vmem:[%s3 + $0x78] sm:$0xff]
    %v359 = vld [vmem:[#allocation3 + $0x1] sm:$0xff]
    %v360 = vld [vmem:[#allocation3 + $0x9] sm:$0xff]
    %s361 = scalar_lea.vmem %s3, 128
    %v362 = vld [vmem:[%s361] sm:$0xff]
    %v363 = vld [vmem:[%s361 + $0x8] sm:$0xff]
    %v364 = vld [vmem:[%s361 + $0x10] sm:$0xff]
    %v365 = vld [vmem:[%s361 + $0x18] sm:$0xff]
    %v366 = vld [vmem:[%s361 + $0x20] sm:$0xff]
    %v367 = vld [vmem:[%s361 + $0x28] sm:$0xff]
    %v368 = vld [vmem:[%s361 + $0x30] sm:$0xff]
    %v369 = vld [vmem:[%s361 + $0x38] sm:$0xff]
    %v370 = vld [vmem:[%s361 + $0x40] sm:$0xff]
    %v371 = vld [vmem:[%s361 + $0x48] sm:$0xff]
    %v372 = vld [vmem:[%s361 + $0x50] sm:$0xff]
    %v373 = vld [vmem:[%s361 + $0x58] sm:$0xff]
    %v374 = vld [vmem:[%s361 + $0x60] sm:$0xff]
    %v375 = vld [vmem:[%s361 + $0x68] sm:$0xff]
    %v376 = vld [vmem:[%s361 + $0x70] sm:$0xff]
    %v377 = vld [vmem:[%s361 + $0x78] sm:$0xff]
    %378 = vmatprep.subr.mxu0 0.0
    %379 = vmatpush1.msra.mxu0 %v362
    %380 = vmatprep.subr.mxu0 0.0
    %381 = vmatpush1.msra.mxu0 %v363
    %382 = vmatprep.subr.mxu0 0.0
    %383 = vmatpush1.msra.mxu0 %v364
    %384 = vmatprep.subr.mxu0 0.0
    %385 = vmatpush1.msra.mxu0 %v365
    %386 = vmatprep.subr.mxu0 0.0
    %387 = vmatpush1.msra.mxu0 %v366
    %388 = vmatprep.subr.mxu0 0.0
    %389 = vmatpush1.msra.mxu0 %v367
    %390 = vmatprep.subr.mxu0 0.0
    %391 = vmatpush1.msra.mxu0 %v368
    %392 = vmatprep.subr.mxu0 0.0
    %393 = vmatpush1.msra.mxu0 %v369
    %394 = vmatprep.subr.mxu0 0.0
    %395 = vmatpush1.msra.mxu0 %v370
    %396 = vmatprep.subr.mxu0 0.0
    %397 = vmatpush1.msra.mxu0 %v371
    %398 = vmatprep.subr.mxu0 0.0
    %399 = vmatpush1.msra.mxu0 %v372
    %400 = vmatprep.subr.mxu0 0.0
    %401 = vmatpush1.msra.mxu0 %v373
    %402 = vmatprep.subr.mxu0 0.0
    %403 = vmatpush1.msra.mxu0 %v374
    %404 = vmatprep.subr.mxu0 0.0
    %405 = vmatpush1.msra.mxu0 %v375
    %406 = vmatprep.subr.mxu0 0.0
    %407 = vmatpush1.msra.mxu0 %v376
    %408 = vmatprep.subr.mxu0 0.0
    %409 = vmatpush1.msra.mxu0 %v377
    %410 = vmatprep.subr.mxu0 0.0
    %411 = vmatpush1.msra.mxu0 0.0
    %412 = vmatprep.subr.mxu0 0.0
    %413 = vmatpush1.msra.mxu0 0.0
    %414 = vmatprep.subr.mxu0 0.0
    %415 = vmatpush1.msra.mxu0 0.0
    %416 = vmatprep.subr.mxu0 0.0
    %417 = vmatpush1.msra.mxu0 0.0
    %418 = vmatprep.subr.mxu0 0.0
    %419 = vmatpush1.msra.mxu0 0.0
    %420 = vmatprep.subr.mxu0 0.0
    %421 = vmatpush1.msra.mxu0 0.0
    %422 = vmatprep.subr.mxu0 0.0
    %423 = vmatpush1.msra.mxu0 0.0
    %424 = vmatprep.subr.mxu0 0.0
    %425 = vmatpush1.msra.mxu0 0.0
    %426 = vmatprep.subr.mxu0 0.0
    %427 = vmatpush1.msra.mxu0 0.0
    %428 = vmatprep.subr.mxu0 0.0
    %429 = vmatpush1.msra.mxu0 0.0
    %430 = vmatprep.subr.mxu0 0.0
    %431 = vmatpush1.msra.mxu0 0.0
    %432 = vmatprep.subr.mxu0 0.0
    %433 = vmatpush1.msra.mxu0 0.0
    %434 = vmatprep.subr.mxu0 0.0
    %435 = vmatpush1.msra.mxu0 0.0
    %436 = vmatprep.subr.mxu0 0.0
    %437 = vmatpush1.msra.mxu0 0.0
    %438 = vmatprep.subr.mxu0 0.0
    %439 = vmatpush1.msra.mxu0 0.0
    %440 = vmatprep.subr.mxu0 0.0
    %441 = vmatpush1.msra.mxu0 0.0
    %442 = vmatprep.mubr.f32.mxu0 0.0
    %443 = vmatmul.mubr.f32.gmra.mrb[0].mxu0 %v359
    %v444 = vpop.f32.mrb[0].mxu0
    %v445 = vadd.f32 0.0, %v444
    %v446 = vpop.f32.mrb[0].mxu0
    %447 = vmatprep.mubr.f32.mxu0 0.0
    %448 = vmatmul.mubr.f32.gmra.mrb[0].mxu0 %v360
    %v449 = vpop.f32.mrb[0].mxu0
    %v450 = vadd.f32 0.0, %v449
    %v451 = vpop.f32.mrb[0].mxu0
    %452 = vdwg.mxu0
    %453 = vmatprep.subr.mxu0 0.0
    %454 = vmatpush1.msra.mxu0 %v343
    %455 = vmatprep.subr.mxu0 0.0
    %456 = vmatpush1.msra.mxu0 %v344
    %457 = vmatprep.subr.mxu0 0.0
    %458 = vmatpush1.msra.mxu0 %v345
    %459 = vmatprep.subr.mxu0 0.0
    %460 = vmatpush1.msra.mxu0 %v346
    %461 = vmatprep.subr.mxu0 0.0
    %462 = vmatpush1.msra.mxu0 %v347
    %463 = vmatprep.subr.mxu0 0.0
    %464 = vmatpush1.msra.mxu0 %v348
    %465 = vmatprep.subr.mxu0 0.0
    %466 = vmatpush1.msra.mxu0 %v349
    %467 = vmatprep.subr.mxu0 0.0
    %468 = vmatpush1.msra.mxu0 %v350
    %469 = vmatprep.subr.mxu0 0.0
    %470 = vmatpush1.msra.mxu0 %v351
    %471 = vmatprep.subr.mxu0 0.0
    %472 = vmatpush1.msra.mxu0 %v352
    %473 = vmatprep.subr.mxu0 0.0
    %474 = vmatpush1.msra.mxu0 %v353
    %475 = vmatprep.subr.mxu0 0.0
    %476 = vmatpush1.msra.mxu0 %v354
    %477 = vmatprep.subr.mxu0 0.0
    %478 = vmatpush1.msra.mxu0 %v355
    %479 = vmatprep.subr.mxu0 0.0
    %480 = vmatpush1.msra.mxu0 %v356
    %481 = vmatprep.subr.mxu0 0.0
    %482 = vmatpush1.msra.mxu0 %v357
    %483 = vmatprep.subr.mxu0 0.0
    %484 = vmatpush1.msra.mxu0 %v358
    %485 = vmatprep.subr.mxu0 0.0
    %486 = vmatpush1.msra.mxu0 0.0
    %487 = vmatprep.subr.mxu0 0.0
    %488 = vmatpush1.msra.mxu0 0.0
    %489 = vmatprep.subr.mxu0 0.0
    %490 = vmatpush1.msra.mxu0 0.0
    %491 = vmatprep.subr.mxu0 0.0
    %492 = vmatpush1.msra.mxu0 0.0
    %493 = vmatprep.subr.mxu0 0.0
    %494 = vmatpush1.msra.mxu0 0.0
    %495 = vmatprep.subr.mxu0 0.0
    %496 = vmatpush1.msra.mxu0 0.0
    %497 = vmatprep.subr.mxu0 0.0
    %498 = vmatpush1.msra.mxu0 0.0
    %499 = vmatprep.subr.mxu0 0.0
    %500 = vmatpush1.msra.mxu0 0.0
    %501 = vmatprep.subr.mxu0 0.0
    %502 = vmatpush1.msra.mxu0 0.0
    %503 = vmatprep.subr.mxu0 0.0
    %504 = vmatpush1.msra.mxu0 0.0
    %505 = vmatprep.subr.mxu0 0.0
    %506 = vmatpush1.msra.mxu0 0.0
    %507 = vmatprep.subr.mxu0 0.0
    %508 = vmatpush1.msra.mxu0 0.0
    %509 = vmatprep.subr.mxu0 0.0
    %510 = vmatpush1.msra.mxu0 0.0
    %511 = vmatprep.subr.mxu0 0.0
    %512 = vmatpush1.msra.mxu0 0.0
    %513 = vmatprep.subr.mxu0 0.0
    %514 = vmatpush1.msra.mxu0 0.0
    %515 = vmatprep.subr.mxu0 0.0
    %516 = vmatpush1.msra.mxu0 0.0
    %517 = vmatprep.mubr.f32.mxu0 0.0
    %518 = vmatmul.mubr.f32.gmra.mrb[0].mxu0 %v341
    %v519 = vpop.f32.mrb[0].mxu0
    %v520 = vadd.f32 %v445, %v519
    %v521 = vpop.f32.mrb[0].mxu0
    %522 = vmatprep.mubr.f32.mxu0 0.0
    %523 = vmatmul.mubr.f32.gmra.mrb[0].mxu0 %v342
    %v524 = vpop.f32.mrb[0].mxu0
    %v525 = vadd.f32 %v450, %v524
    %v526 = vpop.f32.mrb[0].mxu0
    %527 = vdwg.mxu0
    %v528 = vld [vmem:[#allocation3 + $0x2] sm:$0xff]
    %v529 = vld [vmem:[#allocation3 + $0xa] sm:$0xff]
    %s530 = scalar_lea.vmem %s3, 256
    %v531 = vld [vmem:[%s530] sm:$0xff]
    %v532 = vld [vmem:[%s530 + $0x8] sm:$0xff]
    %v533 = vld [vmem:[%s530 + $0x10] sm:$0xff]
    %v534 = vld [vmem:[%s530 + $0x18] sm:$0xff]
    %v535 = vld [vmem:[%s530 + $0x20] sm:$0xff]
    %v536 = vld [vmem:[%s530 + $0x28] sm:$0xff]
    %v537 = vld [vmem:[%s530 + $0x30] sm:$0xff]
    %v538 = vld [vmem:[%s530 + $0x38] sm:$0xff]
    %v539 = vld [vmem:[%s530 + $0x40] sm:$0xff]
    %v540 = vld [vmem:[%s530 + $0x48] sm:$0xff]
    %v541 = vld [vmem:[%s530 + $0x50] sm:$0xff]
    %v542 = vld [vmem:[%s530 + $0x58] sm:$0xff]
    %v543 = vld [vmem:[%s530 + $0x60] sm:$0xff]
    %v544 = vld [vmem:[%s530 + $0x68] sm:$0xff]
    %v545 = vld [vmem:[%s530 + $0x70] sm:$0xff]
    %v546 = vld [vmem:[%s530 + $0x78] sm:$0xff]
    %547 = vmatprep.subr.mxu0 0.0
    %548 = vmatpush1.msra.mxu0 %v531
    %549 = vmatprep.subr.mxu0 0.0
    %550 = vmatpush1.msra.mxu0 %v532
    %551 = vmatprep.subr.mxu0 0.0
    %552 = vmatpush1.msra.mxu0 %v533
    %553 = vmatprep.subr.mxu0 0.0
    %554 = vmatpush1.msra.mxu0 %v534
    %555 = vmatprep.subr.mxu0 0.0
    %556 = vmatpush1.msra.mxu0 %v535
    %557 = vmatprep.subr.mxu0 0.0
    %558 = vmatpush1.msra.mxu0 %v536
    %559 = vmatprep.subr.mxu0 0.0
    %560 = vmatpush1.msra.mxu0 %v537
    %561 = vmatprep.subr.mxu0 0.0
    %562 = vmatpush1.msra.mxu0 %v538
    %563 = vmatprep.subr.mxu0 0.0
    %564 = vmatpush1.msra.mxu0 %v539
    %565 = vmatprep.subr.mxu0 0.0
    %566 = vmatpush1.msra.mxu0 %v540
    %567 = vmatprep.subr.mxu0 0.0
    %568 = vmatpush1.msra.mxu0 %v541
    %569 = vmatprep.subr.mxu0 0.0
    %570 = vmatpush1.msra.mxu0 %v542
    %571 = vmatprep.subr.mxu0 0.0
    %572 = vmatpush1.msra.mxu0 %v543
    %573 = vmatprep.subr.mxu0 0.0
    %574 = vmatpush1.msra.mxu0 %v544
    %575 = vmatprep.subr.mxu0 0.0
    %576 = vmatpush1.msra.mxu0 %v545
    %577 = vmatprep.subr.mxu0 0.0
    %578 = vmatpush1.msra.mxu0 %v546
    %579 = vmatprep.subr.mxu0 0.0
    %580 = vmatpush1.msra.mxu0 0.0
    %581 = vmatprep.subr.mxu0 0.0
    %582 = vmatpush1.msra.mxu0 0.0
    %583 = vmatprep.subr.mxu0 0.0
    %584 = vmatpush1.msra.mxu0 0.0
    %585 = vmatprep.subr.mxu0 0.0
    %586 = vmatpush1.msra.mxu0 0.0
    %587 = vmatprep.subr.mxu0 0.0
    %588 = vmatpush1.msra.mxu0 0.0
    %589 = vmatprep.subr.mxu0 0.0
    %590 = vmatpush1.msra.mxu0 0.0
    %591 = vmatprep.subr.mxu0 0.0
    %592 = vmatpush1.msra.mxu0 0.0
    %593 = vmatprep.subr.mxu0 0.0
    %594 = vmatpush1.msra.mxu0 0.0
    %595 = vmatprep.subr.mxu0 0.0
    %596 = vmatpush1.msra.mxu0 0.0
    %597 = vmatprep.subr.mxu0 0.0
    %598 = vmatpush1.msra.mxu0 0.0
    %599 = vmatprep.subr.mxu0 0.0
    %600 = vmatpush1.msra.mxu0 0.0
    %601 = vmatprep.subr.mxu0 0.0
    %602 = vmatpush1.msra.mxu0 0.0
    %603 = vmatprep.subr.mxu0 0.0
    %604 = vmatpush1.msra.mxu0 0.0
    %605 = vmatprep.subr.mxu0 0.0
    %606 = vmatpush1.msra.mxu0 0.0
    %607 = vmatprep.subr.mxu0 0.0
    %608 = vmatpush1.msra.mxu0 0.0
    %609 = vmatprep.subr.mxu0 0.0
    %610 = vmatpush1.msra.mxu0 0.0
    %611 = vmatprep.mubr.f32.mxu0 0.0
    %612 = vmatmul.mubr.f32.gmra.mrb[0].mxu0 %v528
    %v613 = vpop.f32.mrb[0].mxu0
    %v614 = vadd.f32 0.0, %v613
    %v615 = vpop.f32.mrb[0].mxu0
    %616 = vmatprep.mubr.f32.mxu0 0.0
    %617 = vmatmul.mubr.f32.gmra.mrb[0].mxu0 %v529
    %v618 = vpop.f32.mrb[0].mxu0
    %v619 = vadd.f32 0.0, %v618
    %v620 = vpop.f32.mrb[0].mxu0
    %621 = vdwg.mxu0
    %v622 = vadd.f32 %v520, %v614
    %v623 = vadd.f32 %v525, %v619
    %v624 = vld [vmem:[%s4] sm:$0x1]
    %v626 = vlaneseq
    %v627 = vshrl.u32 %v626, 7
    %v628 = vsub.s32 0, %v627
    %v629 = vrot.slane %v624, %v628
    %v631 = vadd.f32 %v622, %v629
    %v632 = vadd.f32 %v623, %v629
    %v633 = vmax.f32 %v631, 0.0
    %v634 = vmax.f32 %v632, 0.0
    %v635 = vld [vmem:[%s5] sm:$0xff]
    %v636 = vld [vmem:[%s5 + $0x8] sm:$0xff]
    %v637 = vld [vmem:[%s5 + $0x10] sm:$0xff]
    %v638 = vld [vmem:[%s5 + $0x18] sm:$0xff]
    %v639 = vld [vmem:[%s5 + $0x20] sm:$0xff]
    %v640 = vld [vmem:[%s5 + $0x28] sm:$0xff]
    %v641 = vld [vmem:[%s5 + $0x30] sm:$0xff]
    %v642 = vld [vmem:[%s5 + $0x38] sm:$0xff]
    %v643 = vld [vmem:[%s5 + $0x40] sm:$0xff]
    %v644 = vld [vmem:[%s5 + $0x48] sm:$0xff]
    %v645 = vld [vmem:[%s5 + $0x50] sm:$0xff]
    %v646 = vld [vmem:[%s5 + $0x58] sm:$0xff]
    %v647 = vld [vmem:[%s5 + $0x60] sm:$0xff]
    %v648 = vld [vmem:[%s5 + $0x68] sm:$0xff]
    %v649 = vld [vmem:[%s5 + $0x70] sm:$0xff]
    %v650 = vld [vmem:[%s5 + $0x78] sm:$0xff]
    %s651 = scalar_lea.vmem %s5, 128
    %v652 = vld [vmem:[%s651] sm:$0xff]
    %v653 = vld [vmem:[%s651 + $0x8] sm:$0xff]
    %v654 = vld [vmem:[%s651 + $0x10] sm:$0xff]
    %v655 = vld [vmem:[%s651 + $0x18] sm:$0xff]
    %v656 = vld [vmem:[%s651 + $0x20] sm:$0xff]
    %v657 = vld [vmem:[%s651 + $0x28] sm:$0xff]
    %v658 = vld [vmem:[%s651 + $0x30] sm:$0xff]
    %v659 = vld [vmem:[%s651 + $0x38] sm:$0xff]
    %v660 = vld [vmem:[%s651 + $0x40] sm:$0xff]
    %v661 = vld [vmem:[%s651 + $0x48] sm:$0xff]
    %v662 = vld [vmem:[%s651 + $0x50] sm:$0xff]
    %v663 = vld [vmem:[%s651 + $0x58] sm:$0xff]
    %v664 = vld [vmem:[%s651 + $0x60] sm:$0xff]
    %v665 = vld [vmem:[%s651 + $0x68] sm:$0xff]
    %v666 = vld [vmem:[%s651 + $0x70] sm:$0xff]
    %v667 = vld [vmem:[%s651 + $0x78] sm:$0xff]
    %v669 = vrot.slane %v633, 2
    %671 = vmatprep.subr.mxu0 0.0
    %672 = vmatpush1.msra.mxu0 %v652
    %673 = vmatprep.subr.mxu0 0.0
    %674 = vmatpush1.msra.mxu0 %v653
    %675 = vmatprep.subr.mxu0 0.0
    %676 = vmatpush1.msra.mxu0 %v654
    %677 = vmatprep.subr.mxu0 0.0
    %678 = vmatpush1.msra.mxu0 %v655
    %679 = vmatprep.subr.mxu0 0.0
    %680 = vmatpush1.msra.mxu0 %v656
    %681 = vmatprep.subr.mxu0 0.0
    %682 = vmatpush1.msra.mxu0 %v657
    %683 = vmatprep.subr.mxu0 0.0
    %684 = vmatpush1.msra.mxu0 %v658
    %685 = vmatprep.subr.mxu0 0.0
    %686 = vmatpush1.msra.mxu0 %v659
    %687 = vmatprep.subr.mxu0 0.0
    %688 = vmatpush1.msra.mxu0 %v660
    %689 = vmatprep.subr.mxu0 0.0
    %690 = vmatpush1.msra.mxu0 %v661
    %691 = vmatprep.subr.mxu0 0.0
    %692 = vmatpush1.msra.mxu0 %v662
    %693 = vmatprep.subr.mxu0 0.0
    %694 = vmatpush1.msra.mxu0 %v663
    %695 = vmatprep.subr.mxu0 0.0
    %696 = vmatpush1.msra.mxu0 %v664
    %697 = vmatprep.subr.mxu0 0.0
    %698 = vmatpush1.msra.mxu0 %v665
    %699 = vmatprep.subr.mxu0 0.0
    %700 = vmatpush1.msra.mxu0 %v666
    %701 = vmatprep.subr.mxu0 0.0
    %702 = vmatpush1.msra.mxu0 %v667
    %703 = vmatprep.subr.mxu0 0.0
    %704 = vmatpush1.msra.mxu0 0.0
    %705 = vmatprep.subr.mxu0 0.0
    %706 = vmatpush1.msra.mxu0 0.0
    %707 = vmatprep.subr.mxu0 0.0
    %708 = vmatpush1.msra.mxu0 0.0
    %709 = vmatprep.subr.mxu0 0.0
    %710 = vmatpush1.msra.mxu0 0.0
    %711 = vmatprep.subr.mxu0 0.0
    %712 = vmatpush1.msra.mxu0 0.0
    %713 = vmatprep.subr.mxu0 0.0
    %714 = vmatpush1.msra.mxu0 0.0
    %715 = vmatprep.subr.mxu0 0.0
    %716 = vmatpush1.msra.mxu0 0.0
    %717 = vmatprep.subr.mxu0 0.0
    %718 = vmatpush1.msra.mxu0 0.0
    %719 = vmatprep.subr.mxu0 0.0
    %720 = vmatpush1.msra.mxu0 0.0
    %721 = vmatprep.subr.mxu0 0.0
    %722 = vmatpush1.msra.mxu0 0.0
    %723 = vmatprep.subr.mxu0 0.0
    %724 = vmatpush1.msra.mxu0 0.0
    %725 = vmatprep.subr.mxu0 0.0
    %726 = vmatpush1.msra.mxu0 0.0
    %727 = vmatprep.subr.mxu0 0.0
    %728 = vmatpush1.msra.mxu0 0.0
    %729 = vmatprep.subr.mxu0 0.0
    %730 = vmatpush1.msra.mxu0 0.0
    %731 = vmatprep.subr.mxu0 0.0
    %732 = vmatpush1.msra.mxu0 0.0
    %733 = vmatprep.subr.mxu0 0.0
    %734 = vmatpush1.msra.mxu0 0.0
    %735 = vmatprep.mubr.f32.mxu0 0.0
    %736 = vmatmul.mubr.f32.gmra.mrb[0].mxu0 %v669
    %v737 = vpop.f32.mrb[0].mxu0
    %v738 = vadd.f32 0.0, %v737
    %v739 = vpop.f32.mrb[0].mxu0
    %740 = vdwg.mxu0
    %741 = vmatprep.subr.mxu0 0.0
    %742 = vmatpush1.msra.mxu0 %v635
    %743 = vmatprep.subr.mxu0 0.0
    %744 = vmatpush1.msra.mxu0 %v636
    %745 = vmatprep.subr.mxu0 0.0
    %746 = vmatpush1.msra.mxu0 %v637
    %747 = vmatprep.subr.mxu0 0.0
    %748 = vmatpush1.msra.mxu0 %v638
    %749 = vmatprep.subr.mxu0 0.0
    %750 = vmatpush1.msra.mxu0 %v639
    %751 = vmatprep.subr.mxu0 0.0
    %752 = vmatpush1.msra.mxu0 %v640
    %753 = vmatprep.subr.mxu0 0.0
    %754 = vmatpush1.msra.mxu0 %v641
    %755 = vmatprep.subr.mxu0 0.0
    %756 = vmatpush1.msra.mxu0 %v642
    %757 = vmatprep.subr.mxu0 0.0
    %758 = vmatpush1.msra.mxu0 %v643
    %759 = vmatprep.subr.mxu0 0.0
    %760 = vmatpush1.msra.mxu0 %v644
    %761 = vmatprep.subr.mxu0 0.0
    %762 = vmatpush1.msra.mxu0 %v645
    %763 = vmatprep.subr.mxu0 0.0
    %764 = vmatpush1.msra.mxu0 %v646
    %765 = vmatprep.subr.mxu0 0.0
    %766 = vmatpush1.msra.mxu0 %v647
    %767 = vmatprep.subr.mxu0 0.0
    %768 = vmatpush1.msra.mxu0 %v648
    %769 = vmatprep.subr.mxu0 0.0
    %770 = vmatpush1.msra.mxu0 %v649
    %771 = vmatprep.subr.mxu0 0.0
    %772 = vmatpush1.msra.mxu0 %v650
    %773 = vmatprep.subr.mxu0 0.0
    %774 = vmatpush1.msra.mxu0 0.0
    %775 = vmatprep.subr.mxu0 0.0
    %776 = vmatpush1.msra.mxu0 0.0
    %777 = vmatprep.subr.mxu0 0.0
    %778 = vmatpush1.msra.mxu0 0.0
    %779 = vmatprep.subr.mxu0 0.0
    %780 = vmatpush1.msra.mxu0 0.0
    %781 = vmatprep.subr.mxu0 0.0
    %782 = vmatpush1.msra.mxu0 0.0
    %783 = vmatprep.subr.mxu0 0.0
    %784 = vmatpush1.msra.mxu0 0.0
    %785 = vmatprep.subr.mxu0 0.0
    %786 = vmatpush1.msra.mxu0 0.0
    %787 = vmatprep.subr.mxu0 0.0
    %788 = vmatpush1.msra.mxu0 0.0
    %789 = vmatprep.subr.mxu0 0.0
    %790 = vmatpush1.msra.mxu0 0.0
    %791 = vmatprep.subr.mxu0 0.0
    %792 = vmatpush1.msra.mxu0 0.0
    %793 = vmatprep.subr.mxu0 0.0
    %794 = vmatpush1.msra.mxu0 0.0
    %795 = vmatprep.subr.mxu0 0.0
    %796 = vmatpush1.msra.mxu0 0.0
    %797 = vmatprep.subr.mxu0 0.0
    %798 = vmatpush1.msra.mxu0 0.0
    %799 = vmatprep.subr.mxu0 0.0
    %800 = vmatpush1.msra.mxu0 0.0
    %801 = vmatprep.subr.mxu0 0.0
    %802 = vmatpush1.msra.mxu0 0.0
    %803 = vmatprep.subr.mxu0 0.0
    %804 = vmatpush1.msra.mxu0 0.0
    %805 = vmatprep.mubr.f32.mxu0 0.0
    %806 = vmatmul.mubr.f32.gmra.mrb[0].mxu0 %v633
    %v807 = vpop.f32.mrb[0].mxu0
    %v808 = vadd.f32 %v738, %v807
    %v809 = vpop.f32.mrb[0].mxu0
    %810 = vdwg.mxu0
    %s811 = scalar_lea.vmem %s5, 256
    %v812 = vld [vmem:[%s811] sm:$0xff]
    %v813 = vld [vmem:[%s811 + $0x8] sm:$0xff]
    %v814 = vld [vmem:[%s811 + $0x10] sm:$0xff]
    %v815 = vld [vmem:[%s811 + $0x18] sm:$0xff]
    %v816 = vld [vmem:[%s811 + $0x20] sm:$0xff]
    %v817 = vld [vmem:[%s811 + $0x28] sm:$0xff]
    %v818 = vld [vmem:[%s811 + $0x30] sm:$0xff]
    %v819 = vld [vmem:[%s811 + $0x38] sm:$0xff]
    %v820 = vld [vmem:[%s811 + $0x40] sm:$0xff]
    %v821 = vld [vmem:[%s811 + $0x48] sm:$0xff]
    %v822 = vld [vmem:[%s811 + $0x50] sm:$0xff]
    %v823 = vld [vmem:[%s811 + $0x58] sm:$0xff]
    %v824 = vld [vmem:[%s811 + $0x60] sm:$0xff]
    %v825 = vld [vmem:[%s811 + $0x68] sm:$0xff]
    %v826 = vld [vmem:[%s811 + $0x70] sm:$0xff]
    %v827 = vld [vmem:[%s811 + $0x78] sm:$0xff]
    %v828 = vrot.slane %v633, 4
    %830 = vmatprep.subr.mxu0 0.0
    %831 = vmatpush1.msra.mxu0 %v812
    %832 = vmatprep.subr.mxu0 0.0
    %833 = vmatpush1.msra.mxu0 %v813
    %834 = vmatprep.subr.mxu0 0.0
    %835 = vmatpush1.msra.mxu0 %v814
    %836 = vmatprep.subr.mxu0 0.0
    %837 = vmatpush1.msra.mxu0 %v815
    %838 = vmatprep.subr.mxu0 0.0
    %839 = vmatpush1.msra.mxu0 %v816
    %840 = vmatprep.subr.mxu0 0.0
    %841 = vmatpush1.msra.mxu0 %v817
    %842 = vmatprep.subr.mxu0 0.0
    %843 = vmatpush1.msra.mxu0 %v818
    %844 = vmatprep.subr.mxu0 0.0
    %845 = vmatpush1.msra.mxu0 %v819
    %846 = vmatprep.subr.mxu0 0.0
    %847 = vmatpush1.msra.mxu0 %v820
    %848 = vmatprep.subr.mxu0 0.0
    %849 = vmatpush1.msra.mxu0 %v821
    %850 = vmatprep.subr.mxu0 0.0
    %851 = vmatpush1.msra.mxu0 %v822
    %852 = vmatprep.subr.mxu0 0.0
    %853 = vmatpush1.msra.mxu0 %v823
    %854 = vmatprep.subr.mxu0 0.0
    %855 = vmatpush1.msra.mxu0 %v824
    %856 = vmatprep.subr.mxu0 0.0
    %857 = vmatpush1.msra.mxu0 %v825
    %858 = vmatprep.subr.mxu0 0.0
    %859 = vmatpush1.msra.mxu0 %v826
    %860 = vmatprep.subr.mxu0 0.0
    %861 = vmatpush1.msra.mxu0 %v827
    %862 = vmatprep.subr.mxu0 0.0
    %863 = vmatpush1.msra.mxu0 0.0
    %864 = vmatprep.subr.mxu0 0.0
    %865 = vmatpush1.msra.mxu0 0.0
    %866 = vmatprep.subr.mxu0 0.0
    %867 = vmatpush1.msra.mxu0 0.0
    %868 = vmatprep.subr.mxu0 0.0
    %869 = vmatpush1.msra.mxu0 0.0
    %870 = vmatprep.subr.mxu0 0.0
    %871 = vmatpush1.msra.mxu0 0.0
    %872 = vmatprep.subr.mxu0 0.0
    %873 = vmatpush1.msra.mxu0 0.0
    %874 = vmatprep.subr.mxu0 0.0
    %875 = vmatpush1.msra.mxu0 0.0
    %876 = vmatprep.subr.mxu0 0.0
    %877 = vmatpush1.msra.mxu0 0.0
    %878 = vmatprep.subr.mxu0 0.0
    %879 = vmatpush1.msra.mxu0 0.0
    %880 = vmatprep.subr.mxu0 0.0
    %881 = vmatpush1.msra.mxu0 0.0
    %882 = vmatprep.subr.mxu0 0.0
    %883 = vmatpush1.msra.mxu0 0.0
    %884 = vmatprep.subr.mxu0 0.0
    %885 = vmatpush1.msra.mxu0 0.0
    %886 = vmatprep.subr.mxu0 0.0
    %887 = vmatpush1.msra.mxu0 0.0
    %888 = vmatprep.subr.mxu0 0.0
    %889 = vmatpush1.msra.mxu0 0.0
    %890 = vmatprep.subr.mxu0 0.0
    %891 = vmatpush1.msra.mxu0 0.0
    %892 = vmatprep.subr.mxu0 0.0
    %893 = vmatpush1.msra.mxu0 0.0
    %894 = vmatprep.mubr.f32.mxu0 0.0
    %895 = vmatmul.mubr.f32.gmra.mrb[0].mxu0 %v828
    %v896 = vpop.f32.mrb[0].mxu0
    %v897 = vadd.f32 0.0, %v896
    %v898 = vpop.f32.mrb[0].mxu0
    %899 = vdwg.mxu0
    %v900 = vadd.f32 %v808, %v897
    %s901 = scalar_lea.vmem %s5, 384
    %v902 = vld [vmem:[%s901] sm:$0xff]
    %v903 = vld [vmem:[%s901 + $0x8] sm:$0xff]
    %v904 = vld [vmem:[%s901 + $0x10] sm:$0xff]
    %v905 = vld [vmem:[%s901 + $0x18] sm:$0xff]
    %v906 = vld [vmem:[%s901 + $0x20] sm:$0xff]
    %v907 = vld [vmem:[%s901 + $0x28] sm:$0xff]
    %v908 = vld [vmem:[%s901 + $0x30] sm:$0xff]
    %v909 = vld [vmem:[%s901 + $0x38] sm:$0xff]
    %v910 = vld [vmem:[%s901 + $0x40] sm:$0xff]
    %v911 = vld [vmem:[%s901 + $0x48] sm:$0xff]
    %v912 = vld [vmem:[%s901 + $0x50] sm:$0xff]
    %v913 = vld [vmem:[%s901 + $0x58] sm:$0xff]
    %v914 = vld [vmem:[%s901 + $0x60] sm:$0xff]
    %v915 = vld [vmem:[%s901 + $0x68] sm:$0xff]
    %v916 = vld [vmem:[%s901 + $0x70] sm:$0xff]
    %v917 = vld [vmem:[%s901 + $0x78] sm:$0xff]
    %v918 = vrot.slane %v633, 6
    %920 = vmatprep.subr.mxu0 0.0
    %921 = vmatpush1.msra.mxu0 %v902
    %922 = vmatprep.subr.mxu0 0.0
    %923 = vmatpush1.msra.mxu0 %v903
    %924 = vmatprep.subr.mxu0 0.0
    %925 = vmatpush1.msra.mxu0 %v904
    %926 = vmatprep.subr.mxu0 0.0
    %927 = vmatpush1.msra.mxu0 %v905
    %928 = vmatprep.subr.mxu0 0.0
    %929 = vmatpush1.msra.mxu0 %v906
    %930 = vmatprep.subr.mxu0 0.0
    %931 = vmatpush1.msra.mxu0 %v907
    %932 = vmatprep.subr.mxu0 0.0
    %933 = vmatpush1.msra.mxu0 %v908
    %934 = vmatprep.subr.mxu0 0.0
    %935 = vmatpush1.msra.mxu0 %v909
    %936 = vmatprep.subr.mxu0 0.0
    %937 = vmatpush1.msra.mxu0 %v910
    %938 = vmatprep.subr.mxu0 0.0
    %939 = vmatpush1.msra.mxu0 %v911
    %940 = vmatprep.subr.mxu0 0.0
    %941 = vmatpush1.msra.mxu0 %v912
    %942 = vmatprep.subr.mxu0 0.0
    %943 = vmatpush1.msra.mxu0 %v913
    %944 = vmatprep.subr.mxu0 0.0
    %945 = vmatpush1.msra.mxu0 %v914
    %946 = vmatprep.subr.mxu0 0.0
    %947 = vmatpush1.msra.mxu0 %v915
    %948 = vmatprep.subr.mxu0 0.0
    %949 = vmatpush1.msra.mxu0 %v916
    %950 = vmatprep.subr.mxu0 0.0
    %951 = vmatpush1.msra.mxu0 %v917
    %952 = vmatprep.subr.mxu0 0.0
    %953 = vmatpush1.msra.mxu0 0.0
    %954 = vmatprep.subr.mxu0 0.0
    %955 = vmatpush1.msra.mxu0 0.0
    %956 = vmatprep.subr.mxu0 0.0
    %957 = vmatpush1.msra.mxu0 0.0
    %958 = vmatprep.subr.mxu0 0.0
    %959 = vmatpush1.msra.mxu0 0.0
    %960 = vmatprep.subr.mxu0 0.0
    %961 = vmatpush1.msra.mxu0 0.0
    %962 = vmatprep.subr.mxu0 0.0
    %963 = vmatpush1.msra.mxu0 0.0
    %964 = vmatprep.subr.mxu0 0.0
    %965 = vmatpush1.msra.mxu0 0.0
    %966 = vmatprep.subr.mxu0 0.0
    %967 = vmatpush1.msra.mxu0 0.0
    %968 = vmatprep.subr.mxu0 0.0
    %969 = vmatpush1.msra.mxu0 0.0
    %970 = vmatprep.subr.mxu0 0.0
    %971 = vmatpush1.msra.mxu0 0.0
    %972 = vmatprep.subr.mxu0 0.0
    %973 = vmatpush1.msra.mxu0 0.0
    %974 = vmatprep.subr.mxu0 0.0
    %975 = vmatpush1.msra.mxu0 0.0
    %976 = vmatprep.subr.mxu0 0.0
    %977 = vmatpush1.msra.mxu0 0.0
    %978 = vmatprep.subr.mxu0 0.0
    %979 = vmatpush1.msra.mxu0 0.0
    %980 = vmatprep.subr.mxu0 0.0
    %981 = vmatpush1.msra.mxu0 0.0
    %982 = vmatprep.subr.mxu0 0.0
    %983 = vmatpush1.msra.mxu0 0.0
    %984 = vmatprep.mubr.f32.mxu0 0.0
    %985 = vmatmul.mubr.f32.gmra.mrb[0].mxu0 %v918
    %v986 = vpop.f32.mrb[0].mxu0
    %v987 = vadd.f32 0.0, %v986
    %v988 = vpop.f32.mrb[0].mxu0
    %989 = vdwg.mxu0
    %v990 = vadd.f32 %v900, %v987
    %s991 = scalar_lea.vmem %s5, 512
    %v992 = vld [vmem:[%s991] sm:$0xff]
    %v993 = vld [vmem:[%s991 + $0x8] sm:$0xff]
    %v994 = vld [vmem:[%s991 + $0x10] sm:$0xff]
    %v995 = vld [vmem:[%s991 + $0x18] sm:$0xff]
    %v996 = vld [vmem:[%s991 + $0x20] sm:$0xff]
    %v997 = vld [vmem:[%s991 + $0x28] sm:$0xff]
    %v998 = vld [vmem:[%s991 + $0x30] sm:$0xff]
    %v999 = vld [vmem:[%s991 + $0x38] sm:$0xff]
    %v1000 = vld [vmem:[%s991 + $0x40] sm:$0xff]
    %v1001 = vld [vmem:[%s991 + $0x48] sm:$0xff]
    %v1002 = vld [vmem:[%s991 + $0x50] sm:$0xff]
    %v1003 = vld [vmem:[%s991 + $0x58] sm:$0xff]
    %v1004 = vld [vmem:[%s991 + $0x60] sm:$0xff]
    %v1005 = vld [vmem:[%s991 + $0x68] sm:$0xff]
    %v1006 = vld [vmem:[%s991 + $0x70] sm:$0xff]
    %v1007 = vld [vmem:[%s991 + $0x78] sm:$0xff]
    %1008 = vmatprep.subr.mxu0 0.0
    %1009 = vmatpush1.msra.mxu0 %v992
    %1010 = vmatprep.subr.mxu0 0.0
    %1011 = vmatpush1.msra.mxu0 %v993
    %1012 = vmatprep.subr.mxu0 0.0
    %1013 = vmatpush1.msra.mxu0 %v994
    %1014 = vmatprep.subr.mxu0 0.0
    %1015 = vmatpush1.msra.mxu0 %v995
    %1016 = vmatprep.subr.mxu0 0.0
    %1017 = vmatpush1.msra.mxu0 %v996
    %1018 = vmatprep.subr.mxu0 0.0
    %1019 = vmatpush1.msra.mxu0 %v997
    %1020 = vmatprep.subr.mxu0 0.0
    %1021 = vmatpush1.msra.mxu0 %v998
    %1022 = vmatprep.subr.mxu0 0.0
    %1023 = vmatpush1.msra.mxu0 %v999
    %1024 = vmatprep.subr.mxu0 0.0
    %1025 = vmatpush1.msra.mxu0 %v1000
    %1026 = vmatprep.subr.mxu0 0.0
    %1027 = vmatpush1.msra.mxu0 %v1001
    %1028 = vmatprep.subr.mxu0 0.0
    %1029 = vmatpush1.msra.mxu0 %v1002
    %1030 = vmatprep.subr.mxu0 0.0
    %1031 = vmatpush1.msra.mxu0 %v1003
    %1032 = vmatprep.subr.mxu0 0.0
    %1033 = vmatpush1.msra.mxu0 %v1004
    %1034 = vmatprep.subr.mxu0 0.0
    %1035 = vmatpush1.msra.mxu0 %v1005
    %1036 = vmatprep.subr.mxu0 0.0
    %1037 = vmatpush1.msra.mxu0 %v1006
    %1038 = vmatprep.subr.mxu0 0.0
    %1039 = vmatpush1.msra.mxu0 %v1007
    %1040 = vmatprep.subr.mxu0 0.0
    %1041 = vmatpush1.msra.mxu0 0.0
    %1042 = vmatprep.subr.mxu0 0.0
    %1043 = vmatpush1.msra.mxu0 0.0
    %1044 = vmatprep.subr.mxu0 0.0
    %1045 = vmatpush1.msra.mxu0 0.0
    %1046 = vmatprep.subr.mxu0 0.0
    %1047 = vmatpush1.msra.mxu0 0.0
    %1048 = vmatprep.subr.mxu0 0.0
    %1049 = vmatpush1.msra.mxu0 0.0
    %1050 = vmatprep.subr.mxu0 0.0
    %1051 = vmatpush1.msra.mxu0 0.0
    %1052 = vmatprep.subr.mxu0 0.0
    %1053 = vmatpush1.msra.mxu0 0.0
    %1054 = vmatprep.subr.mxu0 0.0
    %1055 = vmatpush1.msra.mxu0 0.0
    %1056 = vmatprep.subr.mxu0 0.0
    %1057 = vmatpush1.msra.mxu0 0.0
    %1058 = vmatprep.subr.mxu0 0.0
    %1059 = vmatpush1.msra.mxu0 0.0
    %1060 = vmatprep.subr.mxu0 0.0
    %1061 = vmatpush1.msra.mxu0 0.0
    %1062 = vmatprep.subr.mxu0 0.0
    %1063 = vmatpush1.msra.mxu0 0.0
    %1064 = vmatprep.subr.mxu0 0.0
    %1065 = vmatpush1.msra.mxu0 0.0
    %1066 = vmatprep.subr.mxu0 0.0
    %1067 = vmatpush1.msra.mxu0 0.0
    %1068 = vmatprep.subr.mxu0 0.0
    %1069 = vmatpush1.msra.mxu0 0.0
    %1070 = vmatprep.subr.mxu0 0.0
    %1071 = vmatpush1.msra.mxu0 0.0
    %1072 = vmatprep.mubr.f32.mxu0 0.0
    %1073 = vmatmul.mubr.f32.gmra.mrb[0].mxu0 %v634
    %v1074 = vpop.f32.mrb[0].mxu0
    %v1075 = vadd.f32 0.0, %v1074
    %v1076 = vpop.f32.mrb[0].mxu0
    %1077 = vdwg.mxu0
    %v1078 = vadd.f32 %v990, %v1075
    %s1079 = scalar_lea.vmem %s5, 640
    %v1080 = vld [vmem:[%s1079] sm:$0xff]
    %v1081 = vld [vmem:[%s1079 + $0x8] sm:$0xff]
    %v1082 = vld [vmem:[%s1079 + $0x10] sm:$0xff]
    %v1083 = vld [vmem:[%s1079 + $0x18] sm:$0xff]
    %v1084 = vld [vmem:[%s1079 + $0x20] sm:$0xff]
    %v1085 = vld [vmem:[%s1079 + $0x28] sm:$0xff]
    %v1086 = vld [vmem:[%s1079 + $0x30] sm:$0xff]
    %v1087 = vld [vmem:[%s1079 + $0x38] sm:$0xff]
    %v1088 = vld [vmem:[%s1079 + $0x40] sm:$0xff]
    %v1089 = vld [vmem:[%s1079 + $0x48] sm:$0xff]
    %v1090 = vld [vmem:[%s1079 + $0x50] sm:$0xff]
    %v1091 = vld [vmem:[%s1079 + $0x58] sm:$0xff]
    %v1092 = vld [vmem:[%s1079 + $0x60] sm:$0xff]
    %v1093 = vld [vmem:[%s1079 + $0x68] sm:$0xff]
    %v1094 = vld [vmem:[%s1079 + $0x70] sm:$0xff]
    %v1095 = vld [vmem:[%s1079 + $0x78] sm:$0xff]
    %v1097 = vrot.slane %v634, 2
    %1099 = vmatprep.subr.mxu0 0.0
    %1100 = vmatpush1.msra.mxu0 %v1080
    %1101 = vmatprep.subr.mxu0 0.0
    %1102 = vmatpush1.msra.mxu0 %v1081
    %1103 = vmatprep.subr.mxu0 0.0
    %1104 = vmatpush1.msra.mxu0 %v1082
    %1105 = vmatprep.subr.mxu0 0.0
    %1106 = vmatpush1.msra.mxu0 %v1083
    %1107 = vmatprep.subr.mxu0 0.0
    %1108 = vmatpush1.msra.mxu0 %v1084
    %1109 = vmatprep.subr.mxu0 0.0
    %1110 = vmatpush1.msra.mxu0 %v1085
    %1111 = vmatprep.subr.mxu0 0.0
    %1112 = vmatpush1.msra.mxu0 %v1086
    %1113 = vmatprep.subr.mxu0 0.0
    %1114 = vmatpush1.msra.mxu0 %v1087
    %1115 = vmatprep.subr.mxu0 0.0
    %1116 = vmatpush1.msra.mxu0 %v1088
    %1117 = vmatprep.subr.mxu0 0.0
    %1118 = vmatpush1.msra.mxu0 %v1089
    %1119 = vmatprep.subr.mxu0 0.0
    %1120 = vmatpush1.msra.mxu0 %v1090
    %1121 = vmatprep.subr.mxu0 0.0
    %1122 = vmatpush1.msra.mxu0 %v1091
    %1123 = vmatprep.subr.mxu0 0.0
    %1124 = vmatpush1.msra.mxu0 %v1092
    %1125 = vmatprep.subr.mxu0 0.0
    %1126 = vmatpush1.msra.mxu0 %v1093
    %1127 = vmatprep.subr.mxu0 0.0
    %1128 = vmatpush1.msra.mxu0 %v1094
    %1129 = vmatprep.subr.mxu0 0.0
    %1130 = vmatpush1.msra.mxu0 %v1095
    %1131 = vmatprep.subr.mxu0 0.0
    %1132 = vmatpush1.msra.mxu0 0.0
    %1133 = vmatprep.subr.mxu0 0.0
    %1134 = vmatpush1.msra.mxu0 0.0
    %1135 = vmatprep.subr.mxu0 0.0
    %1136 = vmatpush1.msra.mxu0 0.0
    %1137 = vmatprep.subr.mxu0 0.0
    %1138 = vmatpush1.msra.mxu0 0.0
    %1139 = vmatprep.subr.mxu0 0.0
    %1140 = vmatpush1.msra.mxu0 0.0
    %1141 = vmatprep.subr.mxu0 0.0
    %1142 = vmatpush1.msra.mxu0 0.0
    %1143 = vmatprep.subr.mxu0 0.0
    %1144 = vmatpush1.msra.mxu0 0.0
    %1145 = vmatprep.subr.mxu0 0.0
    %1146 = vmatpush1.msra.mxu0 0.0
    %1147 = vmatprep.subr.mxu0 0.0
    %1148 = vmatpush1.msra.mxu0 0.0
    %1149 = vmatprep.subr.mxu0 0.0
    %1150 = vmatpush1.msra.mxu0 0.0
    %1151 = vmatprep.subr.mxu0 0.0
    %1152 = vmatpush1.msra.mxu0 0.0
    %1153 = vmatprep.subr.mxu0 0.0
    %1154 = vmatpush1.msra.mxu0 0.0
    %1155 = vmatprep.subr.mxu0 0.0
    %1156 = vmatpush1.msra.mxu0 0.0
    %1157 = vmatprep.subr.mxu0 0.0
    %1158 = vmatpush1.msra.mxu0 0.0
    %1159 = vmatprep.subr.mxu0 0.0
    %1160 = vmatpush1.msra.mxu0 0.0
    %1161 = vmatprep.subr.mxu0 0.0
    %1162 = vmatpush1.msra.mxu0 0.0
    %1163 = vmatprep.mubr.f32.mxu0 0.0
    %1164 = vmatmul.mubr.f32.gmra.mrb[0].mxu0 %v1097
    %v1165 = vpop.f32.mrb[0].mxu0
    %v1166 = vadd.f32 0.0, %v1165
    %v1167 = vpop.f32.mrb[0].mxu0
    %1168 = vdwg.mxu0
    %v1169 = vadd.f32 %v1078, %v1166
    %s1170 = scalar_lea.vmem %s5, 768
    %v1171 = vld [vmem:[%s1170] sm:$0xff]
    %v1172 = vld [vmem:[%s1170 + $0x8] sm:$0xff]
    %v1173 = vld [vmem:[%s1170 + $0x10] sm:$0xff]
    %v1174 = vld [vmem:[%s1170 + $0x18] sm:$0xff]
    %v1175 = vld [vmem:[%s1170 + $0x20] sm:$0xff]
    %v1176 = vld [vmem:[%s1170 + $0x28] sm:$0xff]
    %v1177 = vld [vmem:[%s1170 + $0x30] sm:$0xff]
    %v1178 = vld [vmem:[%s1170 + $0x38] sm:$0xff]
    %v1179 = vld [vmem:[%s1170 + $0x40] sm:$0xff]
    %v1180 = vld [vmem:[%s1170 + $0x48] sm:$0xff]
    %v1181 = vld [vmem:[%s1170 + $0x50] sm:$0xff]
    %v1182 = vld [vmem:[%s1170 + $0x58] sm:$0xff]
    %v1183 = vld [vmem:[%s1170 + $0x60] sm:$0xff]
    %v1184 = vld [vmem:[%s1170 + $0x68] sm:$0xff]
    %v1185 = vld [vmem:[%s1170 + $0x70] sm:$0xff]
    %v1186 = vld [vmem:[%s1170 + $0x78] sm:$0xff]
    %v1187 = vrot.slane %v634, 4
    %1189 = vmatprep.subr.mxu0 0.0
    %1190 = vmatpush1.msra.mxu0 %v1171
    %1191 = vmatprep.subr.mxu0 0.0
    %1192 = vmatpush1.msra.mxu0 %v1172
    %1193 = vmatprep.subr.mxu0 0.0
    %1194 = vmatpush1.msra.mxu0 %v1173
    %1195 = vmatprep.subr.mxu0 0.0
    %1196 = vmatpush1.msra.mxu0 %v1174
    %1197 = vmatprep.subr.mxu0 0.0
    %1198 = vmatpush1.msra.mxu0 %v1175
    %1199 = vmatprep.subr.mxu0 0.0
    %1200 = vmatpush1.msra.mxu0 %v1176
    %1201 = vmatprep.subr.mxu0 0.0
    %1202 = vmatpush1.msra.mxu0 %v1177
    %1203 = vmatprep.subr.mxu0 0.0
    %1204 = vmatpush1.msra.mxu0 %v1178
    %1205 = vmatprep.subr.mxu0 0.0
    %1206 = vmatpush1.msra.mxu0 %v1179
    %1207 = vmatprep.subr.mxu0 0.0
    %1208 = vmatpush1.msra.mxu0 %v1180
    %1209 = vmatprep.subr.mxu0 0.0
    %1210 = vmatpush1.msra.mxu0 %v1181
    %1211 = vmatprep.subr.mxu0 0.0
    %1212 = vmatpush1.msra.mxu0 %v1182
    %1213 = vmatprep.subr.mxu0 0.0
    %1214 = vmatpush1.msra.mxu0 %v1183
    %1215 = vmatprep.subr.mxu0 0.0
    %1216 = vmatpush1.msra.mxu0 %v1184
    %1217 = vmatprep.subr.mxu0 0.0
    %1218 = vmatpush1.msra.mxu0 %v1185
    %1219 = vmatprep.subr.mxu0 0.0
    %1220 = vmatpush1.msra.mxu0 %v1186
    %1221 = vmatprep.subr.mxu0 0.0
    %1222 = vmatpush1.msra.mxu0 0.0
    %1223 = vmatprep.subr.mxu0 0.0
    %1224 = vmatpush1.msra.mxu0 0.0
    %1225 = vmatprep.subr.mxu0 0.0
    %1226 = vmatpush1.msra.mxu0 0.0
    %1227 = vmatprep.subr.mxu0 0.0
    %1228 = vmatpush1.msra.mxu0 0.0
    %1229 = vmatprep.subr.mxu0 0.0
    %1230 = vmatpush1.msra.mxu0 0.0
    %1231 = vmatprep.subr.mxu0 0.0
    %1232 = vmatpush1.msra.mxu0 0.0
    %1233 = vmatprep.subr.mxu0 0.0
    %1234 = vmatpush1.msra.mxu0 0.0
    %1235 = vmatprep.subr.mxu0 0.0
    %1236 = vmatpush1.msra.mxu0 0.0
    %1237 = vmatprep.subr.mxu0 0.0
    %1238 = vmatpush1.msra.mxu0 0.0
    %1239 = vmatprep.subr.mxu0 0.0
    %1240 = vmatpush1.msra.mxu0 0.0
    %1241 = vmatprep.subr.mxu0 0.0
    %1242 = vmatpush1.msra.mxu0 0.0
    %1243 = vmatprep.subr.mxu0 0.0
    %1244 = vmatpush1.msra.mxu0 0.0
    %1245 = vmatprep.subr.mxu0 0.0
    %1246 = vmatpush1.msra.mxu0 0.0
    %1247 = vmatprep.subr.mxu0 0.0
    %1248 = vmatpush1.msra.mxu0 0.0
    %1249 = vmatprep.subr.mxu0 0.0
    %1250 = vmatpush1.msra.mxu0 0.0
    %1251 = vmatprep.subr.mxu0 0.0
    %1252 = vmatpush1.msra.mxu0 0.0
    %1253 = vmatprep.mubr.f32.mxu0 0.0
    %1254 = vmatmul.mubr.f32.gmra.mrb[0].mxu0 %v1187
    %v1255 = vpop.f32.mrb[0].mxu0
    %v1256 = vadd.f32 0.0, %v1255
    %v1257 = vpop.f32.mrb[0].mxu0
    %1258 = vdwg.mxu0
    %v1259 = vadd.f32 %v1169, %v1256
    %s1260 = scalar_lea.vmem %s5, 896
    %v1261 = vld [vmem:[%s1260] sm:$0xff]
    %v1262 = vld [vmem:[%s1260 + $0x8] sm:$0xff]
    %v1263 = vld [vmem:[%s1260 + $0x10] sm:$0xff]
    %v1264 = vld [vmem:[%s1260 + $0x18] sm:$0xff]
    %v1265 = vld [vmem:[%s1260 + $0x20] sm:$0xff]
    %v1266 = vld [vmem:[%s1260 + $0x28] sm:$0xff]
    %v1267 = vld [vmem:[%s1260 + $0x30] sm:$0xff]
    %v1268 = vld [vmem:[%s1260 + $0x38] sm:$0xff]
    %v1269 = vld [vmem:[%s1260 + $0x40] sm:$0xff]
    %v1270 = vld [vmem:[%s1260 + $0x48] sm:$0xff]
    %v1271 = vld [vmem:[%s1260 + $0x50] sm:$0xff]
    %v1272 = vld [vmem:[%s1260 + $0x58] sm:$0xff]
    %v1273 = vld [vmem:[%s1260 + $0x60] sm:$0xff]
    %v1274 = vld [vmem:[%s1260 + $0x68] sm:$0xff]
    %v1275 = vld [vmem:[%s1260 + $0x70] sm:$0xff]
    %v1276 = vld [vmem:[%s1260 + $0x78] sm:$0xff]
    %v1277 = vrot.slane %v634, 6
    %1279 = vmatprep.subr.mxu0 0.0
    %1280 = vmatpush1.msra.mxu0 %v1261
    %1281 = vmatprep.subr.mxu0 0.0
    %1282 = vmatpush1.msra.mxu0 %v1262
    %1283 = vmatprep.subr.mxu0 0.0
    %1284 = vmatpush1.msra.mxu0 %v1263
    %1285 = vmatprep.subr.mxu0 0.0
    %1286 = vmatpush1.msra.mxu0 %v1264
    %1287 = vmatprep.subr.mxu0 0.0
    %1288 = vmatpush1.msra.mxu0 %v1265
    %1289 = vmatprep.subr.mxu0 0.0
    %1290 = vmatpush1.msra.mxu0 %v1266
    %1291 = vmatprep.subr.mxu0 0.0
    %1292 = vmatpush1.msra.mxu0 %v1267
    %1293 = vmatprep.subr.mxu0 0.0
    %1294 = vmatpush1.msra.mxu0 %v1268
    %1295 = vmatprep.subr.mxu0 0.0
    %1296 = vmatpush1.msra.mxu0 %v1269
    %1297 = vmatprep.subr.mxu0 0.0
    %1298 = vmatpush1.msra.mxu0 %v1270
    %1299 = vmatprep.subr.mxu0 0.0
    %1300 = vmatpush1.msra.mxu0 %v1271
    %1301 = vmatprep.subr.mxu0 0.0
    %1302 = vmatpush1.msra.mxu0 %v1272
    %1303 = vmatprep.subr.mxu0 0.0
    %1304 = vmatpush1.msra.mxu0 %v1273
    %1305 = vmatprep.subr.mxu0 0.0
    %1306 = vmatpush1.msra.mxu0 %v1274
    %1307 = vmatprep.subr.mxu0 0.0
    %1308 = vmatpush1.msra.mxu0 %v1275
    %1309 = vmatprep.subr.mxu0 0.0
    %1310 = vmatpush1.msra.mxu0 %v1276
    %1311 = vmatprep.subr.mxu0 0.0
    %1312 = vmatpush1.msra.mxu0 0.0
    %1313 = vmatprep.subr.mxu0 0.0
    %1314 = vmatpush1.msra.mxu0 0.0
    %1315 = vmatprep.subr.mxu0 0.0
    %1316 = vmatpush1.msra.mxu0 0.0
    %1317 = vmatprep.subr.mxu0 0.0
    %1318 = vmatpush1.msra.mxu0 0.0
    %1319 = vmatprep.subr.mxu0 0.0
    %1320 = vmatpush1.msra.mxu0 0.0
    %1321 = vmatprep.subr.mxu0 0.0
    %1322 = vmatpush1.msra.mxu0 0.0
    %1323 = vmatprep.subr.mxu0 0.0
    %1324 = vmatpush1.msra.mxu0 0.0
    %1325 = vmatprep.subr.mxu0 0.0
    %1326 = vmatpush1.msra.mxu0 0.0
    %1327 = vmatprep.subr.mxu0 0.0
    %1328 = vmatpush1.msra.mxu0 0.0
    %1329 = vmatprep.subr.mxu0 0.0
    %1330 = vmatpush1.msra.mxu0 0.0
    %1331 = vmatprep.subr.mxu0 0.0
    %1332 = vmatpush1.msra.mxu0 0.0
    %1333 = vmatprep.subr.mxu0 0.0
    %1334 = vmatpush1.msra.mxu0 0.0
    %1335 = vmatprep.subr.mxu0 0.0
    %1336 = vmatpush1.msra.mxu0 0.0
    %1337 = vmatprep.subr.mxu0 0.0
    %1338 = vmatpush1.msra.mxu0 0.0
    %1339 = vmatprep.subr.mxu0 0.0
    %1340 = vmatpush1.msra.mxu0 0.0
    %1341 = vmatprep.subr.mxu0 0.0
    %1342 = vmatpush1.msra.mxu0 0.0
    %1343 = vmatprep.mubr.f32.mxu0 0.0
    %1344 = vmatmul.mubr.f32.gmra.mrb[0].mxu0 %v1277
    %v1345 = vpop.f32.mrb[0].mxu0
    %v1346 = vadd.f32 0.0, %v1345
    %v1347 = vpop.f32.mrb[0].mxu0
    %1348 = vdwg.mxu0
    %v1349 = vadd.f32 %v1259, %v1346
    %v1350 = vld [vmem:[%s6] sm:$0x1]
    %v1351 = vadd.f32 %v1349, %v1350
    %v1352 = vmax.f32 %v1351, 0.0
    %v1353 = vld [vmem:[%s7] sm:$0xff]
    %v1354 = vld [vmem:[%s7 + $0x8] sm:$0xff]
    %v1355 = vld [vmem:[%s7 + $0x10] sm:$0xff]
    %v1356 = vld [vmem:[%s7 + $0x18] sm:$0xff]
    %v1357 = vld [vmem:[%s8] sm:$0x1]
    %vm1358 = vcmask 261120
    %v1360 = vsel %vm1358, %v1352, 0
    %1362 = vmatprep.subr.mxu0 0.0
    %1363 = vmatpush1.msra.mxu0 %v1353
    %1364 = vmatprep.subr.mxu0 0.0
    %1365 = vmatpush1.msra.mxu0 %v1354
    %1366 = vmatprep.subr.mxu0 0.0
    %1367 = vmatpush1.msra.mxu0 %v1355
    %1368 = vmatprep.subr.mxu0 0.0
    %1369 = vmatpush1.msra.mxu0 %v1356
    %1370 = vmatprep.subr.mxu0 0.0
    %1371 = vmatpush1.msra.mxu0 0.0
    %1372 = vmatprep.subr.mxu0 0.0
    %1373 = vmatpush1.msra.mxu0 0.0
    %1374 = vmatprep.subr.mxu0 0.0
    %1375 = vmatpush1.msra.mxu0 0.0
    %1376 = vmatprep.subr.mxu0 0.0
    %1377 = vmatpush1.msra.mxu0 0.0
    %1378 = vmatprep.subr.mxu0 0.0
    %1379 = vmatpush1.msra.mxu0 0.0
    %1380 = vmatprep.subr.mxu0 0.0
    %1381 = vmatpush1.msra.mxu0 0.0
    %1382 = vmatprep.subr.mxu0 0.0
    %1383 = vmatpush1.msra.mxu0 0.0
    %1384 = vmatprep.subr.mxu0 0.0
    %1385 = vmatpush1.msra.mxu0 0.0
    %1386 = vmatprep.subr.mxu0 0.0
    %1387 = vmatpush1.msra.mxu0 0.0
    %1388 = vmatprep.subr.mxu0 0.0
    %1389 = vmatpush1.msra.mxu0 0.0
    %1390 = vmatprep.subr.mxu0 0.0
    %1391 = vmatpush1.msra.mxu0 0.0
    %1392 = vmatprep.subr.mxu0 0.0
    %1393 = vmatpush1.msra.mxu0 0.0
    %1394 = vmatprep.subr.mxu0 0.0
    %1395 = vmatpush1.msra.mxu0 0.0
    %1396 = vmatprep.subr.mxu0 0.0
    %1397 = vmatpush1.msra.mxu0 0.0
    %1398 = vmatprep.subr.mxu0 0.0
    %1399 = vmatpush1.msra.mxu0 0.0
    %1400 = vmatprep.subr.mxu0 0.0
    %1401 = vmatpush1.msra.mxu0 0.0
    %1402 = vmatprep.subr.mxu0 0.0
    %1403 = vmatpush1.msra.mxu0 0.0
    %1404 = vmatprep.subr.mxu0 0.0
    %1405 = vmatpush1.msra.mxu0 0.0
    %1406 = vmatprep.subr.mxu0 0.0
    %1407 = vmatpush1.msra.mxu0 0.0
    %1408 = vmatprep.subr.mxu0 0.0
    %1409 = vmatpush1.msra.mxu0 0.0
    %1410 = vmatprep.subr.mxu0 0.0
    %1411 = vmatpush1.msra.mxu0 0.0
    %1412 = vmatprep.subr.mxu0 0.0
    %1413 = vmatpush1.msra.mxu0 0.0
    %1414 = vmatprep.subr.mxu0 0.0
    %1415 = vmatpush1.msra.mxu0 0.0
    %1416 = vmatprep.subr.mxu0 0.0
    %1417 = vmatpush1.msra.mxu0 0.0
    %1418 = vmatprep.subr.mxu0 0.0
    %1419 = vmatpush1.msra.mxu0 0.0
    %1420 = vmatprep.subr.mxu0 0.0
    %1421 = vmatpush1.msra.mxu0 0.0
    %1422 = vmatprep.subr.mxu0 0.0
    %1423 = vmatpush1.msra.mxu0 0.0
    %1424 = vmatprep.subr.mxu0 0.0
    %1425 = vmatpush1.msra.mxu0 0.0
    %1426 = vmatprep.mubr.f32.mxu0 0.0
    %1427 = vmatmul.mubr.f32.gmra.mrb[0].mxu0 %v1360
    %v1428 = vpop.f32.mrb[0].mxu0
    %v1429 = vadd.f32 %v1357, %v1428
    %v1430 = vpop.f32.mrb[0].mxu0
    %1431 = vdwg.mxu0
    %vm1432 = vcmask 73728
    %1433 = vst.msk [vmem:[#allocation4] sm:$0x1] %vm1432, %v1429
    %s1434 = scalar_lea.vmem %s0, 16
    %v1435 = vld [vmem:[%s1434] sm:$0xff]
    %v1436 = vld [vmem:[%s1434 + $0x8] sm:$0xff]
    %s1437 = scalar_lea.vmem [#allocation2], 24
    %1438 = vst.msk [vmem:[%s1437 + $0x1] sm:$0xff] %vm33, %v1435
    %1439 = vst.msk [vmem:[%s1437 + $0x9] sm:$0xff] %vm33, %v1436
    %v1440 = vld [vmem:[%s1437] sm:$0xff]
    %v1441 = vld [vmem:[%s1437 + $0x8] sm:$0xff]
    %v1442 = vld [vmem:[%s1] sm:$0xff]
    %v1443 = vld [vmem:[%s1 + $0x8] sm:$0xff]
    %v1444 = vld [vmem:[%s1 + $0x10] sm:$0xff]
    %v1445 = vld [vmem:[%s1 + $0x18] sm:$0xff]
    %v1446 = vld [vmem:[%s1 + $0x20] sm:$0xff]
    %v1447 = vld [vmem:[%s1 + $0x28] sm:$0xff]
    %v1448 = vld [vmem:[%s1 + $0x30] sm:$0xff]
    %v1449 = vld [vmem:[%s1 + $0x38] sm:$0xff]
    %v1450 = vld [vmem:[%s1437 + $0x1] sm:$0xff]
    %v1451 = vld [vmem:[%s1437 + $0x9] sm:$0xff]
    %v1452 = vld [vmem:[%s63] sm:$0xff]
    %v1453 = vld [vmem:[%s63 + $0x8] sm:$0xff]
    %v1454 = vld [vmem:[%s63 + $0x10] sm:$0xff]
    %v1455 = vld [vmem:[%s63 + $0x18] sm:$0xff]
    %v1456 = vld [vmem:[%s63 + $0x20] sm:$0xff]
    %v1457 = vld [vmem:[%s63 + $0x28] sm:$0xff]
    %v1458 = vld [vmem:[%s63 + $0x30] sm:$0xff]
    %v1459 = vld [vmem:[%s63 + $0x38] sm:$0xff]
    %v1461 = vsel %vm33, %v1450, 0
    %v1464 = vsel %vm33, %v1451, 0
    %1466 = vmatprep.subr.mxu0 0.0
    %1467 = vmatpush1.msra.mxu0 %v1452
    %1468 = vmatprep.subr.mxu0 0.0
    %1469 = vmatpush1.msra.mxu0 %v1453
    %1470 = vmatprep.subr.mxu0 0.0
    %1471 = vmatpush1.msra.mxu0 %v1454
    %1472 = vmatprep.subr.mxu0 0.0
    %1473 = vmatpush1.msra.mxu0 %v1455
    %1474 = vmatprep.subr.mxu0 0.0
    %1475 = vmatpush1.msra.mxu0 %v1456
    %1476 = vmatprep.subr.mxu0 0.0
    %1477 = vmatpush1.msra.mxu0 %v1457
    %1478 = vmatprep.subr.mxu0 0.0
    %1479 = vmatpush1.msra.mxu0 %v1458
    %1480 = vmatprep.subr.mxu0 0.0
    %1481 = vmatpush1.msra.mxu0 %v1459
    %1482 = vmatprep.subr.mxu0 0.0
    %1483 = vmatpush1.msra.mxu0 0.0
    %1484 = vmatprep.subr.mxu0 0.0
    %1485 = vmatpush1.msra.mxu0 0.0
    %1486 = vmatprep.subr.mxu0 0.0
    %1487 = vmatpush1.msra.mxu0 0.0
    %1488 = vmatprep.subr.mxu0 0.0
    %1489 = vmatpush1.msra.mxu0 0.0
    %1490 = vmatprep.subr.mxu0 0.0
    %1491 = vmatpush1.msra.mxu0 0.0
    %1492 = vmatprep.subr.mxu0 0.0
    %1493 = vmatpush1.msra.mxu0 0.0
    %1494 = vmatprep.subr.mxu0 0.0
    %1495 = vmatpush1.msra.mxu0 0.0
    %1496 = vmatprep.subr.mxu0 0.0
    %1497 = vmatpush1.msra.mxu0 0.0
    %1498 = vmatprep.subr.mxu0 0.0
    %1499 = vmatpush1.msra.mxu0 0.0
    %1500 = vmatprep.subr.mxu0 0.0
    %1501 = vmatpush1.msra.mxu0 0.0
    %1502 = vmatprep.subr.mxu0 0.0
    %1503 = vmatpush1.msra.mxu0 0.0
    %1504 = vmatprep.subr.mxu0 0.0
    %1505 = vmatpush1.msra.mxu0 0.0
    %1506 = vmatprep.subr.mxu0 0.0
    %1507 = vmatpush1.msra.mxu0 0.0
    %1508 = vmatprep.subr.mxu0 0.0
    %1509 = vmatpush1.msra.mxu0 0.0
    %1510 = vmatprep.subr.mxu0 0.0
    %1511 = vmatpush1.msra.mxu0 0.0
    %1512 = vmatprep.subr.mxu0 0.0
    %1513 = vmatpush1.msra.mxu0 0.0
    %1514 = vmatprep.subr.mxu0 0.0
    %1515 = vmatpush1.msra.mxu0 0.0
    %1516 = vmatprep.subr.mxu0 0.0
    %1517 = vmatpush1.msra.mxu0 0.0
    %1518 = vmatprep.subr.mxu0 0.0
    %1519 = vmatpush1.msra.mxu0 0.0
    %1520 = vmatprep.subr.mxu0 0.0
    %1521 = vmatpush1.msra.mxu0 0.0
    %1522 = vmatprep.subr.mxu0 0.0
    %1523 = vmatpush1.msra.mxu0 0.0
    %1524 = vmatprep.subr.mxu0 0.0
    %1525 = vmatpush1.msra.mxu0 0.0
    %1526 = vmatprep.subr.mxu0 0.0
    %1527 = vmatpush1.msra.mxu0 0.0
    %1528 = vmatprep.subr.mxu0 0.0
    %1529 = vmatpush1.msra.mxu0 0.0
    %1530 = vmatprep.mubr.f32.mxu0 0.0
    %1531 = vmatmul.mubr.f32.gmra.mrb[0].mxu0 %v1461
    %v1532 = vpop.f32.mrb[0].mxu0
    %v1533 = vadd.f32 0.0, %v1532
    %v1534 = vpop.f32.mrb[0].mxu0
    %1535 = vmatprep.mubr.f32.mxu0 0.0
    %1536 = vmatmul.mubr.f32.gmra.mrb[0].mxu0 %v1464
    %v1537 = vpop.f32.mrb[0].mxu0
    %v1538 = vadd.f32 0.0, %v1537
    %v1539 = vpop.f32.mrb[0].mxu0
    %1540 = vdwg.mxu0
    %v1542 = vsel %vm33, %v1440, 0
    %v1545 = vsel %vm33, %v1441, 0
    %1547 = vmatprep.subr.mxu0 0.0
    %1548 = vmatpush1.msra.mxu0 %v1442
    %1549 = vmatprep.subr.mxu0 0.0
    %1550 = vmatpush1.msra.mxu0 %v1443
    %1551 = vmatprep.subr.mxu0 0.0
    %1552 = vmatpush1.msra.mxu0 %v1444
    %1553 = vmatprep.subr.mxu0 0.0
    %1554 = vmatpush1.msra.mxu0 %v1445
    %1555 = vmatprep.subr.mxu0 0.0
    %1556 = vmatpush1.msra.mxu0 %v1446
    %1557 = vmatprep.subr.mxu0 0.0
    %1558 = vmatpush1.msra.mxu0 %v1447
    %1559 = vmatprep.subr.mxu0 0.0
    %1560 = vmatpush1.msra.mxu0 %v1448
    %1561 = vmatprep.subr.mxu0 0.0
    %1562 = vmatpush1.msra.mxu0 %v1449
    %1563 = vmatprep.subr.mxu0 0.0
    %1564 = vmatpush1.msra.mxu0 0.0
    %1565 = vmatprep.subr.mxu0 0.0
    %1566 = vmatpush1.msra.mxu0 0.0
    %1567 = vmatprep.subr.mxu0 0.0
    %1568 = vmatpush1.msra.mxu0 0.0
    %1569 = vmatprep.subr.mxu0 0.0
    %1570 = vmatpush1.msra.mxu0 0.0
    %1571 = vmatprep.subr.mxu0 0.0
    %1572 = vmatpush1.msra.mxu0 0.0
    %1573 = vmatprep.subr.mxu0 0.0
    %1574 = vmatpush1.msra.mxu0 0.0
    %1575 = vmatprep.subr.mxu0 0.0
    %1576 = vmatpush1.msra.mxu0 0.0
    %1577 = vmatprep.subr.mxu0 0.0
    %1578 = vmatpush1.msra.mxu0 0.0
    %1579 = vmatprep.subr.mxu0 0.0
    %1580 = vmatpush1.msra.mxu0 0.0
    %1581 = vmatprep.subr.mxu0 0.0
    %1582 = vmatpush1.msra.mxu0 0.0
    %1583 = vmatprep.subr.mxu0 0.0
    %1584 = vmatpush1.msra.mxu0 0.0
    %1585 = vmatprep.subr.mxu0 0.0
    %1586 = vmatpush1.msra.mxu0 0.0
    %1587 = vmatprep.subr.mxu0 0.0
    %1588 = vmatpush1.msra.mxu0 0.0
    %1589 = vmatprep.subr.mxu0 0.0
    %1590 = vmatpush1.msra.mxu0 0.0
    %1591 = vmatprep.subr.mxu0 0.0
    %1592 = vmatpush1.msra.mxu0 0.0
    %1593 = vmatprep.subr.mxu0 0.0
    %1594 = vmatpush1.msra.mxu0 0.0
    %1595 = vmatprep.subr.mxu0 0.0
    %1596 = vmatpush1.msra.mxu0 0.0
    %1597 = vmatprep.subr.mxu0 0.0
    %1598 = vmatpush1.msra.mxu0 0.0
    %1599 = vmatprep.subr.mxu0 0.0
    %1600 = vmatpush1.msra.mxu0 0.0
    %1601 = vmatprep.subr.mxu0 0.0
    %1602 = vmatpush1.msra.mxu0 0.0
    %1603 = vmatprep.subr.mxu0 0.0
    %1604 = vmatpush1.msra.mxu0 0.0
    %1605 = vmatprep.subr.mxu0 0.0
    %1606 = vmatpush1.msra.mxu0 0.0
    %1607 = vmatprep.subr.mxu0 0.0
    %1608 = vmatpush1.msra.mxu0 0.0
    %1609 = vmatprep.subr.mxu0 0.0
    %1610 = vmatpush1.msra.mxu0 0.0
    %1611 = vmatprep.mubr.f32.mxu0 0.0
    %1612 = vmatmul.mubr.f32.gmra.mrb[0].mxu0 %v1542
    %v1613 = vpop.f32.mrb[0].mxu0
    %v1614 = vadd.f32 %v1533, %v1613
    %v1615 = vpop.f32.mrb[0].mxu0
    %1616 = vmatprep.mubr.f32.mxu0 0.0
    %1617 = vmatmul.mubr.f32.gmra.mrb[0].mxu0 %v1545
    %v1618 = vpop.f32.mrb[0].mxu0
    %v1619 = vadd.f32 %v1538, %v1618
    %v1620 = vpop.f32.mrb[0].mxu0
    %1621 = vdwg.mxu0
    %v1622 = vld [vmem:[%s1437 + $0x2] sm:$0xff]
    %v1623 = vld [vmem:[%s1437 + $0xa] sm:$0xff]
    %v1624 = vld [vmem:[%s236] sm:$0xff]
    %v1625 = vld [vmem:[%s236 + $0x8] sm:$0xff]
    %v1626 = vld [vmem:[%s236 + $0x10] sm:$0xff]
    %v1627 = vld [vmem:[%s236 + $0x18] sm:$0xff]
    %v1628 = vld [vmem:[%s236 + $0x20] sm:$0xff]
    %v1629 = vld [vmem:[%s236 + $0x28] sm:$0xff]
    %v1630 = vld [vmem:[%s236 + $0x30] sm:$0xff]
    %v1631 = vld [vmem:[%s236 + $0x38] sm:$0xff]
    %v1633 = vsel %vm33, %v1622, 0
    %v1636 = vsel %vm33, %v1623, 0
    %1638 = vmatprep.subr.mxu0 0.0
    %1639 = vmatpush1.msra.mxu0 %v1624
    %1640 = vmatprep.subr.mxu0 0.0
    %1641 = vmatpush1.msra.mxu0 %v1625
    %1642 = vmatprep.subr.mxu0 0.0
    %1643 = vmatpush1.msra.mxu0 %v1626
    %1644 = vmatprep.subr.mxu0 0.0
    %1645 = vmatpush1.msra.mxu0 %v1627
    %1646 = vmatprep.subr.mxu0 0.0
    %1647 = vmatpush1.msra.mxu0 %v1628
    %1648 = vmatprep.subr.mxu0 0.0
    %1649 = vmatpush1.msra.mxu0 %v1629
    %1650 = vmatprep.subr.mxu0 0.0
    %1651 = vmatpush1.msra.mxu0 %v1630
    %1652 = vmatprep.subr.mxu0 0.0
    %1653 = vmatpush1.msra.mxu0 %v1631
    %1654 = vmatprep.subr.mxu0 0.0
    %1655 = vmatpush1.msra.mxu0 0.0
    %1656 = vmatprep.subr.mxu0 0.0
    %1657 = vmatpush1.msra.mxu0 0.0
    %1658 = vmatprep.subr.mxu0 0.0
    %1659 = vmatpush1.msra.mxu0 0.0
    %1660 = vmatprep.subr.mxu0 0.0
    %1661 = vmatpush1.msra.mxu0 0.0
    %1662 = vmatprep.subr.mxu0 0.0
    %1663 = vmatpush1.msra.mxu0 0.0
    %1664 = vmatprep.subr.mxu0 0.0
    %1665 = vmatpush1.msra.mxu0 0.0
    %1666 = vmatprep.subr.mxu0 0.0
    %1667 = vmatpush1.msra.mxu0 0.0
    %1668 = vmatprep.subr.mxu0 0.0
    %1669 = vmatpush1.msra.mxu0 0.0
    %1670 = vmatprep.subr.mxu0 0.0
    %1671 = vmatpush1.msra.mxu0 0.0
    %1672 = vmatprep.subr.mxu0 0.0
    %1673 = vmatpush1.msra.mxu0 0.0
    %1674 = vmatprep.subr.mxu0 0.0
    %1675 = vmatpush1.msra.mxu0 0.0
    %1676 = vmatprep.subr.mxu0 0.0
    %1677 = vmatpush1.msra.mxu0 0.0
    %1678 = vmatprep.subr.mxu0 0.0
    %1679 = vmatpush1.msra.mxu0 0.0
    %1680 = vmatprep.subr.mxu0 0.0
    %1681 = vmatpush1.msra.mxu0 0.0
    %1682 = vmatprep.subr.mxu0 0.0
    %1683 = vmatpush1.msra.mxu0 0.0
    %1684 = vmatprep.subr.mxu0 0.0
    %1685 = vmatpush1.msra.mxu0 0.0
    %1686 = vmatprep.subr.mxu0 0.0
    %1687 = vmatpush1.msra.mxu0 0.0
    %1688 = vmatprep.subr.mxu0 0.0
    %1689 = vmatpush1.msra.mxu0 0.0
    %1690 = vmatprep.subr.mxu0 0.0
    %1691 = vmatpush1.msra.mxu0 0.0
    %1692 = vmatprep.subr.mxu0 0.0
    %1693 = vmatpush1.msra.mxu0 0.0
    %1694 = vmatprep.subr.mxu0 0.0
    %1695 = vmatpush1.msra.mxu0 0.0
    %1696 = vmatprep.subr.mxu0 0.0
    %1697 = vmatpush1.msra.mxu0 0.0
    %1698 = vmatprep.subr.mxu0 0.0
    %1699 = vmatpush1.msra.mxu0 0.0
    %1700 = vmatprep.subr.mxu0 0.0
    %1701 = vmatpush1.msra.mxu0 0.0
    %1702 = vmatprep.mubr.f32.mxu0 0.0
    %1703 = vmatmul.mubr.f32.gmra.mrb[0].mxu0 %v1633
    %v1704 = vpop.f32.mrb[0].mxu0
    %v1705 = vadd.f32 0.0, %v1704
    %v1706 = vpop.f32.mrb[0].mxu0
    %1707 = vmatprep.mubr.f32.mxu0 0.0
    %1708 = vmatmul.mubr.f32.gmra.mrb[0].mxu0 %v1636
    %v1709 = vpop.f32.mrb[0].mxu0
    %v1710 = vadd.f32 0.0, %v1709
    %v1711 = vpop.f32.mrb[0].mxu0
    %1712 = vdwg.mxu0
    %v1713 = vadd.f32 %v1614, %v1705
    %v1714 = vadd.f32 %v1619, %v1710
    %v1715 = vld [vmem:[%s2] sm:$0x1]
    %v1717 = vlaneseq
    %v1718 = vshrl.u32 %v1717, 7
    %v1719 = vsub.s32 0, %v1718
    %v1720 = vrot.slane %v1715, %v1719
    %v1722 = vadd.f32 %v1713, %v1720
    %v1723 = vadd.f32 %v1714, %v1720
    %v1724 = vmax.f32 %v1722, 0.0
    %v1725 = vmax.f32 %v1723, 0.0
    %s1726 = scalar_lea.vmem [#allocation3], 24
    %1727 = vst [vmem:[%s1726 + $0x1] sm:$0xff] %v1724
    %1728 = vst [vmem:[%s1726 + $0x9] sm:$0xff] %v1725
    %v1729 = vld [vmem:[%s1726] sm:$0xff]
    %v1730 = vld [vmem:[%s1726 + $0x8] sm:$0xff]
    %v1731 = vld [vmem:[%s3] sm:$0xff]
    %v1732 = vld [vmem:[%s3 + $0x8] sm:$0xff]
    %v1733 = vld [vmem:[%s3 + $0x10] sm:$0xff]
    %v1734 = vld [vmem:[%s3 + $0x18] sm:$0xff]
    %v1735 = vld [vmem:[%s3 + $0x20] sm:$0xff]
    %v1736 = vld [vmem:[%s3 + $0x28] sm:$0xff]
    %v1737 = vld [vmem:[%s3 + $0x30] sm:$0xff]
    %v1738 = vld [vmem:[%s3 + $0x38] sm:$0xff]
    %v1739 = vld [vmem:[%s3 + $0x40] sm:$0xff]
    %v1740 = vld [vmem:[%s3 + $0x48] sm:$0xff]
    %v1741 = vld [vmem:[%s3 + $0x50] sm:$0xff]
    %v1742 = vld [vmem:[%s3 + $0x58] sm:$0xff]
    %v1743 = vld [vmem:[%s3 + $0x60] sm:$0xff]
    %v1744 = vld [vmem:[%s3 + $0x68] sm:$0xff]
    %v1745 = vld [vmem:[%s3 + $0x70] sm:$0xff]
    %v1746 = vld [vmem:[%s3 + $0x78] sm:$0xff]
    %v1747 = vld [vmem:[%s1726 + $0x1] sm:$0xff]
    %v1748 = vld [vmem:[%s1726 + $0x9] sm:$0xff]
    %v1749 = vld [vmem:[%s361] sm:$0xff]
    %v1750 = vld [vmem:[%s361 + $0x8] sm:$0xff]
    %v1751 = vld [vmem:[%s361 + $0x10] sm:$0xff]
    %v1752 = vld [vmem:[%s361 + $0x18] sm:$0xff]
    %v1753 = vld [vmem:[%s361 + $0x20] sm:$0xff]
    %v1754 = vld [vmem:[%s361 + $0x28] sm:$0xff]
    %v1755 = vld [vmem:[%s361 + $0x30] sm:$0xff]
    %v1756 = vld [vmem:[%s361 + $0x38] sm:$0xff]
    %v1757 = vld [vmem:[%s361 + $0x40] sm:$0xff]
    %v1758 = vld [vmem:[%s361 + $0x48] sm:$0xff]
    %v1759 = vld [vmem:[%s361 + $0x50] sm:$0xff]
    %v1760 = vld [vmem:[%s361 + $0x58] sm:$0xff]
    %v1761 = vld [vmem:[%s361 + $0x60] sm:$0xff]
    %v1762 = vld [vmem:[%s361 + $0x68] sm:$0xff]
    %v1763 = vld [vmem:[%s361 + $0x70] sm:$0xff]
    %v1764 = vld [vmem:[%s361 + $0x78] sm:$0xff]
    %1765 = vmatprep.subr.mxu0 0.0
    %1766 = vmatpush1.msra.mxu0 %v1749
    %1767 = vmatprep.subr.mxu0 0.0
    %1768 = vmatpush1.msra.mxu0 %v1750
    %1769 = vmatprep.subr.mxu0 0.0
    %1770 = vmatpush1.msra.mxu0 %v1751
    %1771 = vmatprep.subr.mxu0 0.0
    %1772 = vmatpush1.msra.mxu0 %v1752
    %1773 = vmatprep.subr.mxu0 0.0
    %1774 = vmatpush1.msra.mxu0 %v1753
    %1775 = vmatprep.subr.mxu0 0.0
    %1776 = vmatpush1.msra.mxu0 %v1754
    %1777 = vmatprep.subr.mxu0 0.0
    %1778 = vmatpush1.msra.mxu0 %v1755
    %1779 = vmatprep.subr.mxu0 0.0
    %1780 = vmatpush1.msra.mxu0 %v1756
    %1781 = vmatprep.subr.mxu0 0.0
    %1782 = vmatpush1.msra.mxu0 %v1757
    %1783 = vmatprep.subr.mxu0 0.0
    %1784 = vmatpush1.msra.mxu0 %v1758
    %1785 = vmatprep.subr.mxu0 0.0
    %1786 = vmatpush1.msra.mxu0 %v1759
    %1787 = vmatprep.subr.mxu0 0.0
    %1788 = vmatpush1.msra.mxu0 %v1760
    %1789 = vmatprep.subr.mxu0 0.0
    %1790 = vmatpush1.msra.mxu0 %v1761
    %1791 = vmatprep.subr.mxu0 0.0
    %1792 = vmatpush1.msra.mxu0 %v1762
    %1793 = vmatprep.subr.mxu0 0.0
    %1794 = vmatpush1.msra.mxu0 %v1763
    %1795 = vmatprep.subr.mxu0 0.0
    %1796 = vmatpush1.msra.mxu0 %v1764
    %1797 = vmatprep.subr.mxu0 0.0
    %1798 = vmatpush1.msra.mxu0 0.0
    %1799 = vmatprep.subr.mxu0 0.0
    %1800 = vmatpush1.msra.mxu0 0.0
    %1801 = vmatprep.subr.mxu0 0.0
    %1802 = vmatpush1.msra.mxu0 0.0
    %1803 = vmatprep.subr.mxu0 0.0
    %1804 = vmatpush1.msra.mxu0 0.0
    %1805 = vmatprep.subr.mxu0 0.0
    %1806 = vmatpush1.msra.mxu0 0.0
    %1807 = vmatprep.subr.mxu0 0.0
    %1808 = vmatpush1.msra.mxu0 0.0
    %1809 = vmatprep.subr.mxu0 0.0
    %1810 = vmatpush1.msra.mxu0 0.0
    %1811 = vmatprep.subr.mxu0 0.0
    %1812 = vmatpush1.msra.mxu0 0.0
    %1813 = vmatprep.subr.mxu0 0.0
    %1814 = vmatpush1.msra.mxu0 0.0
    %1815 = vmatprep.subr.mxu0 0.0
    %1816 = vmatpush1.msra.mxu0 0.0
    %1817 = vmatprep.subr.mxu0 0.0
    %1818 = vmatpush1.msra.mxu0 0.0
    %1819 = vmatprep.subr.mxu0 0.0
    %1820 = vmatpush1.msra.mxu0 0.0
    %1821 = vmatprep.subr.mxu0 0.0
    %1822 = vmatpush1.msra.mxu0 0.0
    %1823 = vmatprep.subr.mxu0 0.0
    %1824 = vmatpush1.msra.mxu0 0.0
    %1825 = vmatprep.subr.mxu0 0.0
    %1826 = vmatpush1.msra.mxu0 0.0
    %1827 = vmatprep.subr.mxu0 0.0
    %1828 = vmatpush1.msra.mxu0 0.0
    %1829 = vmatprep.mubr.f32.mxu0 0.0
    %1830 = vmatmul.mubr.f32.gmra.mrb[0].mxu0 %v1747
    %v1831 = vpop.f32.mrb[0].mxu0
    %v1832 = vadd.f32 0.0, %v1831
    %v1833 = vpop.f32.mrb[0].mxu0
    %1834 = vmatprep.mubr.f32.mxu0 0.0
    %1835 = vmatmul.mubr.f32.gmra.mrb[0].mxu0 %v1748
    %v1836 = vpop.f32.mrb[0].mxu0
    %v1837 = vadd.f32 0.0, %v1836
    %v1838 = vpop.f32.mrb[0].mxu0
    %1839 = vdwg.mxu0
    %1840 = vmatprep.subr.mxu0 0.0
    %1841 = vmatpush1.msra.mxu0 %v1731
    %1842 = vmatprep.subr.mxu0 0.0
    %1843 = vmatpush1.msra.mxu0 %v1732
    %1844 = vmatprep.subr.mxu0 0.0
    %1845 = vmatpush1.msra.mxu0 %v1733
    %1846 = vmatprep.subr.mxu0 0.0
    %1847 = vmatpush1.msra.mxu0 %v1734
    %1848 = vmatprep.subr.mxu0 0.0
    %1849 = vmatpush1.msra.mxu0 %v1735
    %1850 = vmatprep.subr.mxu0 0.0
    %1851 = vmatpush1.msra.mxu0 %v1736
    %1852 = vmatprep.subr.mxu0 0.0
    %1853 = vmatpush1.msra.mxu0 %v1737
    %1854 = vmatprep.subr.mxu0 0.0
    %1855 = vmatpush1.msra.mxu0 %v1738
    %1856 = vmatprep.subr.mxu0 0.0
    %1857 = vmatpush1.msra.mxu0 %v1739
    %1858 = vmatprep.subr.mxu0 0.0
    %1859 = vmatpush1.msra.mxu0 %v1740
    %1860 = vmatprep.subr.mxu0 0.0
    %1861 = vmatpush1.msra.mxu0 %v1741
    %1862 = vmatprep.subr.mxu0 0.0
    %1863 = vmatpush1.msra.mxu0 %v1742
    %1864 = vmatprep.subr.mxu0 0.0
    %1865 = vmatpush1.msra.mxu0 %v1743
    %1866 = vmatprep.subr.mxu0 0.0
    %1867 = vmatpush1.msra.mxu0 %v1744
    %1868 = vmatprep.subr.mxu0 0.0
    %1869 = vmatpush1.msra.mxu0 %v1745
    %1870 = vmatprep.subr.mxu0 0.0
    %1871 = vmatpush1.msra.mxu0 %v1746
    %1872 = vmatprep.subr.mxu0 0.0
    %1873 = vmatpush1.msra.mxu0 0.0
    %1874 = vmatprep.subr.mxu0 0.0
    %1875 = vmatpush1.msra.mxu0 0.0
    %1876 = vmatprep.subr.mxu0 0.0
    %1877 = vmatpush1.msra.mxu0 0.0
    %1878 = vmatprep.subr.mxu0 0.0
    %1879 = vmatpush1.msra.mxu0 0.0
    %1880 = vmatprep.subr.mxu0 0.0
    %1881 = vmatpush1.msra.mxu0 0.0
    %1882 = vmatprep.subr.mxu0 0.0
    %1883 = vmatpush1.msra.mxu0 0.0
    %1884 = vmatprep.subr.mxu0 0.0
    %1885 = vmatpush1.msra.mxu0 0.0
    %1886 = vmatprep.subr.mxu0 0.0
    %1887 = vmatpush1.msra.mxu0 0.0
    %1888 = vmatprep.subr.mxu0 0.0
    %1889 = vmatpush1.msra.mxu0 0.0
    %1890 = vmatprep.subr.mxu0 0.0
    %1891 = vmatpush1.msra.mxu0 0.0
    %1892 = vmatprep.subr.mxu0 0.0
    %1893 = vmatpush1.msra.mxu0 0.0
    %1894 = vmatprep.subr.mxu0 0.0
    %1895 = vmatpush1.msra.mxu0 0.0
    %1896 = vmatprep.subr.mxu0 0.0
    %1897 = vmatpush1.msra.mxu0 0.0
    %1898 = vmatprep.subr.mxu0 0.0
    %1899 = vmatpush1.msra.mxu0 0.0
    %1900 = vmatprep.subr.mxu0 0.0
    %1901 = vmatpush1.msra.mxu0 0.0
    %1902 = vmatprep.subr.mxu0 0.0
    %1903 = vmatpush1.msra.mxu0 0.0
    %1904 = vmatprep.mubr.f32.mxu0 0.0
    %1905 = vmatmul.mubr.f32.gmra.mrb[0].mxu0 %v1729
    %v1906 = vpop.f32.mrb[0].mxu0
    %v1907 = vadd.f32 %v1832, %v1906
    %v1908 = vpop.f32.mrb[0].mxu0
    %1909 = vmatprep.mubr.f32.mxu0 0.0
    %1910 = vmatmul.mubr.f32.gmra.mrb[0].mxu0 %v1730
    %v1911 = vpop.f32.mrb[0].mxu0
    %v1912 = vadd.f32 %v1837, %v1911
    %v1913 = vpop.f32.mrb[0].mxu0
    %1914 = vdwg.mxu0
    %v1915 = vld [vmem:[%s1726 + $0x2] sm:$0xff]
    %v1916 = vld [vmem:[%s1726 + $0xa] sm:$0xff]
    %v1917 = vld [vmem:[%s530] sm:$0xff]
    %v1918 = vld [vmem:[%s530 + $0x8] sm:$0xff]
    %v1919 = vld [vmem:[%s530 + $0x10] sm:$0xff]
    %v1920 = vld [vmem:[%s530 + $0x18] sm:$0xff]
    %v1921 = vld [vmem:[%s530 + $0x20] sm:$0xff]
    %v1922 = vld [vmem:[%s530 + $0x28] sm:$0xff]
    %v1923 = vld [vmem:[%s530 + $0x30] sm:$0xff]
    %v1924 = vld [vmem:[%s530 + $0x38] sm:$0xff]
    %v1925 = vld [vmem:[%s530 + $0x40] sm:$0xff]
    %v1926 = vld [vmem:[%s530 + $0x48] sm:$0xff]
    %v1927 = vld [vmem:[%s530 + $0x50] sm:$0xff]
    %v1928 = vld [vmem:[%s530 + $0x58] sm:$0xff]
    %v1929 = vld [vmem:[%s530 + $0x60] sm:$0xff]
    %v1930 = vld [vmem:[%s530 + $0x68] sm:$0xff]
    %v1931 = vld [vmem:[%s530 + $0x70] sm:$0xff]
    %v1932 = vld [vmem:[%s530 + $0x78] sm:$0xff]
    %1933 = vmatprep.subr.mxu0 0.0
    %1934 = vmatpush1.msra.mxu0 %v1917
    %1935 = vmatprep.subr.mxu0 0.0
    %1936 = vmatpush1.msra.mxu0 %v1918
    %1937 = vmatprep.subr.mxu0 0.0
    %1938 = vmatpush1.msra.mxu0 %v1919
    %1939 = vmatprep.subr.mxu0 0.0
    %1940 = vmatpush1.msra.mxu0 %v1920
    %1941 = vmatprep.subr.mxu0 0.0
    %1942 = vmatpush1.msra.mxu0 %v1921
    %1943 = vmatprep.subr.mxu0 0.0
    %1944 = vmatpush1.msra.mxu0 %v1922
    %1945 = vmatprep.subr.mxu0 0.0
    %1946 = vmatpush1.msra.mxu0 %v1923
    %1947 = vmatprep.subr.mxu0 0.0
    %1948 = vmatpush1.msra.mxu0 %v1924
    %1949 = vmatprep.subr.mxu0 0.0
    %1950 = vmatpush1.msra.mxu0 %v1925
    %1951 = vmatprep.subr.mxu0 0.0
    %1952 = vmatpush1.msra.mxu0 %v1926
    %1953 = vmatprep.subr.mxu0 0.0
    %1954 = vmatpush1.msra.mxu0 %v1927
    %1955 = vmatprep.subr.mxu0 0.0
    %1956 = vmatpush1.msra.mxu0 %v1928
    %1957 = vmatprep.subr.mxu0 0.0
    %1958 = vmatpush1.msra.mxu0 %v1929
    %1959 = vmatprep.subr.mxu0 0.0
    %1960 = vmatpush1.msra.mxu0 %v1930
    %1961 = vmatprep.subr.mxu0 0.0
    %1962 = vmatpush1.msra.mxu0 %v1931
    %1963 = vmatprep.subr.mxu0 0.0
    %1964 = vmatpush1.msra.mxu0 %v1932
    %1965 = vmatprep.subr.mxu0 0.0
    %1966 = vmatpush1.msra.mxu0 0.0
    %1967 = vmatprep.subr.mxu0 0.0
    %1968 = vmatpush1.msra.mxu0 0.0
    %1969 = vmatprep.subr.mxu0 0.0
    %1970 = vmatpush1.msra.mxu0 0.0
    %1971 = vmatprep.subr.mxu0 0.0
    %1972 = vmatpush1.msra.mxu0 0.0
    %1973 = vmatprep.subr.mxu0 0.0
    %1974 = vmatpush1.msra.mxu0 0.0
    %1975 = vmatprep.subr.mxu0 0.0
    %1976 = vmatpush1.msra.mxu0 0.0
    %1977 = vmatprep.subr.mxu0 0.0
    %1978 = vmatpush1.msra.mxu0 0.0
    %1979 = vmatprep.subr.mxu0 0.0
    %1980 = vmatpush1.msra.mxu0 0.0
    %1981 = vmatprep.subr.mxu0 0.0
    %1982 = vmatpush1.msra.mxu0 0.0
    %1983 = vmatprep.subr.mxu0 0.0
    %1984 = vmatpush1.msra.mxu0 0.0
    %1985 = vmatprep.subr.mxu0 0.0
    %1986 = vmatpush1.msra.mxu0 0.0
    %1987 = vmatprep.subr.mxu0 0.0
    %1988 = vmatpush1.msra.mxu0 0.0
    %1989 = vmatprep.subr.mxu0 0.0
    %1990 = vmatpush1.msra.mxu0 0.0
    %1991 = vmatprep.subr.mxu0 0.0
    %1992 = vmatpush1.msra.mxu0 0.0
    %1993 = vmatprep.subr.mxu0 0.0
    %1994 = vmatpush1.msra.mxu0 0.0
    %1995 = vmatprep.subr.mxu0 0.0
    %1996 = vmatpush1.msra.mxu0 0.0
    %1997 = vmatprep.mubr.f32.mxu0 0.0
    %1998 = vmatmul.mubr.f32.gmra.mrb[0].mxu0 %v1915
    %v1999 = vpop.f32.mrb[0].mxu0
    %v2000 = vadd.f32 0.0, %v1999
    %v2001 = vpop.f32.mrb[0].mxu0
    %2002 = vmatprep.mubr.f32.mxu0 0.0
    %2003 = vmatmul.mubr.f32.gmra.mrb[0].mxu0 %v1916
    %v2004 = vpop.f32.mrb[0].mxu0
    %v2005 = vadd.f32 0.0, %v2004
    %v2006 = vpop.f32.mrb[0].mxu0
    %2007 = vdwg.mxu0
    %v2008 = vadd.f32 %v1907, %v2000
    %v2009 = vadd.f32 %v1912, %v2005
    %v2010 = vld [vmem:[%s4] sm:$0x1]
    %v2012 = vlaneseq
    %v2013 = vshrl.u32 %v2012, 7
    %v2014 = vsub.s32 0, %v2013
    %v2015 = vrot.slane %v2010, %v2014
    %v2017 = vadd.f32 %v2008, %v2015
    %v2018 = vadd.f32 %v2009, %v2015
    %v2019 = vmax.f32 %v2017, 0.0
    %v2020 = vmax.f32 %v2018, 0.0
    %v2021 = vld [vmem:[%s5] sm:$0xff]
    %v2022 = vld [vmem:[%s5 + $0x8] sm:$0xff]
    %v2023 = vld [vmem:[%s5 + $0x10] sm:$0xff]
    %v2024 = vld [vmem:[%s5 + $0x18] sm:$0xff]
    %v2025 = vld [vmem:[%s5 + $0x20] sm:$0xff]
    %v2026 = vld [vmem:[%s5 + $0x28] sm:$0xff]
    %v2027 = vld [vmem:[%s5 + $0x30] sm:$0xff]
    %v2028 = vld [vmem:[%s5 + $0x38] sm:$0xff]
    %v2029 = vld [vmem:[%s5 + $0x40] sm:$0xff]
    %v2030 = vld [vmem:[%s5 + $0x48] sm:$0xff]
    %v2031 = vld [vmem:[%s5 + $0x50] sm:$0xff]
    %v2032 = vld [vmem:[%s5 + $0x58] sm:$0xff]
    %v2033 = vld [vmem:[%s5 + $0x60] sm:$0xff]
    %v2034 = vld [vmem:[%s5 + $0x68] sm:$0xff]
    %v2035 = vld [vmem:[%s5 + $0x70] sm:$0xff]
    %v2036 = vld [vmem:[%s5 + $0x78] sm:$0xff]
    %v2037 = vld [vmem:[%s651] sm:$0xff]
    %v2038 = vld [vmem:[%s651 + $0x8] sm:$0xff]
    %v2039 = vld [vmem:[%s651 + $0x10] sm:$0xff]
    %v2040 = vld [vmem:[%s651 + $0x18] sm:$0xff]
    %v2041 = vld [vmem:[%s651 + $0x20] sm:$0xff]
    %v2042 = vld [vmem:[%s651 + $0x28] sm:$0xff]
    %v2043 = vld [vmem:[%s651 + $0x30] sm:$0xff]
    %v2044 = vld [vmem:[%s651 + $0x38] sm:$0xff]
    %v2045 = vld [vmem:[%s651 + $0x40] sm:$0xff]
    %v2046 = vld [vmem:[%s651 + $0x48] sm:$0xff]
    %v2047 = vld [vmem:[%s651 + $0x50] sm:$0xff]
    %v2048 = vld [vmem:[%s651 + $0x58] sm:$0xff]
    %v2049 = vld [vmem:[%s651 + $0x60] sm:$0xff]
    %v2050 = vld [vmem:[%s651 + $0x68] sm:$0xff]
    %v2051 = vld [vmem:[%s651 + $0x70] sm:$0xff]
    %v2052 = vld [vmem:[%s651 + $0x78] sm:$0xff]
    %v2054 = vrot.slane %v2019, 2
    %2056 = vmatprep.subr.mxu0 0.0
    %2057 = vmatpush1.msra.mxu0 %v2037
    %2058 = vmatprep.subr.mxu0 0.0
    %2059 = vmatpush1.msra.mxu0 %v2038
    %2060 = vmatprep.subr.mxu0 0.0
    %2061 = vmatpush1.msra.mxu0 %v2039
    %2062 = vmatprep.subr.mxu0 0.0
    %2063 = vmatpush1.msra.mxu0 %v2040
    %2064 = vmatprep.subr.mxu0 0.0
    %2065 = vmatpush1.msra.mxu0 %v2041
    %2066 = vmatprep.subr.mxu0 0.0
    %2067 = vmatpush1.msra.mxu0 %v2042
    %2068 = vmatprep.subr.mxu0 0.0
    %2069 = vmatpush1.msra.mxu0 %v2043
    %2070 = vmatprep.subr.mxu0 0.0
    %2071 = vmatpush1.msra.mxu0 %v2044
    %2072 = vmatprep.subr.mxu0 0.0
    %2073 = vmatpush1.msra.mxu0 %v2045
    %2074 = vmatprep.subr.mxu0 0.0
    %2075 = vmatpush1.msra.mxu0 %v2046
    %2076 = vmatprep.subr.mxu0 0.0
    %2077 = vmatpush1.msra.mxu0 %v2047
    %2078 = vmatprep.subr.mxu0 0.0
    %2079 = vmatpush1.msra.mxu0 %v2048
    %2080 = vmatprep.subr.mxu0 0.0
    %2081 = vmatpush1.msra.mxu0 %v2049
    %2082 = vmatprep.subr.mxu0 0.0
    %2083 = vmatpush1.msra.mxu0 %v2050
    %2084 = vmatprep.subr.mxu0 0.0
    %2085 = vmatpush1.msra.mxu0 %v2051
    %2086 = vmatprep.subr.mxu0 0.0
    %2087 = vmatpush1.msra.mxu0 %v2052
    %2088 = vmatprep.subr.mxu0 0.0
    %2089 = vmatpush1.msra.mxu0 0.0
    %2090 = vmatprep.subr.mxu0 0.0
    %2091 = vmatpush1.msra.mxu0 0.0
    %2092 = vmatprep.subr.mxu0 0.0
    %2093 = vmatpush1.msra.mxu0 0.0
    %2094 = vmatprep.subr.mxu0 0.0
    %2095 = vmatpush1.msra.mxu0 0.0
    %2096 = vmatprep.subr.mxu0 0.0
    %2097 = vmatpush1.msra.mxu0 0.0
    %2098 = vmatprep.subr.mxu0 0.0
    %2099 = vmatpush1.msra.mxu0 0.0
    %2100 = vmatprep.subr.mxu0 0.0
    %2101 = vmatpush1.msra.mxu0 0.0
    %2102 = vmatprep.subr.mxu0 0.0
    %2103 = vmatpush1.msra.mxu0 0.0
    %2104 = vmatprep.subr.mxu0 0.0
    %2105 = vmatpush1.msra.mxu0 0.0
    %2106 = vmatprep.subr.mxu0 0.0
    %2107 = vmatpush1.msra.mxu0 0.0
    %2108 = vmatprep.subr.mxu0 0.0
    %2109 = vmatpush1.msra.mxu0 0.0
    %2110 = vmatprep.subr.mxu0 0.0
    %2111 = vmatpush1.msra.mxu0 0.0
    %2112 = vmatprep.subr.mxu0 0.0
    %2113 = vmatpush1.msra.mxu0 0.0
    %2114 = vmatprep.subr.mxu0 0.0
    %2115 = vmatpush1.msra.mxu0 0.0
    %2116 = vmatprep.subr.mxu0 0.0
    %2117 = vmatpush1.msra.mxu0 0.0
    %2118 = vmatprep.subr.mxu0 0.0
    %2119 = vmatpush1.msra.mxu0 0.0
    %2120 = vmatprep.mubr.f32.mxu0 0.0
    %2121 = vmatmul.mubr.f32.gmra.mrb[0].mxu0 %v2054
    %v2122 = vpop.f32.mrb[0].mxu0
    %v2123 = vadd.f32 0.0, %v2122
    %v2124 = vpop.f32.mrb[0].mxu0
    %2125 = vdwg.mxu0
    %2126 = vmatprep.subr.mxu0 0.0
    %2127 = vmatpush1.msra.mxu0 %v2021
    %2128 = vmatprep.subr.mxu0 0.0
    %2129 = vmatpush1.msra.mxu0 %v2022
    %2130 = vmatprep.subr.mxu0 0.0
    %2131 = vmatpush1.msra.mxu0 %v2023
    %2132 = vmatprep.subr.mxu0 0.0
    %2133 = vmatpush1.msra.mxu0 %v2024
    %2134 = vmatprep.subr.mxu0 0.0
    %2135 = vmatpush1.msra.mxu0 %v2025
    %2136 = vmatprep.subr.mxu0 0.0
    %2137 = vmatpush1.msra.mxu0 %v2026
    %2138 = vmatprep.subr.mxu0 0.0
    %2139 = vmatpush1.msra.mxu0 %v2027
    %2140 = vmatprep.subr.mxu0 0.0
    %2141 = vmatpush1.msra.mxu0 %v2028
    %2142 = vmatprep.subr.mxu0 0.0
    %2143 = vmatpush1.msra.mxu0 %v2029
    %2144 = vmatprep.subr.mxu0 0.0
    %2145 = vmatpush1.msra.mxu0 %v2030
    %2146 = vmatprep.subr.mxu0 0.0
    %2147 = vmatpush1.msra.mxu0 %v2031
    %2148 = vmatprep.subr.mxu0 0.0
    %2149 = vmatpush1.msra.mxu0 %v2032
    %2150 = vmatprep.subr.mxu0 0.0
    %2151 = vmatpush1.msra.mxu0 %v2033
    %2152 = vmatprep.subr.mxu0 0.0
    %2153 = vmatpush1.msra.mxu0 %v2034
    %2154 = vmatprep.subr.mxu0 0.0
    %2155 = vmatpush1.msra.mxu0 %v2035
    %2156 = vmatprep.subr.mxu0 0.0
    %2157 = vmatpush1.msra.mxu0 %v2036
    %2158 = vmatprep.subr.mxu0 0.0
    %2159 = vmatpush1.msra.mxu0 0.0
    %2160 = vmatprep.subr.mxu0 0.0
    %2161 = vmatpush1.msra.mxu0 0.0
    %2162 = vmatprep.subr.mxu0 0.0
    %2163 = vmatpush1.msra.mxu0 0.0
    %2164 = vmatprep.subr.mxu0 0.0
    %2165 = vmatpush1.msra.mxu0 0.0
    %2166 = vmatprep.subr.mxu0 0.0
    %2167 = vmatpush1.msra.mxu0 0.0
    %2168 = vmatprep.subr.mxu0 0.0
    %2169 = vmatpush1.msra.mxu0 0.0
    %2170 = vmatprep.subr.mxu0 0.0
    %2171 = vmatpush1.msra.mxu0 0.0
    %2172 = vmatprep.subr.mxu0 0.0
    %2173 = vmatpush1.msra.mxu0 0.0
    %2174 = vmatprep.subr.mxu0 0.0
    %2175 = vmatpush1.msra.mxu0 0.0
    %2176 = vmatprep.subr.mxu0 0.0
    %2177 = vmatpush1.msra.mxu0 0.0
    %2178 = vmatprep.subr.mxu0 0.0
    %2179 = vmatpush1.msra.mxu0 0.0
    %2180 = vmatprep.subr.mxu0 0.0
    %2181 = vmatpush1.msra.mxu0 0.0
    %2182 = vmatprep.subr.mxu0 0.0
    %2183 = vmatpush1.msra.mxu0 0.0
    %2184 = vmatprep.subr.mxu0 0.0
    %2185 = vmatpush1.msra.mxu0 0.0
    %2186 = vmatprep.subr.mxu0 0.0
    %2187 = vmatpush1.msra.mxu0 0.0
    %2188 = vmatprep.subr.mxu0 0.0
    %2189 = vmatpush1.msra.mxu0 0.0
    %2190 = vmatprep.mubr.f32.mxu0 0.0
    %2191 = vmatmul.mubr.f32.gmra.mrb[0].mxu0 %v2019
    %v2192 = vpop.f32.mrb[0].mxu0
    %v2193 = vadd.f32 %v2123, %v2192
    %v2194 = vpop.f32.mrb[0].mxu0
    %2195 = vdwg.mxu0
    %v2196 = vld [vmem:[%s811] sm:$0xff]
    %v2197 = vld [vmem:[%s811 + $0x8] sm:$0xff]
    %v2198 = vld [vmem:[%s811 + $0x10] sm:$0xff]
    %v2199 = vld [vmem:[%s811 + $0x18] sm:$0xff]
    %v2200 = vld [vmem:[%s811 + $0x20] sm:$0xff]
    %v2201 = vld [vmem:[%s811 + $0x28] sm:$0xff]
    %v2202 = vld [vmem:[%s811 + $0x30] sm:$0xff]
    %v2203 = vld [vmem:[%s811 + $0x38] sm:$0xff]
    %v2204 = vld [vmem:[%s811 + $0x40] sm:$0xff]
    %v2205 = vld [vmem:[%s811 + $0x48] sm:$0xff]
    %v2206 = vld [vmem:[%s811 + $0x50] sm:$0xff]
    %v2207 = vld [vmem:[%s811 + $0x58] sm:$0xff]
    %v2208 = vld [vmem:[%s811 + $0x60] sm:$0xff]
    %v2209 = vld [vmem:[%s811 + $0x68] sm:$0xff]
    %v2210 = vld [vmem:[%s811 + $0x70] sm:$0xff]
    %v2211 = vld [vmem:[%s811 + $0x78] sm:$0xff]
    %v2212 = vrot.slane %v2019, 4
    %2214 = vmatprep.subr.mxu0 0.0
    %2215 = vmatpush1.msra.mxu0 %v2196
    %2216 = vmatprep.subr.mxu0 0.0
    %2217 = vmatpush1.msra.mxu0 %v2197
    %2218 = vmatprep.subr.mxu0 0.0
    %2219 = vmatpush1.msra.mxu0 %v2198
    %2220 = vmatprep.subr.mxu0 0.0
    %2221 = vmatpush1.msra.mxu0 %v2199
    %2222 = vmatprep.subr.mxu0 0.0
    %2223 = vmatpush1.msra.mxu0 %v2200
    %2224 = vmatprep.subr.mxu0 0.0
    %2225 = vmatpush1.msra.mxu0 %v2201
    %2226 = vmatprep.subr.mxu0 0.0
    %2227 = vmatpush1.msra.mxu0 %v2202
    %2228 = vmatprep.subr.mxu0 0.0
    %2229 = vmatpush1.msra.mxu0 %v2203
    %2230 = vmatprep.subr.mxu0 0.0
    %2231 = vmatpush1.msra.mxu0 %v2204
    %2232 = vmatprep.subr.mxu0 0.0
    %2233 = vmatpush1.msra.mxu0 %v2205
    %2234 = vmatprep.subr.mxu0 0.0
    %2235 = vmatpush1.msra.mxu0 %v2206
    %2236 = vmatprep.subr.mxu0 0.0
    %2237 = vmatpush1.msra.mxu0 %v2207
    %2238 = vmatprep.subr.mxu0 0.0
    %2239 = vmatpush1.msra.mxu0 %v2208
    %2240 = vmatprep.subr.mxu0 0.0
    %2241 = vmatpush1.msra.mxu0 %v2209
    %2242 = vmatprep.subr.mxu0 0.0
    %2243 = vmatpush1.msra.mxu0 %v2210
    %2244 = vmatprep.subr.mxu0 0.0
    %2245 = vmatpush1.msra.mxu0 %v2211
    %2246 = vmatprep.subr.mxu0 0.0
    %2247 = vmatpush1.msra.mxu0 0.0
    %2248 = vmatprep.subr.mxu0 0.0
    %2249 = vmatpush1.msra.mxu0 0.0
    %2250 = vmatprep.subr.mxu0 0.0
    %2251 = vmatpush1.msra.mxu0 0.0
    %2252 = vmatprep.subr.mxu0 0.0
    %2253 = vmatpush1.msra.mxu0 0.0
    %2254 = vmatprep.subr.mxu0 0.0
    %2255 = vmatpush1.msra.mxu0 0.0
    %2256 = vmatprep.subr.mxu0 0.0
    %2257 = vmatpush1.msra.mxu0 0.0
    %2258 = vmatprep.subr.mxu0 0.0
    %2259 = vmatpush1.msra.mxu0 0.0
    %2260 = vmatprep.subr.mxu0 0.0
    %2261 = vmatpush1.msra.mxu0 0.0
    %2262 = vmatprep.subr.mxu0 0.0
    %2263 = vmatpush1.msra.mxu0 0.0
    %2264 = vmatprep.subr.mxu0 0.0
    %2265 = vmatpush1.msra.mxu0 0.0
    %2266 = vmatprep.subr.mxu0 0.0
    %2267 = vmatpush1.msra.mxu0 0.0
    %2268 = vmatprep.subr.mxu0 0.0
    %2269 = vmatpush1.msra.mxu0 0.0
    %2270 = vmatprep.subr.mxu0 0.0
    %2271 = vmatpush1.msra.mxu0 0.0
    %2272 = vmatprep.subr.mxu0 0.0
    %2273 = vmatpush1.msra.mxu0 0.0
    %2274 = vmatprep.subr.mxu0 0.0
    %2275 = vmatpush1.msra.mxu0 0.0
    %2276 = vmatprep.subr.mxu0 0.0
    %2277 = vmatpush1.msra.mxu0 0.0
    %2278 = vmatprep.mubr.f32.mxu0 0.0
    %2279 = vmatmul.mubr.f32.gmra.mrb[0].mxu0 %v2212
    %v2280 = vpop.f32.mrb[0].mxu0
    %v2281 = vadd.f32 0.0, %v2280
    %v2282 = vpop.f32.mrb[0].mxu0
    %2283 = vdwg.mxu0
    %v2284 = vadd.f32 %v2193, %v2281
    %v2285 = vld [vmem:[%s901] sm:$0xff]
    %v2286 = vld [vmem:[%s901 + $0x8] sm:$0xff]
    %v2287 = vld [vmem:[%s901 + $0x10] sm:$0xff]
    %v2288 = vld [vmem:[%s901 + $0x18] sm:$0xff]
    %v2289 = vld [vmem:[%s901 + $0x20] sm:$0xff]
    %v2290 = vld [vmem:[%s901 + $0x28] sm:$0xff]
    %v2291 = vld [vmem:[%s901 + $0x30] sm:$0xff]
    %v2292 = vld [vmem:[%s901 + $0x38] sm:$0xff]
    %v2293 = vld [vmem:[%s901 + $0x40] sm:$0xff]
    %v2294 = vld [vmem:[%s901 + $0x48] sm:$0xff]
    %v2295 = vld [vmem:[%s901 + $0x50] sm:$0xff]
    %v2296 = vld [vmem:[%s901 + $0x58] sm:$0xff]
    %v2297 = vld [vmem:[%s901 + $0x60] sm:$0xff]
    %v2298 = vld [vmem:[%s901 + $0x68] sm:$0xff]
    %v2299 = vld [vmem:[%s901 + $0x70] sm:$0xff]
    %v2300 = vld [vmem:[%s901 + $0x78] sm:$0xff]
    %v2301 = vrot.slane %v2019, 6
    %2303 = vmatprep.subr.mxu0 0.0
    %2304 = vmatpush1.msra.mxu0 %v2285
    %2305 = vmatprep.subr.mxu0 0.0
    %2306 = vmatpush1.msra.mxu0 %v2286
    %2307 = vmatprep.subr.mxu0 0.0
    %2308 = vmatpush1.msra.mxu0 %v2287
    %2309 = vmatprep.subr.mxu0 0.0
    %2310 = vmatpush1.msra.mxu0 %v2288
    %2311 = vmatprep.subr.mxu0 0.0
    %2312 = vmatpush1.msra.mxu0 %v2289
    %2313 = vmatprep.subr.mxu0 0.0
    %2314 = vmatpush1.msra.mxu0 %v2290
    %2315 = vmatprep.subr.mxu0 0.0
    %2316 = vmatpush1.msra.mxu0 %v2291
    %2317 = vmatprep.subr.mxu0 0.0
    %2318 = vmatpush1.msra.mxu0 %v2292
    %2319 = vmatprep.subr.mxu0 0.0
    %2320 = vmatpush1.msra.mxu0 %v2293
    %2321 = vmatprep.subr.mxu0 0.0
    %2322 = vmatpush1.msra.mxu0 %v2294
    %2323 = vmatprep.subr.mxu0 0.0
    %2324 = vmatpush1.msra.mxu0 %v2295
    %2325 = vmatprep.subr.mxu0 0.0
    %2326 = vmatpush1.msra.mxu0 %v2296
    %2327 = vmatprep.subr.mxu0 0.0
    %2328 = vmatpush1.msra.mxu0 %v2297
    %2329 = vmatprep.subr.mxu0 0.0
    %2330 = vmatpush1.msra.mxu0 %v2298
    %2331 = vmatprep.subr.mxu0 0.0
    %2332 = vmatpush1.msra.mxu0 %v2299
    %2333 = vmatprep.subr.mxu0 0.0
    %2334 = vmatpush1.msra.mxu0 %v2300
    %2335 = vmatprep.subr.mxu0 0.0
    %2336 = vmatpush1.msra.mxu0 0.0
    %2337 = vmatprep.subr.mxu0 0.0
    %2338 = vmatpush1.msra.mxu0 0.0
    %2339 = vmatprep.subr.mxu0 0.0
    %2340 = vmatpush1.msra.mxu0 0.0
    %2341 = vmatprep.subr.mxu0 0.0
    %2342 = vmatpush1.msra.mxu0 0.0
    %2343 = vmatprep.subr.mxu0 0.0
    %2344 = vmatpush1.msra.mxu0 0.0
    %2345 = vmatprep.subr.mxu0 0.0
    %2346 = vmatpush1.msra.mxu0 0.0
    %2347 = vmatprep.subr.mxu0 0.0
    %2348 = vmatpush1.msra.mxu0 0.0
    %2349 = vmatprep.subr.mxu0 0.0
    %2350 = vmatpush1.msra.mxu0 0.0
    %2351 = vmatprep.subr.mxu0 0.0
    %2352 = vmatpush1.msra.mxu0 0.0
    %2353 = vmatprep.subr.mxu0 0.0
    %2354 = vmatpush1.msra.mxu0 0.0
    %2355 = vmatprep.subr.mxu0 0.0
    %2356 = vmatpush1.msra.mxu0 0.0
    %2357 = vmatprep.subr.mxu0 0.0
    %2358 = vmatpush1.msra.mxu0 0.0
    %2359 = vmatprep.subr.mxu0 0.0
    %2360 = vmatpush1.msra.mxu0 0.0
    %2361 = vmatprep.subr.mxu0 0.0
    %2362 = vmatpush1.msra.mxu0 0.0
    %2363 = vmatprep.subr.mxu0 0.0
    %2364 = vmatpush1.msra.mxu0 0.0
    %2365 = vmatprep.subr.mxu0 0.0
    %2366 = vmatpush1.msra.mxu0 0.0
    %2367 = vmatprep.mubr.f32.mxu0 0.0
    %2368 = vmatmul.mubr.f32.gmra.mrb[0].mxu0 %v2301
    %v2369 = vpop.f32.mrb[0].mxu0
    %v2370 = vadd.f32 0.0, %v2369
    %v2371 = vpop.f32.mrb[0].mxu0
    %2372 = vdwg.mxu0
    %v2373 = vadd.f32 %v2284, %v2370
    %v2374 = vld [vmem:[%s991] sm:$0xff]
    %v2375 = vld [vmem:[%s991 + $0x8] sm:$0xff]
    %v2376 = vld [vmem:[%s991 + $0x10] sm:$0xff]
    %v2377 = vld [vmem:[%s991 + $0x18] sm:$0xff]
    %v2378 = vld [vmem:[%s991 + $0x20] sm:$0xff]
    %v2379 = vld [vmem:[%s991 + $0x28] sm:$0xff]
    %v2380 = vld [vmem:[%s991 + $0x30] sm:$0xff]
    %v2381 = vld [vmem:[%s991 + $0x38] sm:$0xff]
    %v2382 = vld [vmem:[%s991 + $0x40] sm:$0xff]
    %v2383 = vld [vmem:[%s991 + $0x48] sm:$0xff]
    %v2384 = vld [vmem:[%s991 + $0x50] sm:$0xff]
    %v2385 = vld [vmem:[%s991 + $0x58] sm:$0xff]
    %v2386 = vld [vmem:[%s991 + $0x60] sm:$0xff]
    %v2387 = vld [vmem:[%s991 + $0x68] sm:$0xff]
    %v2388 = vld [vmem:[%s991 + $0x70] sm:$0xff]
    %v2389 = vld [vmem:[%s991 + $0x78] sm:$0xff]
    %2390 = vmatprep.subr.mxu0 0.0
    %2391 = vmatpush1.msra.mxu0 %v2374
    %2392 = vmatprep.subr.mxu0 0.0
    %2393 = vmatpush1.msra.mxu0 %v2375
    %2394 = vmatprep.subr.mxu0 0.0
    %2395 = vmatpush1.msra.mxu0 %v2376
    %2396 = vmatprep.subr.mxu0 0.0
    %2397 = vmatpush1.msra.mxu0 %v2377
    %2398 = vmatprep.subr.mxu0 0.0
    %2399 = vmatpush1.msra.mxu0 %v2378
    %2400 = vmatprep.subr.mxu0 0.0
    %2401 = vmatpush1.msra.mxu0 %v2379
    %2402 = vmatprep.subr.mxu0 0.0
    %2403 = vmatpush1.msra.mxu0 %v2380
    %2404 = vmatprep.subr.mxu0 0.0
    %2405 = vmatpush1.msra.mxu0 %v2381
    %2406 = vmatprep.subr.mxu0 0.0
    %2407 = vmatpush1.msra.mxu0 %v2382
    %2408 = vmatprep.subr.mxu0 0.0
    %2409 = vmatpush1.msra.mxu0 %v2383
    %2410 = vmatprep.subr.mxu0 0.0
    %2411 = vmatpush1.msra.mxu0 %v2384
    %2412 = vmatprep.subr.mxu0 0.0
    %2413 = vmatpush1.msra.mxu0 %v2385
    %2414 = vmatprep.subr.mxu0 0.0
    %2415 = vmatpush1.msra.mxu0 %v2386
    %2416 = vmatprep.subr.mxu0 0.0
    %2417 = vmatpush1.msra.mxu0 %v2387
    %2418 = vmatprep.subr.mxu0 0.0
    %2419 = vmatpush1.msra.mxu0 %v2388
    %2420 = vmatprep.subr.mxu0 0.0
    %2421 = vmatpush1.msra.mxu0 %v2389
    %2422 = vmatprep.subr.mxu0 0.0
    %2423 = vmatpush1.msra.mxu0 0.0
    %2424 = vmatprep.subr.mxu0 0.0
    %2425 = vmatpush1.msra.mxu0 0.0
    %2426 = vmatprep.subr.mxu0 0.0
    %2427 = vmatpush1.msra.mxu0 0.0
    %2428 = vmatprep.subr.mxu0 0.0
    %2429 = vmatpush1.msra.mxu0 0.0
    %2430 = vmatprep.subr.mxu0 0.0
    %2431 = vmatpush1.msra.mxu0 0.0
    %2432 = vmatprep.subr.mxu0 0.0
    %2433 = vmatpush1.msra.mxu0 0.0
    %2434 = vmatprep.subr.mxu0 0.0
    %2435 = vmatpush1.msra.mxu0 0.0
    %2436 = vmatprep.subr.mxu0 0.0
    %2437 = vmatpush1.msra.mxu0 0.0
    %2438 = vmatprep.subr.mxu0 0.0
    %2439 = vmatpush1.msra.mxu0 0.0
    %2440 = vmatprep.subr.mxu0 0.0
    %2441 = vmatpush1.msra.mxu0 0.0
    %2442 = vmatprep.subr.mxu0 0.0
    %2443 = vmatpush1.msra.mxu0 0.0
    %2444 = vmatprep.subr.mxu0 0.0
    %2445 = vmatpush1.msra.mxu0 0.0
    %2446 = vmatprep.subr.mxu0 0.0
    %2447 = vmatpush1.msra.mxu0 0.0
    %2448 = vmatprep.subr.mxu0 0.0
    %2449 = vmatpush1.msra.mxu0 0.0
    %2450 = vmatprep.subr.mxu0 0.0
    %2451 = vmatpush1.msra.mxu0 0.0
    %2452 = vmatprep.subr.mxu0 0.0
    %2453 = vmatpush1.msra.mxu0 0.0
    %2454 = vmatprep.mubr.f32.mxu0 0.0
    %2455 = vmatmul.mubr.f32.gmra.mrb[0].mxu0 %v2020
    %v2456 = vpop.f32.mrb[0].mxu0
    %v2457 = vadd.f32 0.0, %v2456
    %v2458 = vpop.f32.mrb[0].mxu0
    %2459 = vdwg.mxu0
    %v2460 = vadd.f32 %v2373, %v2457
    %v2461 = vld [vmem:[%s1079] sm:$0xff]
    %v2462 = vld [vmem:[%s1079 + $0x8] sm:$0xff]
    %v2463 = vld [vmem:[%s1079 + $0x10] sm:$0xff]
    %v2464 = vld [vmem:[%s1079 + $0x18] sm:$0xff]
    %v2465 = vld [vmem:[%s1079 + $0x20] sm:$0xff]
    %v2466 = vld [vmem:[%s1079 + $0x28] sm:$0xff]
    %v2467 = vld [vmem:[%s1079 + $0x30] sm:$0xff]
    %v2468 = vld [vmem:[%s1079 + $0x38] sm:$0xff]
    %v2469 = vld [vmem:[%s1079 + $0x40] sm:$0xff]
    %v2470 = vld [vmem:[%s1079 + $0x48] sm:$0xff]
    %v2471 = vld [vmem:[%s1079 + $0x50] sm:$0xff]
    %v2472 = vld [vmem:[%s1079 + $0x58] sm:$0xff]
    %v2473 = vld [vmem:[%s1079 + $0x60] sm:$0xff]
    %v2474 = vld [vmem:[%s1079 + $0x68] sm:$0xff]
    %v2475 = vld [vmem:[%s1079 + $0x70] sm:$0xff]
    %v2476 = vld [vmem:[%s1079 + $0x78] sm:$0xff]
    %v2478 = vrot.slane %v2020, 2
    %2480 = vmatprep.subr.mxu0 0.0
    %2481 = vmatpush1.msra.mxu0 %v2461
    %2482 = vmatprep.subr.mxu0 0.0
    %2483 = vmatpush1.msra.mxu0 %v2462
    %2484 = vmatprep.subr.mxu0 0.0
    %2485 = vmatpush1.msra.mxu0 %v2463
    %2486 = vmatprep.subr.mxu0 0.0
    %2487 = vmatpush1.msra.mxu0 %v2464
    %2488 = vmatprep.subr.mxu0 0.0
    %2489 = vmatpush1.msra.mxu0 %v2465
    %2490 = vmatprep.subr.mxu0 0.0
    %2491 = vmatpush1.msra.mxu0 %v2466
    %2492 = vmatprep.subr.mxu0 0.0
    %2493 = vmatpush1.msra.mxu0 %v2467
    %2494 = vmatprep.subr.mxu0 0.0
    %2495 = vmatpush1.msra.mxu0 %v2468
    %2496 = vmatprep.subr.mxu0 0.0
    %2497 = vmatpush1.msra.mxu0 %v2469
    %2498 = vmatprep.subr.mxu0 0.0
    %2499 = vmatpush1.msra.mxu0 %v2470
    %2500 = vmatprep.subr.mxu0 0.0
    %2501 = vmatpush1.msra.mxu0 %v2471
    %2502 = vmatprep.subr.mxu0 0.0
    %2503 = vmatpush1.msra.mxu0 %v2472
    %2504 = vmatprep.subr.mxu0 0.0
    %2505 = vmatpush1.msra.mxu0 %v2473
    %2506 = vmatprep.subr.mxu0 0.0
    %2507 = vmatpush1.msra.mxu0 %v2474
    %2508 = vmatprep.subr.mxu0 0.0
    %2509 = vmatpush1.msra.mxu0 %v2475
    %2510 = vmatprep.subr.mxu0 0.0
    %2511 = vmatpush1.msra.mxu0 %v2476
    %2512 = vmatprep.subr.mxu0 0.0
    %2513 = vmatpush1.msra.mxu0 0.0
    %2514 = vmatprep.subr.mxu0 0.0
    %2515 = vmatpush1.msra.mxu0 0.0
    %2516 = vmatprep.subr.mxu0 0.0
    %2517 = vmatpush1.msra.mxu0 0.0
    %2518 = vmatprep.subr.mxu0 0.0
    %2519 = vmatpush1.msra.mxu0 0.0
    %2520 = vmatprep.subr.mxu0 0.0
    %2521 = vmatpush1.msra.mxu0 0.0
    %2522 = vmatprep.subr.mxu0 0.0
    %2523 = vmatpush1.msra.mxu0 0.0
    %2524 = vmatprep.subr.mxu0 0.0
    %2525 = vmatpush1.msra.mxu0 0.0
    %2526 = vmatprep.subr.mxu0 0.0
    %2527 = vmatpush1.msra.mxu0 0.0
    %2528 = vmatprep.subr.mxu0 0.0
    %2529 = vmatpush1.msra.mxu0 0.0
    %2530 = vmatprep.subr.mxu0 0.0
    %2531 = vmatpush1.msra.mxu0 0.0
    %2532 = vmatprep.subr.mxu0 0.0
    %2533 = vmatpush1.msra.mxu0 0.0
    %2534 = vmatprep.subr.mxu0 0.0
    %2535 = vmatpush1.msra.mxu0 0.0
    %2536 = vmatprep.subr.mxu0 0.0
    %2537 = vmatpush1.msra.mxu0 0.0
    %2538 = vmatprep.subr.mxu0 0.0
    %2539 = vmatpush1.msra.mxu0 0.0
    %2540 = vmatprep.subr.mxu0 0.0
    %2541 = vmatpush1.msra.mxu0 0.0
    %2542 = vmatprep.subr.mxu0 0.0
    %2543 = vmatpush1.msra.mxu0 0.0
    %2544 = vmatprep.mubr.f32.mxu0 0.0
    %2545 = vmatmul.mubr.f32.gmra.mrb[0].mxu0 %v2478
    %v2546 = vpop.f32.mrb[0].mxu0
    %v2547 = vadd.f32 0.0, %v2546
    %v2548 = vpop.f32.mrb[0].mxu0
    %2549 = vdwg.mxu0
    %v2550 = vadd.f32 %v2460, %v2547
    %v2551 = vld [vmem:[%s1170] sm:$0xff]
    %v2552 = vld [vmem:[%s1170 + $0x8] sm:$0xff]
    %v2553 = vld [vmem:[%s1170 + $0x10] sm:$0xff]
    %v2554 = vld [vmem:[%s1170 + $0x18] sm:$0xff]
    %v2555 = vld [vmem:[%s1170 + $0x20] sm:$0xff]
    %v2556 = vld [vmem:[%s1170 + $0x28] sm:$0xff]
    %v2557 = vld [vmem:[%s1170 + $0x30] sm:$0xff]
    %v2558 = vld [vmem:[%s1170 + $0x38] sm:$0xff]
    %v2559 = vld [vmem:[%s1170 + $0x40] sm:$0xff]
    %v2560 = vld [vmem:[%s1170 + $0x48] sm:$0xff]
    %v2561 = vld [vmem:[%s1170 + $0x50] sm:$0xff]
    %v2562 = vld [vmem:[%s1170 + $0x58] sm:$0xff]
    %v2563 = vld [vmem:[%s1170 + $0x60] sm:$0xff]
    %v2564 = vld [vmem:[%s1170 + $0x68] sm:$0xff]
    %v2565 = vld [vmem:[%s1170 + $0x70] sm:$0xff]
    %v2566 = vld [vmem:[%s1170 + $0x78] sm:$0xff]
    %v2567 = vrot.slane %v2020, 4
    %2569 = vmatprep.subr.mxu0 0.0
    %2570 = vmatpush1.msra.mxu0 %v2551
    %2571 = vmatprep.subr.mxu0 0.0
    %2572 = vmatpush1.msra.mxu0 %v2552
    %2573 = vmatprep.subr.mxu0 0.0
    %2574 = vmatpush1.msra.mxu0 %v2553
    %2575 = vmatprep.subr.mxu0 0.0
    %2576 = vmatpush1.msra.mxu0 %v2554
    %2577 = vmatprep.subr.mxu0 0.0
    %2578 = vmatpush1.msra.mxu0 %v2555
    %2579 = vmatprep.subr.mxu0 0.0
    %2580 = vmatpush1.msra.mxu0 %v2556
    %2581 = vmatprep.subr.mxu0 0.0
    %2582 = vmatpush1.msra.mxu0 %v2557
    %2583 = vmatprep.subr.mxu0 0.0
    %2584 = vmatpush1.msra.mxu0 %v2558
    %2585 = vmatprep.subr.mxu0 0.0
    %2586 = vmatpush1.msra.mxu0 %v2559
    %2587 = vmatprep.subr.mxu0 0.0
    %2588 = vmatpush1.msra.mxu0 %v2560
    %2589 = vmatprep.subr.mxu0 0.0
    %2590 = vmatpush1.msra.mxu0 %v2561
    %2591 = vmatprep.subr.mxu0 0.0
    %2592 = vmatpush1.msra.mxu0 %v2562
    %2593 = vmatprep.subr.mxu0 0.0
    %2594 = vmatpush1.msra.mxu0 %v2563
    %2595 = vmatprep.subr.mxu0 0.0
    %2596 = vmatpush1.msra.mxu0 %v2564
    %2597 = vmatprep.subr.mxu0 0.0
    %2598 = vmatpush1.msra.mxu0 %v2565
    %2599 = vmatprep.subr.mxu0 0.0
    %2600 = vmatpush1.msra.mxu0 %v2566
    %2601 = vmatprep.subr.mxu0 0.0
    %2602 = vmatpush1.msra.mxu0 0.0
    %2603 = vmatprep.subr.mxu0 0.0
    %2604 = vmatpush1.msra.mxu0 0.0
    %2605 = vmatprep.subr.mxu0 0.0
    %2606 = vmatpush1.msra.mxu0 0.0
    %2607 = vmatprep.subr.mxu0 0.0
    %2608 = vmatpush1.msra.mxu0 0.0
    %2609 = vmatprep.subr.mxu0 0.0
    %2610 = vmatpush1.msra.mxu0 0.0
    %2611 = vmatprep.subr.mxu0 0.0
    %2612 = vmatpush1.msra.mxu0 0.0
    %2613 = vmatprep.subr.mxu0 0.0
    %2614 = vmatpush1.msra.mxu0 0.0
    %2615 = vmatprep.subr.mxu0 0.0
    %2616 = vmatpush1.msra.mxu0 0.0
    %2617 = vmatprep.subr.mxu0 0.0
    %2618 = vmatpush1.msra.mxu0 0.0
    %2619 = vmatprep.subr.mxu0 0.0
    %2620 = vmatpush1.msra.mxu0 0.0
    %2621 = vmatprep.subr.mxu0 0.0
    %2622 = vmatpush1.msra.mxu0 0.0
    %2623 = vmatprep.subr.mxu0 0.0
    %2624 = vmatpush1.msra.mxu0 0.0
    %2625 = vmatprep.subr.mxu0 0.0
    %2626 = vmatpush1.msra.mxu0 0.0
    %2627 = vmatprep.subr.mxu0 0.0
    %2628 = vmatpush1.msra.mxu0 0.0
    %2629 = vmatprep.subr.mxu0 0.0
    %2630 = vmatpush1.msra.mxu0 0.0
    %2631 = vmatprep.subr.mxu0 0.0
    %2632 = vmatpush1.msra.mxu0 0.0
    %2633 = vmatprep.mubr.f32.mxu0 0.0
    %2634 = vmatmul.mubr.f32.gmra.mrb[0].mxu0 %v2567
    %v2635 = vpop.f32.mrb[0].mxu0
    %v2636 = vadd.f32 0.0, %v2635
    %v2637 = vpop.f32.mrb[0].mxu0
    %2638 = vdwg.mxu0
    %v2639 = vadd.f32 %v2550, %v2636
    %v2640 = vld [vmem:[%s1260] sm:$0xff]
    %v2641 = vld [vmem:[%s1260 + $0x8] sm:$0xff]
    %v2642 = vld [vmem:[%s1260 + $0x10] sm:$0xff]
    %v2643 = vld [vmem:[%s1260 + $0x18] sm:$0xff]
    %v2644 = vld [vmem:[%s1260 + $0x20] sm:$0xff]
    %v2645 = vld [vmem:[%s1260 + $0x28] sm:$0xff]
    %v2646 = vld [vmem:[%s1260 + $0x30] sm:$0xff]
    %v2647 = vld [vmem:[%s1260 + $0x38] sm:$0xff]
    %v2648 = vld [vmem:[%s1260 + $0x40] sm:$0xff]
    %v2649 = vld [vmem:[%s1260 + $0x48] sm:$0xff]
    %v2650 = vld [vmem:[%s1260 + $0x50] sm:$0xff]
    %v2651 = vld [vmem:[%s1260 + $0x58] sm:$0xff]
    %v2652 = vld [vmem:[%s1260 + $0x60] sm:$0xff]
    %v2653 = vld [vmem:[%s1260 + $0x68] sm:$0xff]
    %v2654 = vld [vmem:[%s1260 + $0x70] sm:$0xff]
    %v2655 = vld [vmem:[%s1260 + $0x78] sm:$0xff]
    %v2656 = vrot.slane %v2020, 6
    %2658 = vmatprep.subr.mxu0 0.0
    %2659 = vmatpush1.msra.mxu0 %v2640
    %2660 = vmatprep.subr.mxu0 0.0
    %2661 = vmatpush1.msra.mxu0 %v2641
    %2662 = vmatprep.subr.mxu0 0.0
    %2663 = vmatpush1.msra.mxu0 %v2642
    %2664 = vmatprep.subr.mxu0 0.0
    %2665 = vmatpush1.msra.mxu0 %v2643
    %2666 = vmatprep.subr.mxu0 0.0
    %2667 = vmatpush1.msra.mxu0 %v2644
    %2668 = vmatprep.subr.mxu0 0.0
    %2669 = vmatpush1.msra.mxu0 %v2645
    %2670 = vmatprep.subr.mxu0 0.0
    %2671 = vmatpush1.msra.mxu0 %v2646
    %2672 = vmatprep.subr.mxu0 0.0
    %2673 = vmatpush1.msra.mxu0 %v2647
    %2674 = vmatprep.subr.mxu0 0.0
    %2675 = vmatpush1.msra.mxu0 %v2648
    %2676 = vmatprep.subr.mxu0 0.0
    %2677 = vmatpush1.msra.mxu0 %v2649
    %2678 = vmatprep.subr.mxu0 0.0
    %2679 = vmatpush1.msra.mxu0 %v2650
    %2680 = vmatprep.subr.mxu0 0.0
    %2681 = vmatpush1.msra.mxu0 %v2651
    %2682 = vmatprep.subr.mxu0 0.0
    %2683 = vmatpush1.msra.mxu0 %v2652
    %2684 = vmatprep.subr.mxu0 0.0
    %2685 = vmatpush1.msra.mxu0 %v2653
    %2686 = vmatprep.subr.mxu0 0.0
    %2687 = vmatpush1.msra.mxu0 %v2654
    %2688 = vmatprep.subr.mxu0 0.0
    %2689 = vmatpush1.msra.mxu0 %v2655
    %2690 = vmatprep.subr.mxu0 0.0
    %2691 = vmatpush1.msra.mxu0 0.0
    %2692 = vmatprep.subr.mxu0 0.0
    %2693 = vmatpush1.msra.mxu0 0.0
    %2694 = vmatprep.subr.mxu0 0.0
    %2695 = vmatpush1.msra.mxu0 0.0
    %2696 = vmatprep.subr.mxu0 0.0
    %2697 = vmatpush1.msra.mxu0 0.0
    %2698 = vmatprep.subr.mxu0 0.0
    %2699 = vmatpush1.msra.mxu0 0.0
    %2700 = vmatprep.subr.mxu0 0.0
    %2701 = vmatpush1.msra.mxu0 0.0
    %2702 = vmatprep.subr.mxu0 0.0
    %2703 = vmatpush1.msra.mxu0 0.0
    %2704 = vmatprep.subr.mxu0 0.0
    %2705 = vmatpush1.msra.mxu0 0.0
    %2706 = vmatprep.subr.mxu0 0.0
    %2707 = vmatpush1.msra.mxu0 0.0
    %2708 = vmatprep.subr.mxu0 0.0
    %2709 = vmatpush1.msra.mxu0 0.0
    %2710 = vmatprep.subr.mxu0 0.0
    %2711 = vmatpush1.msra.mxu0 0.0
    %2712 = vmatprep.subr.mxu0 0.0
    %2713 = vmatpush1.msra.mxu0 0.0
    %2714 = vmatprep.subr.mxu0 0.0
    %2715 = vmatpush1.msra.mxu0 0.0
    %2716 = vmatprep.subr.mxu0 0.0
    %2717 = vmatpush1.msra.mxu0 0.0
    %2718 = vmatprep.subr.mxu0 0.0
    %2719 = vmatpush1.msra.mxu0 0.0
    %2720 = vmatprep.subr.mxu0 0.0
    %2721 = vmatpush1.msra.mxu0 0.0
    %2722 = vmatprep.mubr.f32.mxu0 0.0
    %2723 = vmatmul.mubr.f32.gmra.mrb[0].mxu0 %v2656
    %v2724 = vpop.f32.mrb[0].mxu0
    %v2725 = vadd.f32 0.0, %v2724
    %v2726 = vpop.f32.mrb[0].mxu0
    %2727 = vdwg.mxu0
    %v2728 = vadd.f32 %v2639, %v2725
    %v2729 = vld [vmem:[%s6] sm:$0x1]
    %v2730 = vadd.f32 %v2728, %v2729
    %v2731 = vmax.f32 %v2730, 0.0
    %v2732 = vld [vmem:[%s7] sm:$0xff]
    %v2733 = vld [vmem:[%s7 + $0x8] sm:$0xff]
    %v2734 = vld [vmem:[%s7 + $0x10] sm:$0xff]
    %v2735 = vld [vmem:[%s7 + $0x18] sm:$0xff]
    %v2736 = vld [vmem:[%s8] sm:$0x1]
    %v2738 = vsel %vm1358, %v2731, 0
    %2740 = vmatprep.subr.mxu0 0.0
    %2741 = vmatpush1.msra.mxu0 %v2732
    %2742 = vmatprep.subr.mxu0 0.0
    %2743 = vmatpush1.msra.mxu0 %v2733
    %2744 = vmatprep.subr.mxu0 0.0
    %2745 = vmatpush1.msra.mxu0 %v2734
    %2746 = vmatprep.subr.mxu0 0.0
    %2747 = vmatpush1.msra.mxu0 %v2735
    %2748 = vmatprep.subr.mxu0 0.0
    %2749 = vmatpush1.msra.mxu0 0.0
    %2750 = vmatprep.subr.mxu0 0.0
    %2751 = vmatpush1.msra.mxu0 0.0
    %2752 = vmatprep.subr.mxu0 0.0
    %2753 = vmatpush1.msra.mxu0 0.0
    %2754 = vmatprep.subr.mxu0 0.0
    %2755 = vmatpush1.msra.mxu0 0.0
    %2756 = vmatprep.subr.mxu0 0.0
    %2757 = vmatpush1.msra.mxu0 0.0
    %2758 = vmatprep.subr.mxu0 0.0
    %2759 = vmatpush1.msra.mxu0 0.0
    %2760 = vmatprep.subr.mxu0 0.0
    %2761 = vmatpush1.msra.mxu0 0.0
    %2762 = vmatprep.subr.mxu0 0.0
    %2763 = vmatpush1.msra.mxu0 0.0
    %2764 = vmatprep.subr.mxu0 0.0
    %2765 = vmatpush1.msra.mxu0 0.0
    %2766 = vmatprep.subr.mxu0 0.0
    %2767 = vmatpush1.msra.mxu0 0.0
    %2768 = vmatprep.subr.mxu0 0.0
    %2769 = vmatpush1.msra.mxu0 0.0
    %2770 = vmatprep.subr.mxu0 0.0
    %2771 = vmatpush1.msra.mxu0 0.0
    %2772 = vmatprep.subr.mxu0 0.0
    %2773 = vmatpush1.msra.mxu0 0.0
    %2774 = vmatprep.subr.mxu0 0.0
    %2775 = vmatpush1.msra.mxu0 0.0
    %2776 = vmatprep.subr.mxu0 0.0
    %2777 = vmatpush1.msra.mxu0 0.0
    %2778 = vmatprep.subr.mxu0 0.0
    %2779 = vmatpush1.msra.mxu0 0.0
    %2780 = vmatprep.subr.mxu0 0.0
    %2781 = vmatpush1.msra.mxu0 0.0
    %2782 = vmatprep.subr.mxu0 0.0
    %2783 = vmatpush1.msra.mxu0 0.0
    %2784 = vmatprep.subr.mxu0 0.0
    %2785 = vmatpush1.msra.mxu0 0.0
    %2786 = vmatprep.subr.mxu0 0.0
    %2787 = vmatpush1.msra.mxu0 0.0
    %2788 = vmatprep.subr.mxu0 0.0
    %2789 = vmatpush1.msra.mxu0 0.0
    %2790 = vmatprep.subr.mxu0 0.0
    %2791 = vmatpush1.msra.mxu0 0.0
    %2792 = vmatprep.subr.mxu0 0.0
    %2793 = vmatpush1.msra.mxu0 0.0
    %2794 = vmatprep.subr.mxu0 0.0
    %2795 = vmatpush1.msra.mxu0 0.0
    %2796 = vmatprep.subr.mxu0 0.0
    %2797 = vmatpush1.msra.mxu0 0.0
    %2798 = vmatprep.subr.mxu0 0.0
    %2799 = vmatpush1.msra.mxu0 0.0
    %2800 = vmatprep.subr.mxu0 0.0
    %2801 = vmatpush1.msra.mxu0 0.0
    %2802 = vmatprep.subr.mxu0 0.0
    %2803 = vmatpush1.msra.mxu0 0.0
    %2804 = vmatprep.mubr.f32.mxu0 0.0
    %2805 = vmatmul.mubr.f32.gmra.mrb[0].mxu0 %v2738
    %v2806 = vpop.f32.mrb[0].mxu0
    %v2807 = vadd.f32 %v2736, %v2806
    %v2808 = vpop.f32.mrb[0].mxu0
    %2809 = vdwg.mxu0
    %2810 = vst.msk [vmem:[#allocation4 + $0x1] sm:$0x1] %vm1432, %v2807
    // Predicated region
    $region38: #{cnn_forward.1} parent=1 // pred_check
      _
    $region39: #{cnn_forward.1} parent=1 // pred_check_branch
      %2812 = sbr.rel (0) target = $region41
    $region40: #{cnn_forward.1} parent=1 // pred_region
      %s2814 = ssub.s32 32, 32
      %2815 = vsyncadd [#allocation5], %s2814
      %s2817 = sshll.u32 [#allocation4], 4
      %s2818 = int_to_ptr.vmem [resolvable:$true] %s2817
      %2820 = dma.vmem_to_hbm [thread:$0]  %s2818, 32, %s9, [#allocation5]
    $region41: #{cnn_forward.1} parent=1 // pred_fallthru
      _
    // Predicated region
    $region42: #{cnn_forward.1} parent=1 // pred_check
      _
    $region43: #{cnn_forward.1} parent=1 // pred_check_branch
      %2822 = sbr.rel (0) target = $region45
    $region44: #{cnn_forward.1} parent=1 // pred_region
      %2823 = dma.done [#allocation5], 32
    $region45: #{cnn_forward.1} parent=1 // pred_fallthru
      _
    %2824 = vsyncpa [#allocation5], 1

</llo_original>
